<compile_context>
chip_gen: v6e
topology: v6e:2x2x1
jax: 0.10.0
libtpu: 0.0.40
codegen_flags: <defaults>
</compile_context>

<pallas_src>
import numpy as np
import jax
import jax.numpy as jnp
from jax.experimental import pallas as pl
from jax.experimental.pallas import tpu as pltpu

B_DEFAULT = 4
SEQ_LEN = 20           # fixed by the module: conv4(x).view(-1, 20)
T_OUT = SEQ_LEN // 2   # 10 pooled / stride-2 output positions
DIM_FC = 120
N_CONV = 260           # 50 + 100 + 70 + 40 pooled conv channels

# --- K (patch-column) layout of the 128-wide im2col rows --------------------
# [p0(8) | pe1(12) | po1(12) | pe2(20) | po2(20) | pe3(28) | po3(28)] = 128
K_P0, K_PE1, K_PO1 = 0, 8, 20
K_PE2, K_PO2 = 32, 52
K_PE3, K_PO3 = 72, 100
K_W = 128

# --- N (output-column) layout of the packed weight / bias slabs -------------
CONV_HALF = 384                    # 260 conv cols + 2 y4 cols + pad -> 3*128
C_CONV_E = 0                       # even-position conv half
C_CONV_O = CONV_HALF               # odd-position conv half
C_FC2A = 2 * CONV_HALF             # fc2 layer 0 (in 128 = h|y4, out 100 -> 128)
C_FC2B = C_FC2A + 128              # fc2 layer 1 (in 100 -> 128, out 80 -> 128)
C_FC2C = C_FC2B + 128              # fc2 layer 2 (in 80  -> 128, out 60 -> 128)
C_FC2D = C_FC2C + 128              # fc2 layer 3 (in 60  -> 128, out 1  -> 128)
WCAT_W = C_FC2D + 128              # 1280
C_FC1B = WCAT_W                    # fc1 bias block (bias slab only)
BIAS_W = C_FC1B + 128              # 1408

# conv output sub-blocks inside each 384-wide half
O_Y0, O_Y1, O_Y2, O_Y3, O_Y4 = 0, 50, 150, 220, 260


def _round_up(v, m):
    return ((v + m - 1) // m) * m


# ---------------------------------------------------------------------------
# Kernel: one grid step per batch tile, everything resident in VMEM.
# ---------------------------------------------------------------------------
def _deepseq_kernel(p_ref, wcat_ref, bias_ref, wf1_ref, out_ref,
                    conv_e_scr, conv_o_scr, xc_scr):
    f32, bf16 = jnp.float32, jnp.bfloat16
    bt = out_ref.shape[0]

    # (1) Fused conv stage as two block-diagonal matmuls (even / odd pre-pool
    #     positions).  Results land in VMEM scratch so vreg pressure stays low.
    #     conv0 / conv4 (no pooling) only populate the even half (odd weights
    #     and bias are zero), so max(v, 0) followed by ReLU == ReLU(v).
    patches = p_ref[...]                                          # (10*bt, 128) bf16
    conv_e_scr[...] = (jnp.dot(patches, wcat_ref[:, C_CONV_E:C_CONV_E + CONV_HALF],
                               preferred_element_type=f32)
                       + bias_ref[:, C_CONV_E:C_CONV_E + CONV_HALF])
    conv_o_scr[...] = (jnp.dot(patches, wcat_ref[:, C_CONV_O:C_CONV_O + CONV_HALF],
                               preferred_element_type=f32)
                       + bias_ref[:, C_CONV_O:C_CONV_O + CONV_HALF])

    # (2) MaxPool1d(2)+ReLU and lane-aligned scatter into the per-sample fc1
    #     feature layout (stride 384 per position, sublane-aligned bt rows).
    for t in range(T_OUT):
        pooled_t = jnp.maximum(
            jnp.maximum(conv_e_scr[t * bt:(t + 1) * bt, :],
                        conv_o_scr[t * bt:(t + 1) * bt, :]), 0.0)  # (bt, 384)
        xc_scr[:, t * CONV_HALF:(t + 1) * CONV_HALF] = pooled_t.astype(bf16)

    # (3) fc1 (+ folded y4 pass-through): (bt, 3840) @ (3840, 128), bias, ReLU.
    #     Output lanes 0:100 = fc1, 100:120 = y4 (>= 0, ReLU is a no-op),
    #     120:128 = 0.
    h = jnp.dot(xc_scr[...], wf1_ref[...], preferred_element_type=f32)
    h = jnp.maximum(h + bias_ref[:, C_FC1B:C_FC1B + 128], 0.0)     # (bt, 128)

    # (4) fc2 stack: torch.cat((h, x4)) is already realised in h's lane layout,
    #     so each layer is one (bt,128)@(128,128) dot; widths zero-padded to 128.
    z = jnp.dot(h.astype(bf16), wcat_ref[:, C_FC2A:C_FC2A + 128],
                preferred_element_type=f32)
    z = jnp.maximum(z + bias_ref[:, C_FC2A:C_FC2A + 128], 0.0)
    z = jnp.dot(z.astype(bf16), wcat_ref[:, C_FC2B:C_FC2B + 128],
                preferred_element_type=f32)
    z = jnp.maximum(z + bias_ref[:, C_FC2B:C_FC2B + 128], 0.0)
    z = jnp.dot(z.astype(bf16), wcat_ref[:, C_FC2C:C_FC2C + 128],
                preferred_element_type=f32)
    z = jnp.maximum(z + bias_ref[:, C_FC2C:C_FC2C + 128], 0.0)
    out_ref[...] = (jnp.dot(z.astype(bf16), wcat_ref[:, C_FC2D:C_FC2D + 128],
                            preferred_element_type=f32)
                    + bias_ref[:, C_FC2D:C_FC2D + 128])            # col 0 = result


# ---------------------------------------------------------------------------
# Host-side ONE-TIME weight packing (numpy; not part of the jitted forward).
# ---------------------------------------------------------------------------
def pack_params(params):
    P = {k: np.asarray(v, np.float32) for k, v in params.items()}

    def cw(w):  # (Cout, 4, k) -> (4*k, Cout), row index ci*k + dk
        return w.reshape(w.shape[0], -1).T

    W = np.zeros((K_W, WCAT_W), np.float32)
    b = np.zeros((1, BIAS_W), np.float32)

    W0, W1, W2, W3 = cw(P["w0"]), cw(P["w1"]), cw(P["w2"]), cw(P["w3"])
    w4 = P["w4"].reshape(4)

    # even-position half (conv evaluated at pre-pool position 2t)
    e = C_CONV_E
    W[K_P0:K_P0 + 8,    e + O_Y0:e + O_Y0 + 50] = W0
    W[K_PE1:K_PE1 + 12, e + O_Y1:e + O_Y1 + 100] = W1
    W[K_PE2:K_PE2 + 20, e + O_Y2:e + O_Y2 + 70] = W2
    W[K_PE3:K_PE3 + 28, e + O_Y3:e + O_Y3 + 40] = W3
    W[0:8:2, e + O_Y4] = w4          # conv4 @ position 2t
    W[1:8:2, e + O_Y4 + 1] = w4      # conv4 @ position 2t+1
    # odd-position half; conv0 / conv4 have no odd branch -> zero columns
    o = C_CONV_O
    W[K_PO1:K_PO1 + 12, o + O_Y1:o + O_Y1 + 100] = W1
    W[K_PO2:K_PO2 + 20, o + O_Y2:o + O_Y2 + 70] = W2
    W[K_PO3:K_PO3 + 28, o + O_Y3:o + O_Y3 + 40] = W3

    # fc2 stack, stored as (in, out); fc2a rows 100:120 take the y4 lanes of h.
    W[0:100,   C_FC2A:C_FC2A + 100] = P["fc2a_w"][:, :100].T
    W[100:120, C_FC2A:C_FC2A + 100] = P["fc2a_w"][:, 100:120].T
    W[0:100,   C_FC2B:C_FC2B + 80] = P["fc2b_w"].T
    W[0:80,    C_FC2C:C_FC2C + 60] = P["fc2c_w"].T
    W[0:60,    C_FC2D:C_FC2D + 1] = P["fc2d_w"].T

    # biases (column layout mirrors the weight slab)
    b[0, e + O_Y0:e + O_Y0 + 50] = P["b0"]
    b[0, e + O_Y1:e + O_Y1 + 100] = P["b1"]
    b[0, e + O_Y2:e + O_Y2 + 70] = P["b2"]
    b[0, e + O_Y3:e + O_Y3 + 40] = P["b3"]
    b[0, e + O_Y4] = P["b4"][0]
    b[0, e + O_Y4 + 1] = P["b4"][0]
    b[0, o + O_Y1:o + O_Y1 + 100] = P["b1"]
    b[0, o + O_Y2:o + O_Y2 + 70] = P["b2"]
    b[0, o + O_Y3:o + O_Y3 + 40] = P["b3"]
    b[0, C_FC2A:C_FC2A + 100] = P["fc2a_b"]
    b[0, C_FC2B:C_FC2B + 80] = P["fc2b_b"]
    b[0, C_FC2C:C_FC2C + 60] = P["fc2c_b"]
    b[0, C_FC2D] = P["fc2d_b"][0]
    b[0, C_FC1B:C_FC1B + 100] = P["fc1_b"]

    # fc1: (T_OUT*384, 128); row = t*384 + conv-channel, plus identity rows for
    # the y4 pass-through into output lanes 100 + position.
    # PyTorch fc1 input feature index = channel*10 + t.
    wf1 = np.zeros((T_OUT, CONV_HALF, 128), np.float32)
    blk = P["fc1_w"].T.reshape(N_CONV, T_OUT, 100).transpose(1, 0, 2)  # (t, ch, 100)
    wf1[:, :N_CONV, :100] = blk
    t_idx = np.arange(T_OUT)
    wf1[t_idx, O_Y4,     100 + 2 * t_idx] = 1.0
    wf1[t_idx, O_Y4 + 1, 100 + 2 * t_idx + 1] = 1.0
    wf1 = wf1.reshape(T_OUT * CONV_HALF, 128)

    return {"wcat": jnp.asarray(W, jnp.bfloat16),
            "bias": jnp.asarray(b, jnp.float32),
            "wf1": jnp.asarray(wf1, jnp.bfloat16)}


# ---------------------------------------------------------------------------
# Static im2col index table (host-side numpy constant).
# padded x has 3 zeros each side (len 26); original index i -> padded i + 3.
# ---------------------------------------------------------------------------
def _patch_index_table():
    #        (k, offset, parity): tap original index = 2t + parity + dk + offset
    groups = [(2, 0, 0),    # p0  : conv0 (k=2, stride 2)
              (3, -1, 0),   # pe1 : conv1 even
              (3, -1, 1),   # po1 : conv1 odd
              (5, -2, 0),   # pe2 : conv2 even
              (5, -2, 1),   # po2 : conv2 odd
              (7, -3, 0),   # pe3 : conv3 even
              (7, -3, 1)]   # po3 : conv3 odd
    idx = np.zeros((T_OUT, K_W), np.int32)
    col = 0
    for (k, off, parity) in groups:
        for ci in range(4):
            for dk in range(k):
                for t in range(T_OUT):
                    orig = 2 * t + parity + dk + off
                    idx[t, col] = ci * (SEQ_LEN + 6) + (orig + 3)
                col += 1
    assert col == K_W
    return idx


PATCH_IDX = _patch_index_table()   # (10, 128) constant


# ---------------------------------------------------------------------------
# Forward: builds bf16 im2col patches and runs the kernel. `packed` comes from
# pack_params() and is produced once at weight-load time.
# ---------------------------------------------------------------------------
def deepseq_forward(x, packed, batch_tile=None):
    B = x.shape[0]
    assert x.shape[1:] == (4, SEQ_LEN)
    if batch_tile is None:
        batch_tile = min(_round_up(B, 8), 32)
    bt = _round_up(batch_tile, 8)
    bp = _round_up(B, bt)
    n_tiles = bp // bt

    x = x.astype(jnp.float32)
    xpad = jnp.pad(x, ((0, bp - B), (0, 0), (3, 3)))            # (bp, 4, 26)
    flat = xpad.reshape(bp, 4 * (SEQ_LEN + 6))                  # (bp, 104)
    patches = flat[:, PATCH_IDX].astype(jnp.bfloat16)           # (bp, 10, 128)
    # tile-major row layout: row = tile*(T_OUT*bt) + t*bt + b_in_tile
    patches = (patches.reshape(n_tiles, bt, T_OUT, K_W)
                      .transpose(0, 2, 1, 3)
                      .reshape(n_tiles * T_OUT * bt, K_W))

    grid_spec = pltpu.PrefetchScalarGridSpec(
        num_scalar_prefetch=0,
        grid=(n_tiles,),
        in_specs=[
            pl.BlockSpec((T_OUT * bt, K_W), lambda i: (i, 0)),
            pl.BlockSpec((K_W, WCAT_W), lambda i: (0, 0)),
            pl.BlockSpec((1, BIAS_W), lambda i: (0, 0)),
            pl.BlockSpec((T_OUT * CONV_HALF, 128), lambda i: (0, 0)),
        ],
        out_specs=pl.BlockSpec((bt, 128), lambda i: (i, 0)),
        scratch_shapes=[
            pltpu.VMEM((T_OUT * bt, CONV_HALF), jnp.float32),    # conv even half
            pltpu.VMEM((T_OUT * bt, CONV_HALF), jnp.float32),    # conv odd half
            pltpu.VMEM((bt, T_OUT * CONV_HALF), jnp.bfloat16),   # fc1 features
        ],
    )
    out = pl.pallas_call(
        _deepseq_kernel,
        out_shape=jax.ShapeDtypeStruct((bp, 128), jnp.float32),
        grid_spec=grid_spec,
        compiler_params=pltpu.CompilerParams(dimension_semantics=("parallel",)),
    )(patches, packed["wcat"], packed["bias"], packed["wf1"])
    return out[:B, :1]                 # lane-dense kernel output, real col = 0


# ---------------------------------------------------------------------------
# Deterministic parameter init (PyTorch-shaped tensors) + pure-JAX reference.
# ---------------------------------------------------------------------------
def init_params(key):
    def nrm(k, shape, scale=0.1):
        return scale * jax.random.normal(k, shape, dtype=jnp.float32)

    ks = jax.random.split(key, 20)
    return {
        "w0": nrm(ks[0], (50, 4, 2)),  "b0": nrm(ks[1], (50,)),
        "w1": nrm(ks[2], (100, 4, 3)), "b1": nrm(ks[3], (100,)),
        "w2": nrm(ks[4], (70, 4, 5)),  "b2": nrm(ks[5], (70,)),
        "w3": nrm(ks[6], (40, 4, 7)),  "b3": nrm(ks[7], (40,)),
        "w4": nrm(ks[8], (1, 4, 1)),   "b4": nrm(ks[9], (1,)),
        "fc1_w": nrm(ks[10], (100, 260 * T_OUT), 0.02), "fc1_b": nrm(ks[11], (100,)),
        "fc2a_w": nrm(ks[12], (100, DIM_FC)), "fc2a_b": nrm(ks[13], (100,)),
        "fc2b_w": nrm(ks[14], (80, 100)),     "fc2b_b": nrm(ks[15], (80,)),
        "fc2c_w": nrm(ks[16], (60, 80)),      "fc2c_b": nrm(ks[17], (60,)),
        "fc2d_w": nrm(ks[18], (1, 60)),       "fc2d_b": nrm(ks[19], (1,)),
    }


def reference_forward(x, P):
    """Pure-JAX reference mirroring the PyTorch forward (dropout = identity)."""
    relu = lambda v: jnp.maximum(v, 0.0)

    def conv1d(inp, w, b, stride=1, padding=0):
        out = jax.lax.conv_general_dilated(
            inp, w, window_strides=(stride,), padding=[(padding, padding)],
            dimension_numbers=("NCH", "OIH", "NCH"))
        return out + b[None, :, None]

    def pooled(c):
        B, C, L = c.shape
        return relu(jnp.max(c.reshape(B, C, L // 2, 2), axis=-1))

    x0 = relu(conv1d(x, P["w0"], P["b0"], stride=2))
    x1 = pooled(conv1d(x, P["w1"], P["b1"], padding=1))
    x2 = pooled(conv1d(x, P["w2"], P["b2"], padding=2))
    x3 = pooled(conv1d(x, P["w3"], P["b3"], padding=3))
    x4 = relu(conv1d(x, P["w4"], P["b4"])).reshape(-1, SEQ_LEN)
    xc = jnp.concatenate([x0, x1, x2, x3], axis=1).reshape(x.shape[0], 260 * T_OUT)
    h = relu(xc @ P["fc1_w"].T + P["fc1_b"])
    z = jnp.concatenate([h, x4], axis=1)
    z = relu(z @ P["fc2a_w"].T + P["fc2a_b"])
    z = relu(z @ P["fc2b_w"].T + P["fc2b_b"])
    z = relu(z @ P["fc2c_w"].T + P["fc2c_b"])
    return z @ P["fc2d_w"].T + P["fc2d_b"]


if __name__ == "__main__":
    key = jax.random.PRNGKey(0)
    pkey, xkey = jax.random.split(key)
    params = init_params(pkey)
    packed = pack_params(params)                 # one-time, host-side packing
    x = jax.random.normal(xkey, (B_DEFAULT, 4, SEQ_LEN), dtype=jnp.float32)

    fwd = jax.jit(deepseq_forward)
    out = jax.block_until_ready(fwd(x, packed))
    ref = jax.block_until_ready(reference_forward(x, params))

    assert out.shape == (B_DEFAULT, 1)
    # bf16 weights/activations with f32 accumulation -> slightly relaxed tol.
    if not bool(jnp.allclose(out, ref, rtol=3e-2, atol=3e-2)):
        raise AssertionError(
            f"kernel/reference mismatch, max abs err = {float(jnp.max(jnp.abs(out - ref)))}")
    print("KERNEL_OK")
</pallas_src>

<mosaic_0001>
module attributes {stable_mosaic.version = 11 : i64} {
  func.func @_deepseq_kernel(%arg0: i32, %arg1: memref<80x128xbf16, #tpu.memory_space<vmem>>, %arg2: memref<128x1280xbf16, #tpu.memory_space<vmem>>, %arg3: memref<1x1408xf32, #tpu.memory_space<vmem>>, %arg4: memref<3840x128xbf16, #tpu.memory_space<vmem>>, %arg5: memref<8x128xf32, #tpu.memory_space<vmem>>, %arg6: memref<80x384xf32, #tpu.memory_space<vmem>>, %arg7: memref<80x384xf32, #tpu.memory_space<vmem>>, %arg8: memref<8x3840xbf16, #tpu.memory_space<vmem>>) attributes {dimension_semantics = [#tpu.dimension_semantics<parallel>], iteration_bounds = array<i64: 1>, scalar_prefetch = 0 : i64, scratch_operands = 3 : i64, tpu.core_type = #tpu.core_type<tc>, window_params = [{transform_indices = @transform_0, window_bounds = array<i64: 80, 128>}, {pipeline_mode = #tpu.pipeline_mode<synchronous>, transform_indices = @transform_1, window_bounds = array<i64: 128, 1280>}, {pipeline_mode = #tpu.pipeline_mode<synchronous>, transform_indices = @transform_2, window_bounds = array<i64: 1, 1408>}, {pipeline_mode = #tpu.pipeline_mode<synchronous>, transform_indices = @transform_3, window_bounds = array<i64: 3840, 128>}, {transform_indices = @transform_4, window_bounds = array<i64: 8, 128>}]} {
    %c0 = arith.constant 0 : index
    %c0_0 = arith.constant 0 : index
    %0 = vector.load %arg1[%c0, %c0_0] : memref<80x128xbf16, #tpu.memory_space<vmem>>, vector<80x128xbf16>
    %c0_1 = arith.constant 0 : index
    %c0_2 = arith.constant 0 : index
    %1 = vector.load %arg2[%c0_1, %c0_2] : memref<128x1280xbf16, #tpu.memory_space<vmem>>, vector<128x384xbf16>
    %cst = arith.constant dense<0.000000e+00> : vector<80x384xf32>
    %2 = tpu.matmul %0, %1, %cst {dimension_numbers = #tpu.dot_dimension_numbers<[1], [0], [0], [1], [0, 0, 1, 1], [], []>} : vector<80x128xbf16>, vector<128x384xbf16>, vector<80x384xf32> -> vector<80x384xf32>
    %c0_3 = arith.constant 0 : index
    %c0_4 = arith.constant 0 : index
    %3 = vector.load %arg3[%c0_3, %c0_4] : memref<1x1408xf32, #tpu.memory_space<vmem>>, vector<1x384xf32>
    %4 = vector.broadcast %3 : vector<1x384xf32> to vector<80x384xf32>
    %5 = arith.addf %2, %4 : vector<80x384xf32>
    %c0_5 = arith.constant 0 : index
    %c0_6 = arith.constant 0 : index
    %6 = vector.load %arg6[%c0_5, %c0_6] : memref<80x384xf32, #tpu.memory_space<vmem>>, vector<80x384xf32>
    tpu.vector_store %arg6[%c0_5, %c0_6], %5 {strides = array<i32>} : memref<80x384xf32, #tpu.memory_space<vmem>>, vector<80x384xf32>,
    %c0_7 = arith.constant 0 : index
    %c384 = arith.constant 384 : index
    %7 = vector.load %arg2[%c0_7, %c384] : memref<128x1280xbf16, #tpu.memory_space<vmem>>, vector<128x384xbf16>
    %cst_8 = arith.constant dense<0.000000e+00> : vector<80x384xf32>
    %8 = tpu.matmul %0, %7, %cst_8 {dimension_numbers = #tpu.dot_dimension_numbers<[1], [0], [0], [1], [0, 0, 1, 1], [], []>} : vector<80x128xbf16>, vector<128x384xbf16>, vector<80x384xf32> -> vector<80x384xf32>
    %c0_9 = arith.constant 0 : index
    %c384_10 = arith.constant 384 : index
    %9 = vector.load %arg3[%c0_9, %c384_10] : memref<1x1408xf32, #tpu.memory_space<vmem>>, vector<1x384xf32>
    %10 = vector.broadcast %9 : vector<1x384xf32> to vector<80x384xf32>
    %11 = arith.addf %8, %10 : vector<80x384xf32>
    %c0_11 = arith.constant 0 : index
    %c0_12 = arith.constant 0 : index
    %12 = vector.load %arg7[%c0_11, %c0_12] : memref<80x384xf32, #tpu.memory_space<vmem>>, vector<80x384xf32>
    tpu.vector_store %arg7[%c0_11, %c0_12], %11 {strides = array<i32>} : memref<80x384xf32, #tpu.memory_space<vmem>>, vector<80x384xf32>,
    %c0_13 = arith.constant 0 : index
    %c0_14 = arith.constant 0 : index
    %13 = vector.load %arg6[%c0_13, %c0_14] : memref<80x384xf32, #tpu.memory_space<vmem>>, vector<8x384xf32>
    %c0_15 = arith.constant 0 : index
    %c0_16 = arith.constant 0 : index
    %14 = vector.load %arg7[%c0_15, %c0_16] : memref<80x384xf32, #tpu.memory_space<vmem>>, vector<8x384xf32>
    %15 = arith.maximumf %13, %14 : vector<8x384xf32>
    %cst_17 = arith.constant 0.000000e+00 : f32
    %16 = vector.broadcast %cst_17 : f32 to vector<8x384xf32>
    %17 = arith.maximumf %15, %16 : vector<8x384xf32>
    %18 = arith.truncf %17 : vector<8x384xf32> to vector<8x384xbf16>
    %c0_18 = arith.constant 0 : index
    %c0_19 = arith.constant 0 : index
    %19 = vector.load %arg8[%c0_18, %c0_19] : memref<8x3840xbf16, #tpu.memory_space<vmem>>, vector<8x384xbf16>
    tpu.vector_store %arg8[%c0_18, %c0_19], %18 {strides = array<i32>} : memref<8x3840xbf16, #tpu.memory_space<vmem>>, vector<8x384xbf16>,
    %c8 = arith.constant 8 : index
    %c0_20 = arith.constant 0 : index
    %20 = vector.load %arg6[%c8, %c0_20] : memref<80x384xf32, #tpu.memory_space<vmem>>, vector<8x384xf32>
    %c8_21 = arith.constant 8 : index
    %c0_22 = arith.constant 0 : index
    %21 = vector.load %arg7[%c8_21, %c0_22] : memref<80x384xf32, #tpu.memory_space<vmem>>, vector<8x384xf32>
    %22 = arith.maximumf %20, %21 : vector<8x384xf32>
    %cst_23 = arith.constant 0.000000e+00 : f32
    %23 = vector.broadcast %cst_23 : f32 to vector<8x384xf32>
    %24 = arith.maximumf %22, %23 : vector<8x384xf32>
    %25 = arith.truncf %24 : vector<8x384xf32> to vector<8x384xbf16>
    %c0_24 = arith.constant 0 : index
    %c384_25 = arith.constant 384 : index
    %26 = vector.load %arg8[%c0_24, %c384_25] : memref<8x3840xbf16, #tpu.memory_space<vmem>>, vector<8x384xbf16>
    tpu.vector_store %arg8[%c0_24, %c384_25], %25 {strides = array<i32>} : memref<8x3840xbf16, #tpu.memory_space<vmem>>, vector<8x384xbf16>,
    %c16 = arith.constant 16 : index
    %c0_26 = arith.constant 0 : index
    %27 = vector.load %arg6[%c16, %c0_26] : memref<80x384xf32, #tpu.memory_space<vmem>>, vector<8x384xf32>
    %c16_27 = arith.constant 16 : index
    %c0_28 = arith.constant 0 : index
    %28 = vector.load %arg7[%c16_27, %c0_28] : memref<80x384xf32, #tpu.memory_space<vmem>>, vector<8x384xf32>
    %29 = arith.maximumf %27, %28 : vector<8x384xf32>
    %cst_29 = arith.constant 0.000000e+00 : f32
    %30 = vector.broadcast %cst_29 : f32 to vector<8x384xf32>
    %31 = arith.maximumf %29, %30 : vector<8x384xf32>
    %32 = arith.truncf %31 : vector<8x384xf32> to vector<8x384xbf16>
    %c0_30 = arith.constant 0 : index
    %c768 = arith.constant 768 : index
    %33 = vector.load %arg8[%c0_30, %c768] : memref<8x3840xbf16, #tpu.memory_space<vmem>>, vector<8x384xbf16>
    tpu.vector_store %arg8[%c0_30, %c768], %32 {strides = array<i32>} : memref<8x3840xbf16, #tpu.memory_space<vmem>>, vector<8x384xbf16>,
    %c24 = arith.constant 24 : index
    %c0_31 = arith.constant 0 : index
    %34 = vector.load %arg6[%c24, %c0_31] : memref<80x384xf32, #tpu.memory_space<vmem>>, vector<8x384xf32>
    %c24_32 = arith.constant 24 : index
    %c0_33 = arith.constant 0 : index
    %35 = vector.load %arg7[%c24_32, %c0_33] : memref<80x384xf32, #tpu.memory_space<vmem>>, vector<8x384xf32>
    %36 = arith.maximumf %34, %35 : vector<8x384xf32>
    %cst_34 = arith.constant 0.000000e+00 : f32
    %37 = vector.broadcast %cst_34 : f32 to vector<8x384xf32>
    %38 = arith.maximumf %36, %37 : vector<8x384xf32>
    %39 = arith.truncf %38 : vector<8x384xf32> to vector<8x384xbf16>
    %c0_35 = arith.constant 0 : index
    %c1152 = arith.constant 1152 : index
    %40 = vector.load %arg8[%c0_35, %c1152] : memref<8x3840xbf16, #tpu.memory_space<vmem>>, vector<8x384xbf16>
    tpu.vector_store %arg8[%c0_35, %c1152], %39 {strides = array<i32>} : memref<8x3840xbf16, #tpu.memory_space<vmem>>, vector<8x384xbf16>,
    %c32 = arith.constant 32 : index
    %c0_36 = arith.constant 0 : index
    %41 = vector.load %arg6[%c32, %c0_36] : memref<80x384xf32, #tpu.memory_space<vmem>>, vector<8x384xf32>
    %c32_37 = arith.constant 32 : index
    %c0_38 = arith.constant 0 : index
    %42 = vector.load %arg7[%c32_37, %c0_38] : memref<80x384xf32, #tpu.memory_space<vmem>>, vector<8x384xf32>
    %43 = arith.maximumf %41, %42 : vector<8x384xf32>
    %cst_39 = arith.constant 0.000000e+00 : f32
    %44 = vector.broadcast %cst_39 : f32 to vector<8x384xf32>
    %45 = arith.maximumf %43, %44 : vector<8x384xf32>
    %46 = arith.truncf %45 : vector<8x384xf32> to vector<8x384xbf16>
    %c0_40 = arith.constant 0 : index
    %c1536 = arith.constant 1536 : index
    %47 = vector.load %arg8[%c0_40, %c1536] : memref<8x3840xbf16, #tpu.memory_space<vmem>>, vector<8x384xbf16>
    tpu.vector_store %arg8[%c0_40, %c1536], %46 {strides = array<i32>} : memref<8x3840xbf16, #tpu.memory_space<vmem>>, vector<8x384xbf16>,
    %c40 = arith.constant 40 : index
    %c0_41 = arith.constant 0 : index
    %48 = vector.load %arg6[%c40, %c0_41] : memref<80x384xf32, #tpu.memory_space<vmem>>, vector<8x384xf32>
    %c40_42 = arith.constant 40 : index
    %c0_43 = arith.constant 0 : index
    %49 = vector.load %arg7[%c40_42, %c0_43] : memref<80x384xf32, #tpu.memory_space<vmem>>, vector<8x384xf32>
    %50 = arith.maximumf %48, %49 : vector<8x384xf32>
    %cst_44 = arith.constant 0.000000e+00 : f32
    %51 = vector.broadcast %cst_44 : f32 to vector<8x384xf32>
    %52 = arith.maximumf %50, %51 : vector<8x384xf32>
    %53 = arith.truncf %52 : vector<8x384xf32> to vector<8x384xbf16>
    %c0_45 = arith.constant 0 : index
    %c1920 = arith.constant 1920 : index
    %54 = vector.load %arg8[%c0_45, %c1920] : memref<8x3840xbf16, #tpu.memory_space<vmem>>, vector<8x384xbf16>
    tpu.vector_store %arg8[%c0_45, %c1920], %53 {strides = array<i32>} : memref<8x3840xbf16, #tpu.memory_space<vmem>>, vector<8x384xbf16>,
    %c48 = arith.constant 48 : index
    %c0_46 = arith.constant 0 : index
    %55 = vector.load %arg6[%c48, %c0_46] : memref<80x384xf32, #tpu.memory_space<vmem>>, vector<8x384xf32>
    %c48_47 = arith.constant 48 : index
    %c0_48 = arith.constant 0 : index
    %56 = vector.load %arg7[%c48_47, %c0_48] : memref<80x384xf32, #tpu.memory_space<vmem>>, vector<8x384xf32>
    %57 = arith.maximumf %55, %56 : vector<8x384xf32>
    %cst_49 = arith.constant 0.000000e+00 : f32
    %58 = vector.broadcast %cst_49 : f32 to vector<8x384xf32>
    %59 = arith.maximumf %57, %58 : vector<8x384xf32>
    %60 = arith.truncf %59 : vector<8x384xf32> to vector<8x384xbf16>
    %c0_50 = arith.constant 0 : index
    %c2304 = arith.constant 2304 : index
    %61 = vector.load %arg8[%c0_50, %c2304] : memref<8x3840xbf16, #tpu.memory_space<vmem>>, vector<8x384xbf16>
    tpu.vector_store %arg8[%c0_50, %c2304], %60 {strides = array<i32>} : memref<8x3840xbf16, #tpu.memory_space<vmem>>, vector<8x384xbf16>,
    %c56 = arith.constant 56 : index
    %c0_51 = arith.constant 0 : index
    %62 = vector.load %arg6[%c56, %c0_51] : memref<80x384xf32, #tpu.memory_space<vmem>>, vector<8x384xf32>
    %c56_52 = arith.constant 56 : index
    %c0_53 = arith.constant 0 : index
    %63 = vector.load %arg7[%c56_52, %c0_53] : memref<80x384xf32, #tpu.memory_space<vmem>>, vector<8x384xf32>
    %64 = arith.maximumf %62, %63 : vector<8x384xf32>
    %cst_54 = arith.constant 0.000000e+00 : f32
    %65 = vector.broadcast %cst_54 : f32 to vector<8x384xf32>
    %66 = arith.maximumf %64, %65 : vector<8x384xf32>
    %67 = arith.truncf %66 : vector<8x384xf32> to vector<8x384xbf16>
    %c0_55 = arith.constant 0 : index
    %c2688 = arith.constant 2688 : index
    %68 = vector.load %arg8[%c0_55, %c2688] : memref<8x3840xbf16, #tpu.memory_space<vmem>>, vector<8x384xbf16>
    tpu.vector_store %arg8[%c0_55, %c2688], %67 {strides = array<i32>} : memref<8x3840xbf16, #tpu.memory_space<vmem>>, vector<8x384xbf16>,
    %c64 = arith.constant 64 : index
    %c0_56 = arith.constant 0 : index
    %69 = vector.load %arg6[%c64, %c0_56] : memref<80x384xf32, #tpu.memory_space<vmem>>, vector<8x384xf32>
    %c64_57 = arith.constant 64 : index
    %c0_58 = arith.constant 0 : index
    %70 = vector.load %arg7[%c64_57, %c0_58] : memref<80x384xf32, #tpu.memory_space<vmem>>, vector<8x384xf32>
    %71 = arith.maximumf %69, %70 : vector<8x384xf32>
    %cst_59 = arith.constant 0.000000e+00 : f32
    %72 = vector.broadcast %cst_59 : f32 to vector<8x384xf32>
    %73 = arith.maximumf %71, %72 : vector<8x384xf32>
    %74 = arith.truncf %73 : vector<8x384xf32> to vector<8x384xbf16>
    %c0_60 = arith.constant 0 : index
    %c3072 = arith.constant 3072 : index
    %75 = vector.load %arg8[%c0_60, %c3072] : memref<8x3840xbf16, #tpu.memory_space<vmem>>, vector<8x384xbf16>
    tpu.vector_store %arg8[%c0_60, %c3072], %74 {strides = array<i32>} : memref<8x3840xbf16, #tpu.memory_space<vmem>>, vector<8x384xbf16>,
    %c72 = arith.constant 72 : index
    %c0_61 = arith.constant 0 : index
    %76 = vector.load %arg6[%c72, %c0_61] : memref<80x384xf32, #tpu.memory_space<vmem>>, vector<8x384xf32>
    %c72_62 = arith.constant 72 : index
    %c0_63 = arith.constant 0 : index
    %77 = vector.load %arg7[%c72_62, %c0_63] : memref<80x384xf32, #tpu.memory_space<vmem>>, vector<8x384xf32>
    %78 = arith.maximumf %76, %77 : vector<8x384xf32>
    %cst_64 = arith.constant 0.000000e+00 : f32
    %79 = vector.broadcast %cst_64 : f32 to vector<8x384xf32>
    %80 = arith.maximumf %78, %79 : vector<8x384xf32>
    %81 = arith.truncf %80 : vector<8x384xf32> to vector<8x384xbf16>
    %c0_65 = arith.constant 0 : index
    %c3456 = arith.constant 3456 : index
    %82 = vector.load %arg8[%c0_65, %c3456] : memref<8x3840xbf16, #tpu.memory_space<vmem>>, vector<8x384xbf16>
    tpu.vector_store %arg8[%c0_65, %c3456], %81 {strides = array<i32>} : memref<8x3840xbf16, #tpu.memory_space<vmem>>, vector<8x384xbf16>,
    %c0_66 = arith.constant 0 : index
    %c0_67 = arith.constant 0 : index
    %83 = vector.load %arg8[%c0_66, %c0_67] : memref<8x3840xbf16, #tpu.memory_space<vmem>>, vector<8x3840xbf16>
    %c0_68 = arith.constant 0 : index
    %c0_69 = arith.constant 0 : index
    %84 = vector.load %arg4[%c0_68, %c0_69] : memref<3840x128xbf16, #tpu.memory_space<vmem>>, vector<3840x128xbf16>
    %cst_70 = arith.constant dense<0.000000e+00> : vector<8x128xf32>
    %85 = tpu.matmul %83, %84, %cst_70 {dimension_numbers = #tpu.dot_dimension_numbers<[1], [0], [0], [1], [0, 0, 1, 1], [], []>} : vector<8x3840xbf16>, vector<3840x128xbf16>, vector<8x128xf32> -> vector<8x128xf32>
    %c0_71 = arith.constant 0 : index
    %c1280 = arith.constant 1280 : index
    %86 = vector.load %arg3[%c0_71, %c1280] : memref<1x1408xf32, #tpu.memory_space<vmem>>, vector<1x128xf32>
    %87 = vector.broadcast %86 : vector<1x128xf32> to vector<8x128xf32>
    %88 = arith.addf %85, %87 : vector<8x128xf32>
    %cst_72 = arith.constant 0.000000e+00 : f32
    %89 = vector.broadcast %cst_72 : f32 to vector<8x128xf32>
    %90 = arith.maximumf %88, %89 : vector<8x128xf32>
    %91 = arith.truncf %90 : vector<8x128xf32> to vector<8x128xbf16>
    %c0_73 = arith.constant 0 : index
    %c768_74 = arith.constant 768 : index
    %92 = vector.load %arg2[%c0_73, %c768_74] : memref<128x1280xbf16, #tpu.memory_space<vmem>>, vector<128x128xbf16>
    %cst_75 = arith.constant dense<0.000000e+00> : vector<8x128xf32>
    %93 = tpu.matmul %91, %92, %cst_75 {dimension_numbers = #tpu.dot_dimension_numbers<[1], [0], [0], [1], [0, 0, 1, 1], [], []>} : vector<8x128xbf16>, vector<128x128xbf16>, vector<8x128xf32> -> vector<8x128xf32>
    %c0_76 = arith.constant 0 : index
    %c768_77 = arith.constant 768 : index
    %94 = vector.load %arg3[%c0_76, %c768_77] : memref<1x1408xf32, #tpu.memory_space<vmem>>, vector<1x128xf32>
    %95 = vector.broadcast %94 : vector<1x128xf32> to vector<8x128xf32>
    %96 = arith.addf %93, %95 : vector<8x128xf32>
    %cst_78 = arith.constant 0.000000e+00 : f32
    %97 = vector.broadcast %cst_78 : f32 to vector<8x128xf32>
    %98 = arith.maximumf %96, %97 : vector<8x128xf32>
    %99 = arith.truncf %98 : vector<8x128xf32> to vector<8x128xbf16>
    %c0_79 = arith.constant 0 : index
    %c896 = arith.constant 896 : index
    %100 = vector.load %arg2[%c0_79, %c896] : memref<128x1280xbf16, #tpu.memory_space<vmem>>, vector<128x128xbf16>
    %cst_80 = arith.constant dense<0.000000e+00> : vector<8x128xf32>
    %101 = tpu.matmul %99, %100, %cst_80 {dimension_numbers = #tpu.dot_dimension_numbers<[1], [0], [0], [1], [0, 0, 1, 1], [], []>} : vector<8x128xbf16>, vector<128x128xbf16>, vector<8x128xf32> -> vector<8x128xf32>
    %c0_81 = arith.constant 0 : index
    %c896_82 = arith.constant 896 : index
    %102 = vector.load %arg3[%c0_81, %c896_82] : memref<1x1408xf32, #tpu.memory_space<vmem>>, vector<1x128xf32>
    %103 = vector.broadcast %102 : vector<1x128xf32> to vector<8x128xf32>
    %104 = arith.addf %101, %103 : vector<8x128xf32>
    %cst_83 = arith.constant 0.000000e+00 : f32
    %105 = vector.broadcast %cst_83 : f32 to vector<8x128xf32>
    %106 = arith.maximumf %104, %105 : vector<8x128xf32>
    %107 = arith.truncf %106 : vector<8x128xf32> to vector<8x128xbf16>
    %c0_84 = arith.constant 0 : index
    %c1024 = arith.constant 1024 : index
    %108 = vector.load %arg2[%c0_84, %c1024] : memref<128x1280xbf16, #tpu.memory_space<vmem>>, vector<128x128xbf16>
    %cst_85 = arith.constant dense<0.000000e+00> : vector<8x128xf32>
    %109 = tpu.matmul %107, %108, %cst_85 {dimension_numbers = #tpu.dot_dimension_numbers<[1], [0], [0], [1], [0, 0, 1, 1], [], []>} : vector<8x128xbf16>, vector<128x128xbf16>, vector<8x128xf32> -> vector<8x128xf32>
    %c0_86 = arith.constant 0 : index
    %c1024_87 = arith.constant 1024 : index
    %110 = vector.load %arg3[%c0_86, %c1024_87] : memref<1x1408xf32, #tpu.memory_space<vmem>>, vector<1x128xf32>
    %111 = vector.broadcast %110 : vector<1x128xf32> to vector<8x128xf32>
    %112 = arith.addf %109, %111 : vector<8x128xf32>
    %cst_88 = arith.constant 0.000000e+00 : f32
    %113 = vector.broadcast %cst_88 : f32 to vector<8x128xf32>
    %114 = arith.maximumf %112, %113 : vector<8x128xf32>
    %115 = arith.truncf %114 : vector<8x128xf32> to vector<8x128xbf16>
    %c0_89 = arith.constant 0 : index
    %c1152_90 = arith.constant 1152 : index
    %116 = vector.load %arg2[%c0_89, %c1152_90] : memref<128x1280xbf16, #tpu.memory_space<vmem>>, vector<128x128xbf16>
    %cst_91 = arith.constant dense<0.000000e+00> : vector<8x128xf32>
    %117 = tpu.matmul %115, %116, %cst_91 {dimension_numbers = #tpu.dot_dimension_numbers<[1], [0], [0], [1], [0, 0, 1, 1], [], []>} : vector<8x128xbf16>, vector<128x128xbf16>, vector<8x128xf32> -> vector<8x128xf32>
    %c0_92 = arith.constant 0 : index
    %c1152_93 = arith.constant 1152 : index
    %118 = vector.load %arg3[%c0_92, %c1152_93] : memref<1x1408xf32, #tpu.memory_space<vmem>>, vector<1x128xf32>
    %119 = vector.broadcast %118 : vector<1x128xf32> to vector<8x128xf32>
    %120 = arith.addf %117, %119 : vector<8x128xf32>
    %c0_94 = arith.constant 0 : index
    %c0_95 = arith.constant 0 : index
    %121 = vector.load %arg5[%c0_94, %c0_95] : memref<8x128xf32, #tpu.memory_space<vmem>>, vector<8x128xf32>
    tpu.vector_store %arg5[%c0_94, %c0_95], %120 {strides = array<i32>} : memref<8x128xf32, #tpu.memory_space<vmem>>, vector<8x128xf32>,
    return
  }
  func.func @transform_0(%arg0: i32) -> (i32, i32) {
    %c0_i32 = arith.constant 0 : i32
    %c0_i32_0 = arith.constant 0 : i32
    return %arg0, %c0_i32 : i32, i32
  }
  func.func @transform_1(%arg0: i32) -> (i32, i32) {
    %c0_i32 = arith.constant 0 : i32
    %c0_i32_0 = arith.constant 0 : i32
    %c0_i32_1 = arith.constant 0 : i32
    return %c0_i32, %c0_i32_0 : i32, i32
  }
  func.func @transform_2(%arg0: i32) -> (i32, i32) {
    %c0_i32 = arith.constant 0 : i32
    %c0_i32_0 = arith.constant 0 : i32
    %c0_i32_1 = arith.constant 0 : i32
    return %c0_i32, %c0_i32_0 : i32, i32
  }
  func.func @transform_3(%arg0: i32) -> (i32, i32) {
    %c0_i32 = arith.constant 0 : i32
    %c0_i32_0 = arith.constant 0 : i32
    %c0_i32_1 = arith.constant 0 : i32
    return %c0_i32, %c0_i32_0 : i32, i32
  }
  func.func @transform_4(%arg0: i32) -> (i32, i32) {
    %c0_i32 = arith.constant 0 : i32
    %c0_i32_0 = arith.constant 0 : i32
    return %arg0, %c0_i32 : i32, i32
  }
}

</mosaic_0001>

<llo_original>
// kernel: deepseq_forward.1
$region0: #{deepseq_forward.1}
  #allocation0 [shape = 'u32[]', space=smem, size = 0x4, offset = 0x4, fixed_abs, tag = 'smem constant byte address 0x4 - core index']
  #allocation1 [shape = 'u32[144,128]{1,0:T(1,128)}', space=vmem, size = 0x12000, scoped, tag = 'internal scratch']
  #allocation2 [shape = 'f32[80,384]{1,0:T(8,128)}', space=vmem, size = 0x1e000, scoped, tag = 'scratch operand']
  #allocation3 [shape = 'f32[80,384]{1,0:T(8,128)}', space=vmem, size = 0x1e000, scoped, tag = 'scratch operand']
  #allocation4 [shape = 'bf16[8,3840]{1,0:T(8,128)(2,1)}', space=vmem, size = 0xf000, scoped, tag = 'scratch operand']
  %s0 = inlined_call_operand.vmem [shape: bf16[80,128], index: 0, kind: input, shape index: {}]
  %s1 = inlined_call_operand.vmem [shape: bf16[128,1280], index: 1, kind: input, shape index: {}]
  %s2 = inlined_call_operand.vmem [shape: f32[1,1408], index: 2, kind: input, shape index: {}]
  %s3 = inlined_call_operand.hbm [shape: bf16[3840,128], index: 3, kind: input, shape index: {}]
  %s4 = inlined_call_operand.vmem [shape: f32[8,128], index: 4, kind: output, shape index: {}]
  %s5 = sld [smem:[#allocation0]]
  $region30: #{deepseq_forward.1} parent=0
    _
  %s7 = ssub.s32 1, %s5
  %s8 = scalar_select 0, %s7, %s5
  $region1: #{deepseq_forward.1} parent=0
    #allocation5 [shape = 'u8[983040]{0}', space=vmem, size = 0xf0000, scoped, tag = 'input window, operand 3, single buffered']
    #allocation6 [shape = 's32[1]{0}', space=sflag, size = 0x4, scoped, tag = 'scoped memory for deepseq_forward.1']
    %9 = vsyncpa [#allocation6], 0
    // Predicated region
    $region2: #{deepseq_forward.1} parent=1 // pred_check
      _
    $region3: #{deepseq_forward.1} parent=1 // pred_check_branch
      %11 = sbr.rel (0) target = $region5
    $region4: #{deepseq_forward.1} parent=1 // pred_region
      _
    $region5: #{deepseq_forward.1} parent=1 // pred_fallthru
      _
    // Predicated region
    $region6: #{deepseq_forward.1} parent=1 // pred_check
      _
    $region7: #{deepseq_forward.1} parent=1 // pred_check_branch
      %13 = sbr.rel (0) target = $region9
    $region8: #{deepseq_forward.1} parent=1 // pred_region
      _
    $region9: #{deepseq_forward.1} parent=1 // pred_fallthru
      _
    // Predicated region
    $region10: #{deepseq_forward.1} parent=1 // pred_check
      _
    $region11: #{deepseq_forward.1} parent=1 // pred_check_branch
      %15 = sbr.rel (0) target = $region13
    $region12: #{deepseq_forward.1} parent=1 // pred_region
      _
    $region13: #{deepseq_forward.1} parent=1 // pred_fallthru
      _
    // Predicated region
    $region14: #{deepseq_forward.1} parent=1 // pred_check
      _
    $region15: #{deepseq_forward.1} parent=1 // pred_check_branch
      %17 = sbr.rel (0) target = $region17
    $region16: #{deepseq_forward.1} parent=1 // pred_region
      %s19 = ssub.s32 30720, 30720
      %20 = vsyncadd [#allocation6], %s19
      %s21 = sshll.u32 [#allocation5], 4
      %s22 = int_to_ptr.vmem [resolvable:$true] %s21
      %27 = dma.hbm_to_vmem [thread:$0]  %s3, 30720, %s22, [#allocation6], 64, 64, 4
    $region17: #{deepseq_forward.1} parent=1 // pred_fallthru
      _
    // Predicated region
    $region18: #{deepseq_forward.1} parent=1 // pred_check
      _
    $region19: #{deepseq_forward.1} parent=1 // pred_check_branch
      %29 = sbr.rel (0) target = $region21
    $region20: #{deepseq_forward.1} parent=1 // pred_region
      %30 = dma.done [#allocation6], 30720
    $region21: #{deepseq_forward.1} parent=1 // pred_fallthru
      _
    %v32 = vld [vmem:[%s0] sm:$0xf]
    %v33 = vld [vmem:[%s0 + $0x4] sm:$0xf]
    %v34 = vld [vmem:[%s0 + $0x8] sm:$0xf]
    %v35 = vld [vmem:[%s0 + $0xc] sm:$0xf]
    %v36 = vld [vmem:[%s0 + $0x10] sm:$0xf]
    %v37 = vld [vmem:[%s0 + $0x14] sm:$0xf]
    %v38 = vld [vmem:[%s0 + $0x18] sm:$0xf]
    %v39 = vld [vmem:[%s0 + $0x1c] sm:$0xf]
    %v40 = vld [vmem:[%s0 + $0x20] sm:$0xf]
    %v41 = vld [vmem:[%s0 + $0x24] sm:$0xf]
    %v42 = vld [vmem:[%s1] sm:$0xff]
    %v43 = vld [vmem:[%s1 + $0x8] sm:$0xf]
    %v44 = vld [vmem:[%s1 + $0x28] sm:$0xff]
    %v45 = vld [vmem:[%s1 + $0x30] sm:$0xf]
    %v46 = vld [vmem:[%s1 + $0x50] sm:$0xff]
    %v47 = vld [vmem:[%s1 + $0x58] sm:$0xf]
    %v48 = vld [vmem:[%s1 + $0x78] sm:$0xff]
    %v49 = vld [vmem:[%s1 + $0x80] sm:$0xf]
    %v50 = vld [vmem:[%s1 + $0xa0] sm:$0xff]
    %v51 = vld [vmem:[%s1 + $0xa8] sm:$0xf]
    %v52 = vld [vmem:[%s1 + $0xc8] sm:$0xff]
    %v53 = vld [vmem:[%s1 + $0xd0] sm:$0xf]
    %v54 = vld [vmem:[%s1 + $0xf0] sm:$0xff]
    %v55 = vld [vmem:[%s1 + $0xf8] sm:$0xf]
    %v56 = vld [vmem:[%s1 + $0x118] sm:$0xff]
    %v57 = vld [vmem:[%s1 + $0x120] sm:$0xf]
    %v58 = vld [vmem:[%s1 + $0x140] sm:$0xff]
    %v59 = vld [vmem:[%s1 + $0x148] sm:$0xf]
    %v60 = vld [vmem:[%s1 + $0x168] sm:$0xff]
    %v61 = vld [vmem:[%s1 + $0x170] sm:$0xf]
    %v62 = vld [vmem:[%s1 + $0x190] sm:$0xff]
    %v63 = vld [vmem:[%s1 + $0x198] sm:$0xf]
    %v64 = vld [vmem:[%s1 + $0x1b8] sm:$0xff]
    %v65 = vld [vmem:[%s1 + $0x1c0] sm:$0xf]
    %v66 = vld [vmem:[%s1 + $0x1e0] sm:$0xff]
    %v67 = vld [vmem:[%s1 + $0x1e8] sm:$0xf]
    %v68 = vld [vmem:[%s1 + $0x208] sm:$0xff]
    %v69 = vld [vmem:[%s1 + $0x210] sm:$0xf]
    %v70 = vld [vmem:[%s1 + $0x230] sm:$0xff]
    %v71 = vld [vmem:[%s1 + $0x238] sm:$0xf]
    %v72 = vld [vmem:[%s1 + $0x258] sm:$0xff]
    %v73 = vld [vmem:[%s1 + $0x260] sm:$0xf]
    %v74 = vld [vmem:[%s2] sm:$0x7]
    %v76 = vlaneseq
    %v77 = vshrl.u32 %v76, 7
    %v78 = vsub.s32 0, %v77
    %v79 = vrot.slane %v74, %v78
    %v80 = vlaneseq
    %v81 = vshrl.u32 %v80, 7
    %v82 = vsub.s32 1, %v81
    %v83 = vrot.slane %v74, %v82
    %v84 = vlaneseq
    %v85 = vshrl.u32 %v84, 7
    %v86 = vsub.s32 2, %v85
    %v87 = vrot.slane %v74, %v86
    %v101 = vunpack.c.l.b16 %v32
    %v102 = vunpack.c.l.b16 %v33
    %v103 = vunpack.c.l.b16 %v34
    %v104 = vunpack.c.l.b16 %v35
    %v105 = vunpack.c.l.b16 %v36
    %v106 = vunpack.c.l.b16 %v37
    %v107 = vunpack.c.l.b16 %v38
    %v108 = vunpack.c.l.b16 %v39
    %v109 = vunpack.c.l.b16 %v40
    %v110 = vunpack.c.l.b16 %v41
    %v111 = vpack.c.b16 %v102, %v101
    %v112 = vpack.c.b16 %v104, %v103
    %v113 = vpack.c.b16 %v106, %v105
    %v114 = vpack.c.b16 %v108, %v107
    %v115 = vpack.c.b16 %v110, %v109
    %v153 = vunpack.c.l.b16 %v42
    %v154 = vunpack.c.h.b16 %v42
    %v155 = vunpack.c.l.b16 %v43
    %v156 = vunpack.c.l.b16 %v44
    %v157 = vunpack.c.h.b16 %v44
    %v158 = vunpack.c.l.b16 %v45
    %v159 = vunpack.c.l.b16 %v46
    %v160 = vunpack.c.h.b16 %v46
    %v161 = vunpack.c.l.b16 %v47
    %v162 = vunpack.c.l.b16 %v48
    %v163 = vunpack.c.h.b16 %v48
    %v164 = vunpack.c.l.b16 %v49
    %v165 = vunpack.c.l.b16 %v50
    %v166 = vunpack.c.h.b16 %v50
    %v167 = vunpack.c.l.b16 %v51
    %v168 = vunpack.c.l.b16 %v52
    %v169 = vunpack.c.h.b16 %v52
    %v170 = vunpack.c.l.b16 %v53
    %v171 = vunpack.c.l.b16 %v54
    %v172 = vunpack.c.h.b16 %v54
    %v173 = vunpack.c.l.b16 %v55
    %v174 = vunpack.c.l.b16 %v56
    %v175 = vunpack.c.h.b16 %v56
    %v176 = vunpack.c.l.b16 %v57
    %v177 = vunpack.c.l.b16 %v58
    %v178 = vunpack.c.h.b16 %v58
    %v179 = vunpack.c.l.b16 %v59
    %v180 = vunpack.c.l.b16 %v60
    %v181 = vunpack.c.h.b16 %v60
    %v182 = vunpack.c.l.b16 %v61
    %v183 = vunpack.c.l.b16 %v62
    %v184 = vunpack.c.h.b16 %v62
    %v185 = vunpack.c.l.b16 %v63
    %v186 = vunpack.c.l.b16 %v64
    %v187 = vunpack.c.h.b16 %v64
    %v188 = vunpack.c.l.b16 %v65
    %v189 = vunpack.c.l.b16 %v66
    %v190 = vunpack.c.h.b16 %v66
    %v191 = vunpack.c.l.b16 %v67
    %v192 = vunpack.c.l.b16 %v68
    %v193 = vunpack.c.h.b16 %v68
    %v194 = vunpack.c.l.b16 %v69
    %v195 = vunpack.c.l.b16 %v70
    %v196 = vunpack.c.h.b16 %v70
    %v197 = vunpack.c.l.b16 %v71
    %v198 = vunpack.c.l.b16 %v72
    %v199 = vunpack.c.h.b16 %v72
    %v200 = vunpack.c.l.b16 %v73
    %v201 = vpack.c.b16 %v156, %v153
    %v202 = vpack.c.b16 %v157, %v154
    %v203 = vpack.c.b16 %v158, %v155
    %v204 = vpack.c.b16 %v162, %v159
    %v205 = vpack.c.b16 %v163, %v160
    %v206 = vpack.c.b16 %v164, %v161
    %v207 = vpack.c.b16 %v168, %v165
    %v208 = vpack.c.b16 %v169, %v166
    %v209 = vpack.c.b16 %v170, %v167
    %v210 = vpack.c.b16 %v174, %v171
    %v211 = vpack.c.b16 %v175, %v172
    %v212 = vpack.c.b16 %v176, %v173
    %v213 = vpack.c.b16 %v180, %v177
    %v214 = vpack.c.b16 %v181, %v178
    %v215 = vpack.c.b16 %v182, %v179
    %v216 = vpack.c.b16 %v186, %v183
    %v217 = vpack.c.b16 %v187, %v184
    %v218 = vpack.c.b16 %v188, %v185
    %v219 = vpack.c.b16 %v192, %v189
    %v220 = vpack.c.b16 %v193, %v190
    %v221 = vpack.c.b16 %v194, %v191
    %v222 = vpack.c.b16 %v198, %v195
    %v223 = vpack.c.b16 %v199, %v196
    %v224 = vpack.c.b16 %v200, %v197
    %249 = vmatprep.subr.bf16.mxu0 %v223
    %250 = vmatpush1.bf16.msra.mxu0 %v222
    %251 = vmatprep.subr.bf16.mxu0 %v220
    %252 = vmatpush1.bf16.msra.mxu0 %v219
    %253 = vmatprep.subr.bf16.mxu0 %v217
    %254 = vmatpush1.bf16.msra.mxu0 %v216
    %255 = vmatprep.subr.bf16.mxu0 %v214
    %256 = vmatpush1.bf16.msra.mxu0 %v213
    %257 = vmatprep.subr.bf16.mxu0 %v211
    %258 = vmatpush1.bf16.msra.mxu0 %v210
    %259 = vmatprep.subr.bf16.mxu0 %v208
    %260 = vmatpush1.bf16.msra.mxu0 %v207
    %261 = vmatprep.subr.bf16.mxu0 %v205
    %262 = vmatpush1.bf16.msra.mxu0 %v204
    %263 = vmatprep.subr.bf16.mxu0 %v202
    %264 = vmatpush1.bf16.msra.mxu0 %v201
    %265 = vmatprep.subr.bf16.mxu0 0
    %266 = vmatpush2.bf16.msra.mxu0 0
    %267 = vmatprep.subr.bf16.mxu0 0
    %268 = vmatpush2.bf16.msra.mxu0 0
    %269 = vmatprep.subr.bf16.mxu0 0
    %270 = vmatpush2.bf16.msra.mxu0 0
    %271 = vmatprep.subr.bf16.mxu0 0
    %272 = vmatpush2.bf16.msra.mxu0 0
    %273 = vmatprep.subr.bf16.mxu0 0
    %274 = vmatpush2.bf16.msra.mxu0 0
    %275 = vmatprep.subr.bf16.mxu0 0
    %276 = vmatpush2.bf16.msra.mxu0 0
    %277 = vmatprep.subr.bf16.mxu0 0
    %278 = vmatpush2.bf16.msra.mxu0 0
    %279 = vmatprep.subr.bf16.mxu0 0
    %280 = vmatpush2.bf16.msra.mxu0 0
    %281 = vmatprep.mubr.bf16.mxu0 0
    %282 = vmatmul.mubr.bf16.gmra.mxu0 %v111
    %v283 = vpop.f32.mrf.mxu0
    %v284 = vadd.f32 %v79, %v283
    %v285 = vpop.f32.mrf.mxu0
    %v286 = vadd.f32 %v83, %v285
    %v287 = vpop.f32.mrf.mxu0
    %v288 = vadd.f32 %v79, %v287
    %v289 = vpop.f32.mrf.mxu0
    %v290 = vadd.f32 %v83, %v289
    %291 = vmatprep.mubr.bf16.mxu0 0
    %292 = vmatmul.mubr.bf16.gmra.mxu0 %v112
    %v293 = vpop.f32.mrf.mxu0
    %v294 = vadd.f32 %v79, %v293
    %v295 = vpop.f32.mrf.mxu0
    %v296 = vadd.f32 %v83, %v295
    %v297 = vpop.f32.mrf.mxu0
    %v298 = vadd.f32 %v79, %v297
    %v299 = vpop.f32.mrf.mxu0
    %v300 = vadd.f32 %v83, %v299
    %301 = vmatprep.mubr.bf16.mxu0 0
    %302 = vmatmul.mubr.bf16.gmra.mxu0 %v113
    %v303 = vpop.f32.mrf.mxu0
    %v304 = vadd.f32 %v79, %v303
    %v305 = vpop.f32.mrf.mxu0
    %v306 = vadd.f32 %v83, %v305
    %v307 = vpop.f32.mrf.mxu0
    %v308 = vadd.f32 %v79, %v307
    %v309 = vpop.f32.mrf.mxu0
    %v310 = vadd.f32 %v83, %v309
    %311 = vmatprep.mubr.bf16.mxu0 0
    %312 = vmatmul.mubr.bf16.gmra.mxu0 %v114
    %v313 = vpop.f32.mrf.mxu0
    %v314 = vadd.f32 %v79, %v313
    %v315 = vpop.f32.mrf.mxu0
    %v316 = vadd.f32 %v83, %v315
    %v317 = vpop.f32.mrf.mxu0
    %v318 = vadd.f32 %v79, %v317
    %v319 = vpop.f32.mrf.mxu0
    %v320 = vadd.f32 %v83, %v319
    %321 = vmatprep.mubr.bf16.mxu0 0
    %322 = vmatmul.mubr.bf16.gmra.mxu0 %v115
    %v323 = vpop.f32.mrf.mxu0
    %v324 = vadd.f32 %v79, %v323
    %v325 = vpop.f32.mrf.mxu0
    %v326 = vadd.f32 %v83, %v325
    %v327 = vpop.f32.mrf.mxu0
    %v328 = vadd.f32 %v79, %v327
    %v329 = vpop.f32.mrf.mxu0
    %v330 = vadd.f32 %v83, %v329
    %331 = vdwg.mxu0
    %332 = vmatprep.subr.bf16.mxu0 0
    %333 = vmatpush1.bf16.msra.mxu0 %v224
    %334 = vmatprep.subr.bf16.mxu0 0
    %335 = vmatpush1.bf16.msra.mxu0 %v221
    %336 = vmatprep.subr.bf16.mxu0 0
    %337 = vmatpush1.bf16.msra.mxu0 %v218
    %338 = vmatprep.subr.bf16.mxu0 0
    %339 = vmatpush1.bf16.msra.mxu0 %v215
    %340 = vmatprep.subr.bf16.mxu0 0
    %341 = vmatpush1.bf16.msra.mxu0 %v212
    %342 = vmatprep.subr.bf16.mxu0 0
    %343 = vmatpush1.bf16.msra.mxu0 %v209
    %344 = vmatprep.subr.bf16.mxu0 0
    %345 = vmatpush1.bf16.msra.mxu0 %v206
    %346 = vmatprep.subr.bf16.mxu0 0
    %347 = vmatpush1.bf16.msra.mxu0 %v203
    %348 = vmatprep.subr.bf16.mxu0 0
    %349 = vmatpush2.bf16.msra.mxu0 0
    %350 = vmatprep.subr.bf16.mxu0 0
    %351 = vmatpush2.bf16.msra.mxu0 0
    %352 = vmatprep.subr.bf16.mxu0 0
    %353 = vmatpush2.bf16.msra.mxu0 0
    %354 = vmatprep.subr.bf16.mxu0 0
    %355 = vmatpush2.bf16.msra.mxu0 0
    %356 = vmatprep.subr.bf16.mxu0 0
    %357 = vmatpush2.bf16.msra.mxu0 0
    %358 = vmatprep.subr.bf16.mxu0 0
    %359 = vmatpush2.bf16.msra.mxu0 0
    %360 = vmatprep.subr.bf16.mxu0 0
    %361 = vmatpush2.bf16.msra.mxu0 0
    %362 = vmatprep.subr.bf16.mxu0 0
    %363 = vmatpush2.bf16.msra.mxu0 0
    %364 = vmatprep.mubr.bf16.mxu0 0
    %365 = vmatmul.mubr.bf16.gmra.mxu0 %v111
    %v366 = vpop.f32.mrf.mxu0
    %v367 = vadd.f32 %v87, %v366
    %v368 = vpop.f32.mrf.mxu0
    %v369 = vpop.f32.mrf.mxu0
    %v370 = vadd.f32 %v87, %v369
    %v371 = vpop.f32.mrf.mxu0
    %372 = vmatprep.mubr.bf16.mxu0 0
    %373 = vmatmul.mubr.bf16.gmra.mxu0 %v112
    %v374 = vpop.f32.mrf.mxu0
    %v375 = vadd.f32 %v87, %v374
    %v376 = vpop.f32.mrf.mxu0
    %v377 = vpop.f32.mrf.mxu0
    %v378 = vadd.f32 %v87, %v377
    %v379 = vpop.f32.mrf.mxu0
    %380 = vmatprep.mubr.bf16.mxu0 0
    %381 = vmatmul.mubr.bf16.gmra.mxu0 %v113
    %v382 = vpop.f32.mrf.mxu0
    %v383 = vadd.f32 %v87, %v382
    %v384 = vpop.f32.mrf.mxu0
    %v385 = vpop.f32.mrf.mxu0
    %v386 = vadd.f32 %v87, %v385
    %v387 = vpop.f32.mrf.mxu0
    %388 = vmatprep.mubr.bf16.mxu0 0
    %389 = vmatmul.mubr.bf16.gmra.mxu0 %v114
    %v390 = vpop.f32.mrf.mxu0
    %v391 = vadd.f32 %v87, %v390
    %v392 = vpop.f32.mrf.mxu0
    %v393 = vpop.f32.mrf.mxu0
    %v394 = vadd.f32 %v87, %v393
    %v395 = vpop.f32.mrf.mxu0
    %396 = vmatprep.mubr.bf16.mxu0 0
    %397 = vmatmul.mubr.bf16.gmra.mxu0 %v115
    %v398 = vpop.f32.mrf.mxu0
    %v399 = vadd.f32 %v87, %v398
    %v400 = vpop.f32.mrf.mxu0
    %v401 = vpop.f32.mrf.mxu0
    %v402 = vadd.f32 %v87, %v401
    %v403 = vpop.f32.mrf.mxu0
    %404 = vdwg.mxu0
    %405 = vst [vmem:[#allocation2] sm:$0xff] %v284
    %406 = vst [vmem:[#allocation2 + $0x8] sm:$0xff] %v286
    %407 = vst [vmem:[#allocation2 + $0x10] sm:$0xff] %v367
    %408 = vst [vmem:[#allocation2 + $0x18] sm:$0xff] %v288
    %409 = vst [vmem:[#allocation2 + $0x20] sm:$0xff] %v290
    %410 = vst [vmem:[#allocation2 + $0x28] sm:$0xff] %v370
    %411 = vst [vmem:[#allocation2 + $0x30] sm:$0xff] %v294
    %412 = vst [vmem:[#allocation2 + $0x38] sm:$0xff] %v296
    %413 = vst [vmem:[#allocation2 + $0x40] sm:$0xff] %v375
    %414 = vst [vmem:[#allocation2 + $0x48] sm:$0xff] %v298
    %415 = vst [vmem:[#allocation2 + $0x50] sm:$0xff] %v300
    %416 = vst [vmem:[#allocation2 + $0x58] sm:$0xff] %v378
    %417 = vst [vmem:[#allocation2 + $0x60] sm:$0xff] %v304
    %418 = vst [vmem:[#allocation2 + $0x68] sm:$0xff] %v306
    %419 = vst [vmem:[#allocation2 + $0x70] sm:$0xff] %v383
    %420 = vst [vmem:[#allocation2 + $0x78] sm:$0xff] %v308
    %421 = vst [vmem:[#allocation2 + $0x80] sm:$0xff] %v310
    %422 = vst [vmem:[#allocation2 + $0x88] sm:$0xff] %v386
    %423 = vst [vmem:[#allocation2 + $0x90] sm:$0xff] %v314
    %424 = vst [vmem:[#allocation2 + $0x98] sm:$0xff] %v316
    %425 = vst [vmem:[#allocation2 + $0xa0] sm:$0xff] %v391
    %426 = vst [vmem:[#allocation2 + $0xa8] sm:$0xff] %v318
    %427 = vst [vmem:[#allocation2 + $0xb0] sm:$0xff] %v320
    %428 = vst [vmem:[#allocation2 + $0xb8] sm:$0xff] %v394
    %429 = vst [vmem:[#allocation2 + $0xc0] sm:$0xff] %v324
    %430 = vst [vmem:[#allocation2 + $0xc8] sm:$0xff] %v326
    %431 = vst [vmem:[#allocation2 + $0xd0] sm:$0xff] %v399
    %432 = vst [vmem:[#allocation2 + $0xd8] sm:$0xff] %v328
    %433 = vst [vmem:[#allocation2 + $0xe0] sm:$0xff] %v330
    %434 = vst [vmem:[#allocation2 + $0xe8] sm:$0xff] %v402
    %v435 = vld [vmem:[%s1 + $0xc] sm:$0xff]
    %v436 = vld [vmem:[%s1 + $0x14] sm:$0xf]
    %v437 = vld [vmem:[%s1 + $0x34] sm:$0xff]
    %v438 = vld [vmem:[%s1 + $0x3c] sm:$0xf]
    %v439 = vld [vmem:[%s1 + $0x5c] sm:$0xff]
    %v440 = vld [vmem:[%s1 + $0x64] sm:$0xf]
    %v441 = vld [vmem:[%s1 + $0x84] sm:$0xff]
    %v442 = vld [vmem:[%s1 + $0x8c] sm:$0xf]
    %v443 = vld [vmem:[%s1 + $0xac] sm:$0xff]
    %v444 = vld [vmem:[%s1 + $0xb4] sm:$0xf]
    %v445 = vld [vmem:[%s1 + $0xd4] sm:$0xff]
    %v446 = vld [vmem:[%s1 + $0xdc] sm:$0xf]
    %v447 = vld [vmem:[%s1 + $0xfc] sm:$0xff]
    %v448 = vld [vmem:[%s1 + $0x104] sm:$0xf]
    %v449 = vld [vmem:[%s1 + $0x124] sm:$0xff]
    %v450 = vld [vmem:[%s1 + $0x12c] sm:$0xf]
    %v451 = vld [vmem:[%s1 + $0x14c] sm:$0xff]
    %v452 = vld [vmem:[%s1 + $0x154] sm:$0xf]
    %v453 = vld [vmem:[%s1 + $0x174] sm:$0xff]
    %v454 = vld [vmem:[%s1 + $0x17c] sm:$0xf]
    %v455 = vld [vmem:[%s1 + $0x19c] sm:$0xff]
    %v456 = vld [vmem:[%s1 + $0x1a4] sm:$0xf]
    %v457 = vld [vmem:[%s1 + $0x1c4] sm:$0xff]
    %v458 = vld [vmem:[%s1 + $0x1cc] sm:$0xf]
    %v459 = vld [vmem:[%s1 + $0x1ec] sm:$0xff]
    %v460 = vld [vmem:[%s1 + $0x1f4] sm:$0xf]
    %v461 = vld [vmem:[%s1 + $0x214] sm:$0xff]
    %v462 = vld [vmem:[%s1 + $0x21c] sm:$0xf]
    %v463 = vld [vmem:[%s1 + $0x23c] sm:$0xff]
    %v464 = vld [vmem:[%s1 + $0x244] sm:$0xf]
    %v465 = vld [vmem:[%s1 + $0x264] sm:$0xff]
    %v466 = vld [vmem:[%s1 + $0x26c] sm:$0xf]
    %v467 = vld [vmem:[%s2 + $0x3] sm:$0x7]
    %v469 = vlaneseq
    %v470 = vshrl.u32 %v469, 7
    %v471 = vsub.s32 0, %v470
    %v472 = vrot.slane %v467, %v471
    %v473 = vlaneseq
    %v474 = vshrl.u32 %v473, 7
    %v475 = vsub.s32 1, %v474
    %v476 = vrot.slane %v467, %v475
    %v477 = vlaneseq
    %v478 = vshrl.u32 %v477, 7
    %v479 = vsub.s32 2, %v478
    %v480 = vrot.slane %v467, %v479
    %v516 = vunpack.c.l.b16 %v435
    %v517 = vunpack.c.h.b16 %v435
    %v518 = vunpack.c.l.b16 %v436
    %v519 = vunpack.c.l.b16 %v437
    %v520 = vunpack.c.h.b16 %v437
    %v521 = vunpack.c.l.b16 %v438
    %v522 = vunpack.c.l.b16 %v439
    %v523 = vunpack.c.h.b16 %v439
    %v524 = vunpack.c.l.b16 %v440
    %v525 = vunpack.c.l.b16 %v441
    %v526 = vunpack.c.h.b16 %v441
    %v527 = vunpack.c.l.b16 %v442
    %v528 = vunpack.c.l.b16 %v443
    %v529 = vunpack.c.h.b16 %v443
    %v530 = vunpack.c.l.b16 %v444
    %v531 = vunpack.c.l.b16 %v445
    %v532 = vunpack.c.h.b16 %v445
    %v533 = vunpack.c.l.b16 %v446
    %v534 = vunpack.c.l.b16 %v447
    %v535 = vunpack.c.h.b16 %v447
    %v536 = vunpack.c.l.b16 %v448
    %v537 = vunpack.c.l.b16 %v449
    %v538 = vunpack.c.h.b16 %v449
    %v539 = vunpack.c.l.b16 %v450
    %v540 = vunpack.c.l.b16 %v451
    %v541 = vunpack.c.h.b16 %v451
    %v542 = vunpack.c.l.b16 %v452
    %v543 = vunpack.c.l.b16 %v453
    %v544 = vunpack.c.h.b16 %v453
    %v545 = vunpack.c.l.b16 %v454
    %v546 = vunpack.c.l.b16 %v455
    %v547 = vunpack.c.h.b16 %v455
    %v548 = vunpack.c.l.b16 %v456
    %v549 = vunpack.c.l.b16 %v457
    %v550 = vunpack.c.h.b16 %v457
    %v551 = vunpack.c.l.b16 %v458
    %v552 = vunpack.c.l.b16 %v459
    %v553 = vunpack.c.h.b16 %v459
    %v554 = vunpack.c.l.b16 %v460
    %v555 = vunpack.c.l.b16 %v461
    %v556 = vunpack.c.h.b16 %v461
    %v557 = vunpack.c.l.b16 %v462
    %v558 = vunpack.c.l.b16 %v463
    %v559 = vunpack.c.h.b16 %v463
    %v560 = vunpack.c.l.b16 %v464
    %v561 = vunpack.c.l.b16 %v465
    %v562 = vunpack.c.h.b16 %v465
    %v563 = vunpack.c.l.b16 %v466
    %v564 = vpack.c.b16 %v519, %v516
    %v565 = vpack.c.b16 %v520, %v517
    %v566 = vpack.c.b16 %v521, %v518
    %v567 = vpack.c.b16 %v525, %v522
    %v568 = vpack.c.b16 %v526, %v523
    %v569 = vpack.c.b16 %v527, %v524
    %v570 = vpack.c.b16 %v531, %v528
    %v571 = vpack.c.b16 %v532, %v529
    %v572 = vpack.c.b16 %v533, %v530
    %v573 = vpack.c.b16 %v537, %v534
    %v574 = vpack.c.b16 %v538, %v535
    %v575 = vpack.c.b16 %v539, %v536
    %v576 = vpack.c.b16 %v543, %v540
    %v577 = vpack.c.b16 %v544, %v541
    %v578 = vpack.c.b16 %v545, %v542
    %v579 = vpack.c.b16 %v549, %v546
    %v580 = vpack.c.b16 %v550, %v547
    %v581 = vpack.c.b16 %v551, %v548
    %v582 = vpack.c.b16 %v555, %v552
    %v583 = vpack.c.b16 %v556, %v553
    %v584 = vpack.c.b16 %v557, %v554
    %v585 = vpack.c.b16 %v561, %v558
    %v586 = vpack.c.b16 %v562, %v559
    %v587 = vpack.c.b16 %v563, %v560
    %612 = vmatprep.subr.bf16.mxu0 %v586
    %613 = vmatpush1.bf16.msra.mxu0 %v585
    %614 = vmatprep.subr.bf16.mxu0 %v583
    %615 = vmatpush1.bf16.msra.mxu0 %v582
    %616 = vmatprep.subr.bf16.mxu0 %v580
    %617 = vmatpush1.bf16.msra.mxu0 %v579
    %618 = vmatprep.subr.bf16.mxu0 %v577
    %619 = vmatpush1.bf16.msra.mxu0 %v576
    %620 = vmatprep.subr.bf16.mxu0 %v574
    %621 = vmatpush1.bf16.msra.mxu0 %v573
    %622 = vmatprep.subr.bf16.mxu0 %v571
    %623 = vmatpush1.bf16.msra.mxu0 %v570
    %624 = vmatprep.subr.bf16.mxu0 %v568
    %625 = vmatpush1.bf16.msra.mxu0 %v567
    %626 = vmatprep.subr.bf16.mxu0 %v565
    %627 = vmatpush1.bf16.msra.mxu0 %v564
    %628 = vmatprep.subr.bf16.mxu0 0
    %629 = vmatpush2.bf16.msra.mxu0 0
    %630 = vmatprep.subr.bf16.mxu0 0
    %631 = vmatpush2.bf16.msra.mxu0 0
    %632 = vmatprep.subr.bf16.mxu0 0
    %633 = vmatpush2.bf16.msra.mxu0 0
    %634 = vmatprep.subr.bf16.mxu0 0
    %635 = vmatpush2.bf16.msra.mxu0 0
    %636 = vmatprep.subr.bf16.mxu0 0
    %637 = vmatpush2.bf16.msra.mxu0 0
    %638 = vmatprep.subr.bf16.mxu0 0
    %639 = vmatpush2.bf16.msra.mxu0 0
    %640 = vmatprep.subr.bf16.mxu0 0
    %641 = vmatpush2.bf16.msra.mxu0 0
    %642 = vmatprep.subr.bf16.mxu0 0
    %643 = vmatpush2.bf16.msra.mxu0 0
    %644 = vmatprep.mubr.bf16.mxu0 0
    %645 = vmatmul.mubr.bf16.gmra.mxu0 %v111
    %v646 = vpop.f32.mrf.mxu0
    %v647 = vadd.f32 %v472, %v646
    %v648 = vpop.f32.mrf.mxu0
    %v649 = vadd.f32 %v476, %v648
    %v650 = vpop.f32.mrf.mxu0
    %v651 = vadd.f32 %v472, %v650
    %v652 = vpop.f32.mrf.mxu0
    %v653 = vadd.f32 %v476, %v652
    %654 = vmatprep.mubr.bf16.mxu0 0
    %655 = vmatmul.mubr.bf16.gmra.mxu0 %v112
    %v656 = vpop.f32.mrf.mxu0
    %v657 = vadd.f32 %v472, %v656
    %v658 = vpop.f32.mrf.mxu0
    %v659 = vadd.f32 %v476, %v658
    %v660 = vpop.f32.mrf.mxu0
    %v661 = vadd.f32 %v472, %v660
    %v662 = vpop.f32.mrf.mxu0
    %v663 = vadd.f32 %v476, %v662
    %664 = vmatprep.mubr.bf16.mxu0 0
    %665 = vmatmul.mubr.bf16.gmra.mxu0 %v113
    %v666 = vpop.f32.mrf.mxu0
    %v667 = vadd.f32 %v472, %v666
    %v668 = vpop.f32.mrf.mxu0
    %v669 = vadd.f32 %v476, %v668
    %v670 = vpop.f32.mrf.mxu0
    %v671 = vadd.f32 %v472, %v670
    %v672 = vpop.f32.mrf.mxu0
    %v673 = vadd.f32 %v476, %v672
    %674 = vmatprep.mubr.bf16.mxu0 0
    %675 = vmatmul.mubr.bf16.gmra.mxu0 %v114
    %v676 = vpop.f32.mrf.mxu0
    %v677 = vadd.f32 %v472, %v676
    %v678 = vpop.f32.mrf.mxu0
    %v679 = vadd.f32 %v476, %v678
    %v680 = vpop.f32.mrf.mxu0
    %v681 = vadd.f32 %v472, %v680
    %v682 = vpop.f32.mrf.mxu0
    %v683 = vadd.f32 %v476, %v682
    %684 = vmatprep.mubr.bf16.mxu0 0
    %685 = vmatmul.mubr.bf16.gmra.mxu0 %v115
    %v686 = vpop.f32.mrf.mxu0
    %v687 = vadd.f32 %v472, %v686
    %v688 = vpop.f32.mrf.mxu0
    %v689 = vadd.f32 %v476, %v688
    %v690 = vpop.f32.mrf.mxu0
    %v691 = vadd.f32 %v472, %v690
    %v692 = vpop.f32.mrf.mxu0
    %v693 = vadd.f32 %v476, %v692
    %694 = vdwg.mxu0
    %695 = vmatprep.subr.bf16.mxu0 0
    %696 = vmatpush1.bf16.msra.mxu0 %v587
    %697 = vmatprep.subr.bf16.mxu0 0
    %698 = vmatpush1.bf16.msra.mxu0 %v584
    %699 = vmatprep.subr.bf16.mxu0 0
    %700 = vmatpush1.bf16.msra.mxu0 %v581
    %701 = vmatprep.subr.bf16.mxu0 0
    %702 = vmatpush1.bf16.msra.mxu0 %v578
    %703 = vmatprep.subr.bf16.mxu0 0
    %704 = vmatpush1.bf16.msra.mxu0 %v575
    %705 = vmatprep.subr.bf16.mxu0 0
    %706 = vmatpush1.bf16.msra.mxu0 %v572
    %707 = vmatprep.subr.bf16.mxu0 0
    %708 = vmatpush1.bf16.msra.mxu0 %v569
    %709 = vmatprep.subr.bf16.mxu0 0
    %710 = vmatpush1.bf16.msra.mxu0 %v566
    %711 = vmatprep.subr.bf16.mxu0 0
    %712 = vmatpush2.bf16.msra.mxu0 0
    %713 = vmatprep.subr.bf16.mxu0 0
    %714 = vmatpush2.bf16.msra.mxu0 0
    %715 = vmatprep.subr.bf16.mxu0 0
    %716 = vmatpush2.bf16.msra.mxu0 0
    %717 = vmatprep.subr.bf16.mxu0 0
    %718 = vmatpush2.bf16.msra.mxu0 0
    %719 = vmatprep.subr.bf16.mxu0 0
    %720 = vmatpush2.bf16.msra.mxu0 0
    %721 = vmatprep.subr.bf16.mxu0 0
    %722 = vmatpush2.bf16.msra.mxu0 0
    %723 = vmatprep.subr.bf16.mxu0 0
    %724 = vmatpush2.bf16.msra.mxu0 0
    %725 = vmatprep.subr.bf16.mxu0 0
    %726 = vmatpush2.bf16.msra.mxu0 0
    %727 = vmatprep.mubr.bf16.mxu0 0
    %728 = vmatmul.mubr.bf16.gmra.mxu0 %v111
    %v729 = vpop.f32.mrf.mxu0
    %v730 = vadd.f32 %v480, %v729
    %v731 = vpop.f32.mrf.mxu0
    %v732 = vpop.f32.mrf.mxu0
    %v733 = vadd.f32 %v480, %v732
    %v734 = vpop.f32.mrf.mxu0
    %735 = vmatprep.mubr.bf16.mxu0 0
    %736 = vmatmul.mubr.bf16.gmra.mxu0 %v112
    %v737 = vpop.f32.mrf.mxu0
    %v738 = vadd.f32 %v480, %v737
    %v739 = vpop.f32.mrf.mxu0
    %v740 = vpop.f32.mrf.mxu0
    %v741 = vadd.f32 %v480, %v740
    %v742 = vpop.f32.mrf.mxu0
    %743 = vmatprep.mubr.bf16.mxu0 0
    %744 = vmatmul.mubr.bf16.gmra.mxu0 %v113
    %v745 = vpop.f32.mrf.mxu0
    %v746 = vadd.f32 %v480, %v745
    %v747 = vpop.f32.mrf.mxu0
    %v748 = vpop.f32.mrf.mxu0
    %v749 = vadd.f32 %v480, %v748
    %v750 = vpop.f32.mrf.mxu0
    %751 = vmatprep.mubr.bf16.mxu0 0
    %752 = vmatmul.mubr.bf16.gmra.mxu0 %v114
    %v753 = vpop.f32.mrf.mxu0
    %v754 = vadd.f32 %v480, %v753
    %v755 = vpop.f32.mrf.mxu0
    %v756 = vpop.f32.mrf.mxu0
    %v757 = vadd.f32 %v480, %v756
    %v758 = vpop.f32.mrf.mxu0
    %759 = vmatprep.mubr.bf16.mxu0 0
    %760 = vmatmul.mubr.bf16.gmra.mxu0 %v115
    %v761 = vpop.f32.mrf.mxu0
    %v762 = vadd.f32 %v480, %v761
    %v763 = vpop.f32.mrf.mxu0
    %v764 = vpop.f32.mrf.mxu0
    %v765 = vadd.f32 %v480, %v764
    %v766 = vpop.f32.mrf.mxu0
    %767 = vdwg.mxu0
    %768 = vst [vmem:[#allocation3] sm:$0xff] %v647
    %769 = vst [vmem:[#allocation3 + $0x8] sm:$0xff] %v649
    %770 = vst [vmem:[#allocation3 + $0x10] sm:$0xff] %v730
    %771 = vst [vmem:[#allocation3 + $0x18] sm:$0xff] %v651
    %772 = vst [vmem:[#allocation3 + $0x20] sm:$0xff] %v653
    %773 = vst [vmem:[#allocation3 + $0x28] sm:$0xff] %v733
    %774 = vst [vmem:[#allocation3 + $0x30] sm:$0xff] %v657
    %775 = vst [vmem:[#allocation3 + $0x38] sm:$0xff] %v659
    %776 = vst [vmem:[#allocation3 + $0x40] sm:$0xff] %v738
    %777 = vst [vmem:[#allocation3 + $0x48] sm:$0xff] %v661
    %778 = vst [vmem:[#allocation3 + $0x50] sm:$0xff] %v663
    %779 = vst [vmem:[#allocation3 + $0x58] sm:$0xff] %v741
    %780 = vst [vmem:[#allocation3 + $0x60] sm:$0xff] %v667
    %781 = vst [vmem:[#allocation3 + $0x68] sm:$0xff] %v669
    %782 = vst [vmem:[#allocation3 + $0x70] sm:$0xff] %v746
    %783 = vst [vmem:[#allocation3 + $0x78] sm:$0xff] %v671
    %784 = vst [vmem:[#allocation3 + $0x80] sm:$0xff] %v673
    %785 = vst [vmem:[#allocation3 + $0x88] sm:$0xff] %v749
    %786 = vst [vmem:[#allocation3 + $0x90] sm:$0xff] %v677
    %787 = vst [vmem:[#allocation3 + $0x98] sm:$0xff] %v679
    %788 = vst [vmem:[#allocation3 + $0xa0] sm:$0xff] %v754
    %789 = vst [vmem:[#allocation3 + $0xa8] sm:$0xff] %v681
    %790 = vst [vmem:[#allocation3 + $0xb0] sm:$0xff] %v683
    %791 = vst [vmem:[#allocation3 + $0xb8] sm:$0xff] %v757
    %792 = vst [vmem:[#allocation3 + $0xc0] sm:$0xff] %v687
    %793 = vst [vmem:[#allocation3 + $0xc8] sm:$0xff] %v689
    %794 = vst [vmem:[#allocation3 + $0xd0] sm:$0xff] %v762
    %795 = vst [vmem:[#allocation3 + $0xd8] sm:$0xff] %v691
    %796 = vst [vmem:[#allocation3 + $0xe0] sm:$0xff] %v693
    %797 = vst [vmem:[#allocation3 + $0xe8] sm:$0xff] %v765
    %v798 = vld [vmem:[#allocation2] sm:$0xff]
    %v799 = vld [vmem:[#allocation2 + $0x8] sm:$0xff]
    %v800 = vld [vmem:[#allocation2 + $0x10] sm:$0xff]
    %v801 = vld [vmem:[#allocation3] sm:$0xff]
    %v802 = vld [vmem:[#allocation3 + $0x8] sm:$0xff]
    %v803 = vld [vmem:[#allocation3 + $0x10] sm:$0xff]
    %v804 = vmax.f32 %v798, %v801
    %v805 = vmax.f32 %v799, %v802
    %v806 = vmax.f32 %v800, %v803
    %v807 = vmax.f32 %v804, 0.0
    %v808 = vmax.f32 %v805, 0.0
    %v809 = vmax.f32 %v806, 0.0
    %v810 = vpack.c.bf16 %v807, %v807
    %v811 = vpack.c.bf16 %v808, %v808
    %v812 = vpack.c.bf16 %v809, %v809
    %v816 = vunpack.c.l.b16 %v810
    %v817 = vunpack.c.l.b16 %v811
    %v818 = vunpack.c.l.b16 %v812
    %v819 = vpack.c.b16 %v817, %v816
    %v820 = vpack.c.b16 %v818, %v818
    %823 = vst [vmem:[#allocation4] sm:$0xff] %v819
    %824 = vst [vmem:[#allocation4 + $0x8] sm:$0xf] %v820
    %v825 = vld [vmem:[#allocation2 + $0x18] sm:$0xff]
    %v826 = vld [vmem:[#allocation2 + $0x20] sm:$0xff]
    %v827 = vld [vmem:[#allocation2 + $0x28] sm:$0xff]
    %v828 = vld [vmem:[#allocation3 + $0x18] sm:$0xff]
    %v829 = vld [vmem:[#allocation3 + $0x20] sm:$0xff]
    %v830 = vld [vmem:[#allocation3 + $0x28] sm:$0xff]
    %v831 = vmax.f32 %v825, %v828
    %v832 = vmax.f32 %v826, %v829
    %v833 = vmax.f32 %v827, %v830
    %v834 = vmax.f32 %v831, 0.0
    %v835 = vmax.f32 %v832, 0.0
    %v836 = vmax.f32 %v833, 0.0
    %v837 = vpack.c.bf16 %v834, %v834
    %v838 = vpack.c.bf16 %v835, %v835
    %v839 = vpack.c.bf16 %v836, %v836
    %v843 = vunpack.c.l.b16 %v837
    %v844 = vunpack.c.l.b16 %v838
    %v845 = vunpack.c.l.b16 %v839
    %v846 = vpack.c.b16 %v844, %v843
    %v847 = vpack.c.b16 %v845, %v845
    %850 = vst [vmem:[#allocation4 + $0xc] sm:$0xff] %v846
    %851 = vst [vmem:[#allocation4 + $0x14] sm:$0xf] %v847
    %v852 = vld [vmem:[#allocation2 + $0x30] sm:$0xff]
    %v853 = vld [vmem:[#allocation2 + $0x38] sm:$0xff]
    %v854 = vld [vmem:[#allocation2 + $0x40] sm:$0xff]
    %v855 = vld [vmem:[#allocation3 + $0x30] sm:$0xff]
    %v856 = vld [vmem:[#allocation3 + $0x38] sm:$0xff]
    %v857 = vld [vmem:[#allocation3 + $0x40] sm:$0xff]
    %v858 = vmax.f32 %v852, %v855
    %v859 = vmax.f32 %v853, %v856
    %v860 = vmax.f32 %v854, %v857
    %v861 = vmax.f32 %v858, 0.0
    %v862 = vmax.f32 %v859, 0.0
    %v863 = vmax.f32 %v860, 0.0
    %v864 = vpack.c.bf16 %v861, %v861
    %v865 = vpack.c.bf16 %v862, %v862
    %v866 = vpack.c.bf16 %v863, %v863
    %v870 = vunpack.c.l.b16 %v864
    %v871 = vunpack.c.l.b16 %v865
    %v872 = vunpack.c.l.b16 %v866
    %v873 = vpack.c.b16 %v871, %v870
    %v874 = vpack.c.b16 %v872, %v872
    %877 = vst [vmem:[#allocation4 + $0x18] sm:$0xff] %v873
    %878 = vst [vmem:[#allocation4 + $0x20] sm:$0xf] %v874
    %v879 = vld [vmem:[#allocation2 + $0x48] sm:$0xff]
    %v880 = vld [vmem:[#allocation2 + $0x50] sm:$0xff]
    %v881 = vld [vmem:[#allocation2 + $0x58] sm:$0xff]
    %v882 = vld [vmem:[#allocation3 + $0x48] sm:$0xff]
    %v883 = vld [vmem:[#allocation3 + $0x50] sm:$0xff]
    %v884 = vld [vmem:[#allocation3 + $0x58] sm:$0xff]
    %v885 = vmax.f32 %v879, %v882
    %v886 = vmax.f32 %v880, %v883
    %v887 = vmax.f32 %v881, %v884
    %v888 = vmax.f32 %v885, 0.0
    %v889 = vmax.f32 %v886, 0.0
    %v890 = vmax.f32 %v887, 0.0
    %v891 = vpack.c.bf16 %v888, %v888
    %v892 = vpack.c.bf16 %v889, %v889
    %v893 = vpack.c.bf16 %v890, %v890
    %v897 = vunpack.c.l.b16 %v891
    %v898 = vunpack.c.l.b16 %v892
    %v899 = vunpack.c.l.b16 %v893
    %v900 = vpack.c.b16 %v898, %v897
    %v901 = vpack.c.b16 %v899, %v899
    %904 = vst [vmem:[#allocation4 + $0x24] sm:$0xff] %v900
    %905 = vst [vmem:[#allocation4 + $0x2c] sm:$0xf] %v901
    %v906 = vld [vmem:[#allocation2 + $0x60] sm:$0xff]
    %v907 = vld [vmem:[#allocation2 + $0x68] sm:$0xff]
    %v908 = vld [vmem:[#allocation2 + $0x70] sm:$0xff]
    %v909 = vld [vmem:[#allocation3 + $0x60] sm:$0xff]
    %v910 = vld [vmem:[#allocation3 + $0x68] sm:$0xff]
    %v911 = vld [vmem:[#allocation3 + $0x70] sm:$0xff]
    %v912 = vmax.f32 %v906, %v909
    %v913 = vmax.f32 %v907, %v910
    %v914 = vmax.f32 %v908, %v911
    %v915 = vmax.f32 %v912, 0.0
    %v916 = vmax.f32 %v913, 0.0
    %v917 = vmax.f32 %v914, 0.0
    %v918 = vpack.c.bf16 %v915, %v915
    %v919 = vpack.c.bf16 %v916, %v916
    %v920 = vpack.c.bf16 %v917, %v917
    %v924 = vunpack.c.l.b16 %v918
    %v925 = vunpack.c.l.b16 %v919
    %v926 = vunpack.c.l.b16 %v920
    %v927 = vpack.c.b16 %v925, %v924
    %v928 = vpack.c.b16 %v926, %v926
    %931 = vst [vmem:[#allocation4 + $0x30] sm:$0xff] %v927
    %932 = vst [vmem:[#allocation4 + $0x38] sm:$0xf] %v928
    %v933 = vld [vmem:[#allocation2 + $0x78] sm:$0xff]
    %v934 = vld [vmem:[#allocation2 + $0x80] sm:$0xff]
    %v935 = vld [vmem:[#allocation2 + $0x88] sm:$0xff]
    %v936 = vld [vmem:[#allocation3 + $0x78] sm:$0xff]
    %v937 = vld [vmem:[#allocation3 + $0x80] sm:$0xff]
    %v938 = vld [vmem:[#allocation3 + $0x88] sm:$0xff]
    %v939 = vmax.f32 %v933, %v936
    %v940 = vmax.f32 %v934, %v937
    %v941 = vmax.f32 %v935, %v938
    %v942 = vmax.f32 %v939, 0.0
    %v943 = vmax.f32 %v940, 0.0
    %v944 = vmax.f32 %v941, 0.0
    %v945 = vpack.c.bf16 %v942, %v942
    %v946 = vpack.c.bf16 %v943, %v943
    %v947 = vpack.c.bf16 %v944, %v944
    %v951 = vunpack.c.l.b16 %v945
    %v952 = vunpack.c.l.b16 %v946
    %v953 = vunpack.c.l.b16 %v947
    %v954 = vpack.c.b16 %v952, %v951
    %v955 = vpack.c.b16 %v953, %v953
    %958 = vst [vmem:[#allocation4 + $0x3c] sm:$0xff] %v954
    %959 = vst [vmem:[#allocation4 + $0x44] sm:$0xf] %v955
    %v960 = vld [vmem:[#allocation2 + $0x90] sm:$0xff]
    %v961 = vld [vmem:[#allocation2 + $0x98] sm:$0xff]
    %v962 = vld [vmem:[#allocation2 + $0xa0] sm:$0xff]
    %v963 = vld [vmem:[#allocation3 + $0x90] sm:$0xff]
    %v964 = vld [vmem:[#allocation3 + $0x98] sm:$0xff]
    %v965 = vld [vmem:[#allocation3 + $0xa0] sm:$0xff]
    %v966 = vmax.f32 %v960, %v963
    %v967 = vmax.f32 %v961, %v964
    %v968 = vmax.f32 %v962, %v965
    %v969 = vmax.f32 %v966, 0.0
    %v970 = vmax.f32 %v967, 0.0
    %v971 = vmax.f32 %v968, 0.0
    %v972 = vpack.c.bf16 %v969, %v969
    %v973 = vpack.c.bf16 %v970, %v970
    %v974 = vpack.c.bf16 %v971, %v971
    %v978 = vunpack.c.l.b16 %v972
    %v979 = vunpack.c.l.b16 %v973
    %v980 = vunpack.c.l.b16 %v974
    %v981 = vpack.c.b16 %v979, %v978
    %v982 = vpack.c.b16 %v980, %v980
    %985 = vst [vmem:[#allocation4 + $0x48] sm:$0xff] %v981
    %986 = vst [vmem:[#allocation4 + $0x50] sm:$0xf] %v982
    %v987 = vld [vmem:[#allocation2 + $0xa8] sm:$0xff]
    %v988 = vld [vmem:[#allocation2 + $0xb0] sm:$0xff]
    %v989 = vld [vmem:[#allocation2 + $0xb8] sm:$0xff]
    %v990 = vld [vmem:[#allocation3 + $0xa8] sm:$0xff]
    %v991 = vld [vmem:[#allocation3 + $0xb0] sm:$0xff]
    %v992 = vld [vmem:[#allocation3 + $0xb8] sm:$0xff]
    %v993 = vmax.f32 %v987, %v990
    %v994 = vmax.f32 %v988, %v991
    %v995 = vmax.f32 %v989, %v992
    %v996 = vmax.f32 %v993, 0.0
    %v997 = vmax.f32 %v994, 0.0
    %v998 = vmax.f32 %v995, 0.0
    %v999 = vpack.c.bf16 %v996, %v996
    %v1000 = vpack.c.bf16 %v997, %v997
    %v1001 = vpack.c.bf16 %v998, %v998
    %v1005 = vunpack.c.l.b16 %v999
    %v1006 = vunpack.c.l.b16 %v1000
    %v1007 = vunpack.c.l.b16 %v1001
    %v1008 = vpack.c.b16 %v1006, %v1005
    %v1009 = vpack.c.b16 %v1007, %v1007
    %1012 = vst [vmem:[#allocation4 + $0x54] sm:$0xff] %v1008
    %1013 = vst [vmem:[#allocation4 + $0x5c] sm:$0xf] %v1009
    %v1014 = vld [vmem:[#allocation2 + $0xc0] sm:$0xff]
    %v1015 = vld [vmem:[#allocation2 + $0xc8] sm:$0xff]
    %v1016 = vld [vmem:[#allocation2 + $0xd0] sm:$0xff]
    %v1017 = vld [vmem:[#allocation3 + $0xc0] sm:$0xff]
    %v1018 = vld [vmem:[#allocation3 + $0xc8] sm:$0xff]
    %v1019 = vld [vmem:[#allocation3 + $0xd0] sm:$0xff]
    %v1020 = vmax.f32 %v1014, %v1017
    %v1021 = vmax.f32 %v1015, %v1018
    %v1022 = vmax.f32 %v1016, %v1019
    %v1023 = vmax.f32 %v1020, 0.0
    %v1024 = vmax.f32 %v1021, 0.0
    %v1025 = vmax.f32 %v1022, 0.0
    %v1026 = vpack.c.bf16 %v1023, %v1023
    %v1027 = vpack.c.bf16 %v1024, %v1024
    %v1028 = vpack.c.bf16 %v1025, %v1025
    %v1032 = vunpack.c.l.b16 %v1026
    %v1033 = vunpack.c.l.b16 %v1027
    %v1034 = vunpack.c.l.b16 %v1028
    %v1035 = vpack.c.b16 %v1033, %v1032
    %v1036 = vpack.c.b16 %v1034, %v1034
    %1039 = vst [vmem:[#allocation4 + $0x60] sm:$0xff] %v1035
    %1040 = vst [vmem:[#allocation4 + $0x68] sm:$0xf] %v1036
    %v1041 = vld [vmem:[#allocation2 + $0xd8] sm:$0xff]
    %v1042 = vld [vmem:[#allocation2 + $0xe0] sm:$0xff]
    %v1043 = vld [vmem:[#allocation2 + $0xe8] sm:$0xff]
    %v1044 = vld [vmem:[#allocation3 + $0xd8] sm:$0xff]
    %v1045 = vld [vmem:[#allocation3 + $0xe0] sm:$0xff]
    %v1046 = vld [vmem:[#allocation3 + $0xe8] sm:$0xff]
    %v1047 = vmax.f32 %v1041, %v1044
    %v1048 = vmax.f32 %v1042, %v1045
    %v1049 = vmax.f32 %v1043, %v1046
    %v1050 = vmax.f32 %v1047, 0.0
    %v1051 = vmax.f32 %v1048, 0.0
    %v1052 = vmax.f32 %v1049, 0.0
    %v1053 = vpack.c.bf16 %v1050, %v1050
    %v1054 = vpack.c.bf16 %v1051, %v1051
    %v1055 = vpack.c.bf16 %v1052, %v1052
    %v1059 = vunpack.c.l.b16 %v1053
    %v1060 = vunpack.c.l.b16 %v1054
    %v1061 = vunpack.c.l.b16 %v1055
    %v1062 = vpack.c.b16 %v1060, %v1059
    %v1063 = vpack.c.b16 %v1061, %v1061
    %1066 = vst [vmem:[#allocation4 + $0x6c] sm:$0xff] %v1062
    %1067 = vst [vmem:[#allocation4 + $0x74] sm:$0xf] %v1063
    %v1068 = vld [vmem:[#allocation4] sm:$0xff]
    %v1069 = vld [vmem:[#allocation4 + $0x8] sm:$0xff]
    %v1070 = vld [vmem:[#allocation4 + $0x10] sm:$0xff]
    %v1071 = vld [vmem:[#allocation4 + $0x18] sm:$0xff]
    %v1072 = vld [vmem:[#allocation4 + $0x20] sm:$0xff]
    %v1073 = vld [vmem:[#allocation4 + $0x28] sm:$0xff]
    %v1074 = vld [vmem:[#allocation4 + $0x30] sm:$0xff]
    %v1075 = vld [vmem:[#allocation4 + $0x38] sm:$0xff]
    %v1076 = vld [vmem:[#allocation4 + $0x40] sm:$0xff]
    %v1077 = vld [vmem:[#allocation4 + $0x48] sm:$0xff]
    %v1078 = vld [vmem:[#allocation4 + $0x50] sm:$0xff]
    %v1079 = vld [vmem:[#allocation4 + $0x58] sm:$0xff]
    %v1080 = vld [vmem:[#allocation4 + $0x60] sm:$0xff]
    %v1081 = vld [vmem:[#allocation4 + $0x68] sm:$0xff]
    %v1082 = vld [vmem:[#allocation4 + $0x70] sm:$0xff]
    %v1083 = vld [vmem:[#allocation5] sm:$0xf]
    %v1084 = vld [vmem:[#allocation5 + $0x4] sm:$0xf]
    %v1085 = vld [vmem:[#allocation5 + $0x8] sm:$0xf]
    %v1086 = vld [vmem:[#allocation5 + $0xc] sm:$0xf]
    %v1087 = vld [vmem:[#allocation5 + $0x10] sm:$0xf]
    %v1088 = vld [vmem:[#allocation5 + $0x14] sm:$0xf]
    %v1089 = vld [vmem:[#allocation5 + $0x18] sm:$0xf]
    %v1090 = vld [vmem:[#allocation5 + $0x1c] sm:$0xf]
    %v1091 = vld [vmem:[#allocation5 + $0x20] sm:$0xf]
    %v1092 = vld [vmem:[#allocation5 + $0x24] sm:$0xf]
    %v1093 = vld [vmem:[#allocation5 + $0x28] sm:$0xf]
    %v1094 = vld [vmem:[#allocation5 + $0x2c] sm:$0xf]
    %v1095 = vld [vmem:[#allocation5 + $0x30] sm:$0xf]
    %v1096 = vld [vmem:[#allocation5 + $0x34] sm:$0xf]
    %v1097 = vld [vmem:[#allocation5 + $0x38] sm:$0xf]
    %v1098 = vld [vmem:[#allocation5 + $0x3c] sm:$0xf]
    %v1099 = vld [vmem:[#allocation5 + $0x40] sm:$0xf]
    %v1100 = vld [vmem:[#allocation5 + $0x44] sm:$0xf]
    %v1101 = vld [vmem:[#allocation5 + $0x48] sm:$0xf]
    %v1102 = vld [vmem:[#allocation5 + $0x4c] sm:$0xf]
    %v1103 = vld [vmem:[#allocation5 + $0x50] sm:$0xf]
    %v1104 = vld [vmem:[#allocation5 + $0x54] sm:$0xf]
    %v1105 = vld [vmem:[#allocation5 + $0x58] sm:$0xf]
    %v1106 = vld [vmem:[#allocation5 + $0x5c] sm:$0xf]
    %v1107 = vld [vmem:[#allocation5 + $0x60] sm:$0xf]
    %v1108 = vld [vmem:[#allocation5 + $0x64] sm:$0xf]
    %v1109 = vld [vmem:[#allocation5 + $0x68] sm:$0xf]
    %v1110 = vld [vmem:[#allocation5 + $0x6c] sm:$0xf]
    %v1111 = vld [vmem:[#allocation5 + $0x70] sm:$0xf]
    %v1112 = vld [vmem:[#allocation5 + $0x74] sm:$0xf]
    %v1113 = vld [vmem:[#allocation5 + $0x78] sm:$0xf]
    %v1114 = vld [vmem:[#allocation5 + $0x7c] sm:$0xf]
    %v1115 = vld [vmem:[#allocation5 + $0x80] sm:$0xf]
    %v1116 = vld [vmem:[#allocation5 + $0x84] sm:$0xf]
    %v1117 = vld [vmem:[#allocation5 + $0x88] sm:$0xf]
    %v1118 = vld [vmem:[#allocation5 + $0x8c] sm:$0xf]
    %v1119 = vld [vmem:[#allocation5 + $0x90] sm:$0xf]
    %v1120 = vld [vmem:[#allocation5 + $0x94] sm:$0xf]
    %v1121 = vld [vmem:[#allocation5 + $0x98] sm:$0xf]
    %v1122 = vld [vmem:[#allocation5 + $0x9c] sm:$0xf]
    %v1123 = vld [vmem:[#allocation5 + $0xa0] sm:$0xf]
    %v1124 = vld [vmem:[#allocation5 + $0xa4] sm:$0xf]
    %v1125 = vld [vmem:[#allocation5 + $0xa8] sm:$0xf]
    %v1126 = vld [vmem:[#allocation5 + $0xac] sm:$0xf]
    %v1127 = vld [vmem:[#allocation5 + $0xb0] sm:$0xf]
    %v1128 = vld [vmem:[#allocation5 + $0xb4] sm:$0xf]
    %v1129 = vld [vmem:[#allocation5 + $0xb8] sm:$0xf]
    %v1130 = vld [vmem:[#allocation5 + $0xbc] sm:$0xf]
    %v1131 = vld [vmem:[#allocation5 + $0xc0] sm:$0xf]
    %v1132 = vld [vmem:[#allocation5 + $0xc4] sm:$0xf]
    %v1133 = vld [vmem:[#allocation5 + $0xc8] sm:$0xf]
    %v1134 = vld [vmem:[#allocation5 + $0xcc] sm:$0xf]
    %v1135 = vld [vmem:[#allocation5 + $0xd0] sm:$0xf]
    %v1136 = vld [vmem:[#allocation5 + $0xd4] sm:$0xf]
    %v1137 = vld [vmem:[#allocation5 + $0xd8] sm:$0xf]
    %v1138 = vld [vmem:[#allocation5 + $0xdc] sm:$0xf]
    %v1139 = vld [vmem:[#allocation5 + $0xe0] sm:$0xf]
    %v1140 = vld [vmem:[#allocation5 + $0xe4] sm:$0xf]
    %v1141 = vld [vmem:[#allocation5 + $0xe8] sm:$0xf]
    %v1142 = vld [vmem:[#allocation5 + $0xec] sm:$0xf]
    %v1143 = vld [vmem:[#allocation5 + $0xf0] sm:$0xf]
    %v1144 = vld [vmem:[#allocation5 + $0xf4] sm:$0xf]
    %v1145 = vld [vmem:[#allocation5 + $0xf8] sm:$0xf]
    %v1146 = vld [vmem:[#allocation5 + $0xfc] sm:$0xf]
    %v1147 = vld [vmem:[#allocation5 + $0x100] sm:$0xf]
    %v1148 = vld [vmem:[#allocation5 + $0x104] sm:$0xf]
    %v1149 = vld [vmem:[#allocation5 + $0x108] sm:$0xf]
    %v1150 = vld [vmem:[#allocation5 + $0x10c] sm:$0xf]
    %v1151 = vld [vmem:[#allocation5 + $0x110] sm:$0xf]
    %v1152 = vld [vmem:[#allocation5 + $0x114] sm:$0xf]
    %v1153 = vld [vmem:[#allocation5 + $0x118] sm:$0xf]
    %v1154 = vld [vmem:[#allocation5 + $0x11c] sm:$0xf]
    %v1155 = vld [vmem:[#allocation5 + $0x120] sm:$0xf]
    %v1156 = vld [vmem:[#allocation5 + $0x124] sm:$0xf]
    %v1157 = vld [vmem:[#allocation5 + $0x128] sm:$0xf]
    %v1158 = vld [vmem:[#allocation5 + $0x12c] sm:$0xf]
    %v1159 = vld [vmem:[#allocation5 + $0x130] sm:$0xf]
    %v1160 = vld [vmem:[#allocation5 + $0x134] sm:$0xf]
    %v1161 = vld [vmem:[#allocation5 + $0x138] sm:$0xf]
    %v1162 = vld [vmem:[#allocation5 + $0x13c] sm:$0xf]
    %v1163 = vld [vmem:[#allocation5 + $0x140] sm:$0xf]
    %v1164 = vld [vmem:[#allocation5 + $0x144] sm:$0xf]
    %v1165 = vld [vmem:[#allocation5 + $0x148] sm:$0xf]
    %v1166 = vld [vmem:[#allocation5 + $0x14c] sm:$0xf]
    %v1167 = vld [vmem:[#allocation5 + $0x150] sm:$0xf]
    %v1168 = vld [vmem:[#allocation5 + $0x154] sm:$0xf]
    %v1169 = vld [vmem:[#allocation5 + $0x158] sm:$0xf]
    %v1170 = vld [vmem:[#allocation5 + $0x15c] sm:$0xf]
    %v1171 = vld [vmem:[#allocation5 + $0x160] sm:$0xf]
    %v1172 = vld [vmem:[#allocation5 + $0x164] sm:$0xf]
    %v1173 = vld [vmem:[#allocation5 + $0x168] sm:$0xf]
    %v1174 = vld [vmem:[#allocation5 + $0x16c] sm:$0xf]
    %v1175 = vld [vmem:[#allocation5 + $0x170] sm:$0xf]
    %v1176 = vld [vmem:[#allocation5 + $0x174] sm:$0xf]
    %v1177 = vld [vmem:[#allocation5 + $0x178] sm:$0xf]
    %v1178 = vld [vmem:[#allocation5 + $0x17c] sm:$0xf]
    %v1179 = vld [vmem:[#allocation5 + $0x180] sm:$0xf]
    %v1180 = vld [vmem:[#allocation5 + $0x184] sm:$0xf]
    %v1181 = vld [vmem:[#allocation5 + $0x188] sm:$0xf]
    %v1182 = vld [vmem:[#allocation5 + $0x18c] sm:$0xf]
    %v1183 = vld [vmem:[#allocation5 + $0x190] sm:$0xf]
    %v1184 = vld [vmem:[#allocation5 + $0x194] sm:$0xf]
    %v1185 = vld [vmem:[#allocation5 + $0x198] sm:$0xf]
    %v1186 = vld [vmem:[#allocation5 + $0x19c] sm:$0xf]
    %v1187 = vld [vmem:[#allocation5 + $0x1a0] sm:$0xf]
    %v1188 = vld [vmem:[#allocation5 + $0x1a4] sm:$0xf]
    %v1189 = vld [vmem:[#allocation5 + $0x1a8] sm:$0xf]
    %v1190 = vld [vmem:[#allocation5 + $0x1ac] sm:$0xf]
    %v1191 = vld [vmem:[#allocation5 + $0x1b0] sm:$0xf]
    %v1192 = vld [vmem:[#allocation5 + $0x1b4] sm:$0xf]
    %v1193 = vld [vmem:[#allocation5 + $0x1b8] sm:$0xf]
    %v1194 = vld [vmem:[#allocation5 + $0x1bc] sm:$0xf]
    %v1195 = vld [vmem:[#allocation5 + $0x1c0] sm:$0xf]
    %v1196 = vld [vmem:[#allocation5 + $0x1c4] sm:$0xf]
    %v1197 = vld [vmem:[#allocation5 + $0x1c8] sm:$0xf]
    %v1198 = vld [vmem:[#allocation5 + $0x1cc] sm:$0xf]
    %v1199 = vld [vmem:[#allocation5 + $0x1d0] sm:$0xf]
    %v1200 = vld [vmem:[#allocation5 + $0x1d4] sm:$0xf]
    %v1201 = vld [vmem:[#allocation5 + $0x1d8] sm:$0xf]
    %v1202 = vld [vmem:[#allocation5 + $0x1dc] sm:$0xf]
    %v1203 = vld [vmem:[#allocation5 + $0x1e0] sm:$0xf]
    %v1204 = vld [vmem:[#allocation5 + $0x1e4] sm:$0xf]
    %v1205 = vld [vmem:[#allocation5 + $0x1e8] sm:$0xf]
    %v1206 = vld [vmem:[#allocation5 + $0x1ec] sm:$0xf]
    %v1207 = vld [vmem:[#allocation5 + $0x1f0] sm:$0xf]
    %v1208 = vld [vmem:[#allocation5 + $0x1f4] sm:$0xf]
    %v1209 = vld [vmem:[#allocation5 + $0x1f8] sm:$0xf]
    %v1210 = vld [vmem:[#allocation5 + $0x1fc] sm:$0xf]
    %v1211 = vld [vmem:[#allocation5 + $0x200] sm:$0xf]
    %v1212 = vld [vmem:[#allocation5 + $0x204] sm:$0xf]
    %v1213 = vld [vmem:[#allocation5 + $0x208] sm:$0xf]
    %v1214 = vld [vmem:[#allocation5 + $0x20c] sm:$0xf]
    %v1215 = vld [vmem:[#allocation5 + $0x210] sm:$0xf]
    %v1216 = vld [vmem:[#allocation5 + $0x214] sm:$0xf]
    %v1217 = vld [vmem:[#allocation5 + $0x218] sm:$0xf]
    %v1218 = vld [vmem:[#allocation5 + $0x21c] sm:$0xf]
    %v1219 = vld [vmem:[#allocation5 + $0x220] sm:$0xf]
    %v1220 = vld [vmem:[#allocation5 + $0x224] sm:$0xf]
    %v1221 = vld [vmem:[#allocation5 + $0x228] sm:$0xf]
    %v1222 = vld [vmem:[#allocation5 + $0x22c] sm:$0xf]
    %v1223 = vld [vmem:[#allocation5 + $0x230] sm:$0xf]
    %v1224 = vld [vmem:[#allocation5 + $0x234] sm:$0xf]
    %v1225 = vld [vmem:[#allocation5 + $0x238] sm:$0xf]
    %v1226 = vld [vmem:[#allocation5 + $0x23c] sm:$0xf]
    %v1227 = vld [vmem:[#allocation5 + $0x240] sm:$0xf]
    %v1228 = vld [vmem:[#allocation5 + $0x244] sm:$0xf]
    %v1229 = vld [vmem:[#allocation5 + $0x248] sm:$0xf]
    %v1230 = vld [vmem:[#allocation5 + $0x24c] sm:$0xf]
    %v1231 = vld [vmem:[#allocation5 + $0x250] sm:$0xf]
    %v1232 = vld [vmem:[#allocation5 + $0x254] sm:$0xf]
    %v1233 = vld [vmem:[#allocation5 + $0x258] sm:$0xf]
    %v1234 = vld [vmem:[#allocation5 + $0x25c] sm:$0xf]
    %v1235 = vld [vmem:[#allocation5 + $0x260] sm:$0xf]
    %v1236 = vld [vmem:[#allocation5 + $0x264] sm:$0xf]
    %v1237 = vld [vmem:[#allocation5 + $0x268] sm:$0xf]
    %v1238 = vld [vmem:[#allocation5 + $0x26c] sm:$0xf]
    %v1239 = vld [vmem:[#allocation5 + $0x270] sm:$0xf]
    %v1240 = vld [vmem:[#allocation5 + $0x274] sm:$0xf]
    %v1241 = vld [vmem:[#allocation5 + $0x278] sm:$0xf]
    %v1242 = vld [vmem:[#allocation5 + $0x27c] sm:$0xf]
    %v1243 = vld [vmem:[#allocation5 + $0x280] sm:$0xf]
    %v1244 = vld [vmem:[#allocation5 + $0x284] sm:$0xf]
    %v1245 = vld [vmem:[#allocation5 + $0x288] sm:$0xf]
    %v1246 = vld [vmem:[#allocation5 + $0x28c] sm:$0xf]
    %v1247 = vld [vmem:[#allocation5 + $0x290] sm:$0xf]
    %v1248 = vld [vmem:[#allocation5 + $0x294] sm:$0xf]
    %v1249 = vld [vmem:[#allocation5 + $0x298] sm:$0xf]
    %v1250 = vld [vmem:[#allocation5 + $0x29c] sm:$0xf]
    %v1251 = vld [vmem:[#allocation5 + $0x2a0] sm:$0xf]
    %v1252 = vld [vmem:[#allocation5 + $0x2a4] sm:$0xf]
    %v1253 = vld [vmem:[#allocation5 + $0x2a8] sm:$0xf]
    %v1254 = vld [vmem:[#allocation5 + $0x2ac] sm:$0xf]
    %v1255 = vld [vmem:[#allocation5 + $0x2b0] sm:$0xf]
    %v1256 = vld [vmem:[#allocation5 + $0x2b4] sm:$0xf]
    %v1257 = vld [vmem:[#allocation5 + $0x2b8] sm:$0xf]
    %v1258 = vld [vmem:[#allocation5 + $0x2bc] sm:$0xf]
    %v1259 = vld [vmem:[#allocation5 + $0x2c0] sm:$0xf]
    %v1260 = vld [vmem:[#allocation5 + $0x2c4] sm:$0xf]
    %v1261 = vld [vmem:[#allocation5 + $0x2c8] sm:$0xf]
    %v1262 = vld [vmem:[#allocation5 + $0x2cc] sm:$0xf]
    %v1263 = vld [vmem:[#allocation5 + $0x2d0] sm:$0xf]
    %v1264 = vld [vmem:[#allocation5 + $0x2d4] sm:$0xf]
    %v1265 = vld [vmem:[#allocation5 + $0x2d8] sm:$0xf]
    %v1266 = vld [vmem:[#allocation5 + $0x2dc] sm:$0xf]
    %v1267 = vld [vmem:[#allocation5 + $0x2e0] sm:$0xf]
    %v1268 = vld [vmem:[#allocation5 + $0x2e4] sm:$0xf]
    %v1269 = vld [vmem:[#allocation5 + $0x2e8] sm:$0xf]
    %v1270 = vld [vmem:[#allocation5 + $0x2ec] sm:$0xf]
    %v1271 = vld [vmem:[#allocation5 + $0x2f0] sm:$0xf]
    %v1272 = vld [vmem:[#allocation5 + $0x2f4] sm:$0xf]
    %v1273 = vld [vmem:[#allocation5 + $0x2f8] sm:$0xf]
    %v1274 = vld [vmem:[#allocation5 + $0x2fc] sm:$0xf]
    %v1275 = vld [vmem:[#allocation5 + $0x300] sm:$0xf]
    %v1276 = vld [vmem:[#allocation5 + $0x304] sm:$0xf]
    %v1277 = vld [vmem:[#allocation5 + $0x308] sm:$0xf]
    %v1278 = vld [vmem:[#allocation5 + $0x30c] sm:$0xf]
    %v1279 = vld [vmem:[#allocation5 + $0x310] sm:$0xf]
    %v1280 = vld [vmem:[#allocation5 + $0x314] sm:$0xf]
    %v1281 = vld [vmem:[#allocation5 + $0x318] sm:$0xf]
    %v1282 = vld [vmem:[#allocation5 + $0x31c] sm:$0xf]
    %v1283 = vld [vmem:[#allocation5 + $0x320] sm:$0xf]
    %v1284 = vld [vmem:[#allocation5 + $0x324] sm:$0xf]
    %v1285 = vld [vmem:[#allocation5 + $0x328] sm:$0xf]
    %v1286 = vld [vmem:[#allocation5 + $0x32c] sm:$0xf]
    %v1287 = vld [vmem:[#allocation5 + $0x330] sm:$0xf]
    %v1288 = vld [vmem:[#allocation5 + $0x334] sm:$0xf]
    %v1289 = vld [vmem:[#allocation5 + $0x338] sm:$0xf]
    %v1290 = vld [vmem:[#allocation5 + $0x33c] sm:$0xf]
    %v1291 = vld [vmem:[#allocation5 + $0x340] sm:$0xf]
    %v1292 = vld [vmem:[#allocation5 + $0x344] sm:$0xf]
    %v1293 = vld [vmem:[#allocation5 + $0x348] sm:$0xf]
    %v1294 = vld [vmem:[#allocation5 + $0x34c] sm:$0xf]
    %v1295 = vld [vmem:[#allocation5 + $0x350] sm:$0xf]
    %v1296 = vld [vmem:[#allocation5 + $0x354] sm:$0xf]
    %v1297 = vld [vmem:[#allocation5 + $0x358] sm:$0xf]
    %v1298 = vld [vmem:[#allocation5 + $0x35c] sm:$0xf]
    %v1299 = vld [vmem:[#allocation5 + $0x360] sm:$0xf]
    %v1300 = vld [vmem:[#allocation5 + $0x364] sm:$0xf]
    %v1301 = vld [vmem:[#allocation5 + $0x368] sm:$0xf]
    %v1302 = vld [vmem:[#allocation5 + $0x36c] sm:$0xf]
    %v1303 = vld [vmem:[#allocation5 + $0x370] sm:$0xf]
    %v1304 = vld [vmem:[#allocation5 + $0x374] sm:$0xf]
    %v1305 = vld [vmem:[#allocation5 + $0x378] sm:$0xf]
    %v1306 = vld [vmem:[#allocation5 + $0x37c] sm:$0xf]
    %v1307 = vld [vmem:[#allocation5 + $0x380] sm:$0xf]
    %v1308 = vld [vmem:[#allocation5 + $0x384] sm:$0xf]
    %v1309 = vld [vmem:[#allocation5 + $0x388] sm:$0xf]
    %v1310 = vld [vmem:[#allocation5 + $0x38c] sm:$0xf]
    %v1311 = vld [vmem:[#allocation5 + $0x390] sm:$0xf]
    %v1312 = vld [vmem:[#allocation5 + $0x394] sm:$0xf]
    %v1313 = vld [vmem:[#allocation5 + $0x398] sm:$0xf]
    %v1314 = vld [vmem:[#allocation5 + $0x39c] sm:$0xf]
    %v1315 = vld [vmem:[#allocation5 + $0x3a0] sm:$0xf]
    %v1316 = vld [vmem:[#allocation5 + $0x3a4] sm:$0xf]
    %v1317 = vld [vmem:[#allocation5 + $0x3a8] sm:$0xf]
    %v1318 = vld [vmem:[#allocation5 + $0x3ac] sm:$0xf]
    %v1319 = vld [vmem:[#allocation5 + $0x3b0] sm:$0xf]
    %v1320 = vld [vmem:[#allocation5 + $0x3b4] sm:$0xf]
    %v1321 = vld [vmem:[#allocation5 + $0x3b8] sm:$0xf]
    %v1322 = vld [vmem:[#allocation5 + $0x3bc] sm:$0xf]
    %v1323 = vld [vmem:[#allocation5 + $0x3c0] sm:$0xf]
    %v1324 = vld [vmem:[#allocation5 + $0x3c4] sm:$0xf]
    %v1325 = vld [vmem:[#allocation5 + $0x3c8] sm:$0xf]
    %v1326 = vld [vmem:[#allocation5 + $0x3cc] sm:$0xf]
    %v1327 = vld [vmem:[#allocation5 + $0x3d0] sm:$0xf]
    %v1328 = vld [vmem:[#allocation5 + $0x3d4] sm:$0xf]
    %v1329 = vld [vmem:[#allocation5 + $0x3d8] sm:$0xf]
    %v1330 = vld [vmem:[#allocation5 + $0x3dc] sm:$0xf]
    %v1331 = vld [vmem:[#allocation5 + $0x3e0] sm:$0xf]
    %v1332 = vld [vmem:[#allocation5 + $0x3e4] sm:$0xf]
    %v1333 = vld [vmem:[#allocation5 + $0x3e8] sm:$0xf]
    %v1334 = vld [vmem:[#allocation5 + $0x3ec] sm:$0xf]
    %v1335 = vld [vmem:[#allocation5 + $0x3f0] sm:$0xf]
    %v1336 = vld [vmem:[#allocation5 + $0x3f4] sm:$0xf]
    %v1337 = vld [vmem:[#allocation5 + $0x3f8] sm:$0xf]
    %v1338 = vld [vmem:[#allocation5 + $0x3fc] sm:$0xf]
    %v1339 = vld [vmem:[#allocation5 + $0x400] sm:$0xf]
    %v1340 = vld [vmem:[#allocation5 + $0x404] sm:$0xf]
    %v1341 = vld [vmem:[#allocation5 + $0x408] sm:$0xf]
    %v1342 = vld [vmem:[#allocation5 + $0x40c] sm:$0xf]
    %v1343 = vld [vmem:[#allocation5 + $0x410] sm:$0xf]
    %v1344 = vld [vmem:[#allocation5 + $0x414] sm:$0xf]
    %v1345 = vld [vmem:[#allocation5 + $0x418] sm:$0xf]
    %v1346 = vld [vmem:[#allocation5 + $0x41c] sm:$0xf]
    %v1347 = vld [vmem:[#allocation5 + $0x420] sm:$0xf]
    %v1348 = vld [vmem:[#allocation5 + $0x424] sm:$0xf]
    %v1349 = vld [vmem:[#allocation5 + $0x428] sm:$0xf]
    %v1350 = vld [vmem:[#allocation5 + $0x42c] sm:$0xf]
    %v1351 = vld [vmem:[#allocation5 + $0x430] sm:$0xf]
    %v1352 = vld [vmem:[#allocation5 + $0x434] sm:$0xf]
    %v1353 = vld [vmem:[#allocation5 + $0x438] sm:$0xf]
    %v1354 = vld [vmem:[#allocation5 + $0x43c] sm:$0xf]
    %v1355 = vld [vmem:[#allocation5 + $0x440] sm:$0xf]
    %v1356 = vld [vmem:[#allocation5 + $0x444] sm:$0xf]
    %v1357 = vld [vmem:[#allocation5 + $0x448] sm:$0xf]
    %v1358 = vld [vmem:[#allocation5 + $0x44c] sm:$0xf]
    %v1359 = vld [vmem:[#allocation5 + $0x450] sm:$0xf]
    %v1360 = vld [vmem:[#allocation5 + $0x454] sm:$0xf]
    %v1361 = vld [vmem:[#allocation5 + $0x458] sm:$0xf]
    %v1362 = vld [vmem:[#allocation5 + $0x45c] sm:$0xf]
    %v1363 = vld [vmem:[#allocation5 + $0x460] sm:$0xf]
    %v1364 = vld [vmem:[#allocation5 + $0x464] sm:$0xf]
    %v1365 = vld [vmem:[#allocation5 + $0x468] sm:$0xf]
    %v1366 = vld [vmem:[#allocation5 + $0x46c] sm:$0xf]
    %v1367 = vld [vmem:[#allocation5 + $0x470] sm:$0xf]
    %v1368 = vld [vmem:[#allocation5 + $0x474] sm:$0xf]
    %v1369 = vld [vmem:[#allocation5 + $0x478] sm:$0xf]
    %v1370 = vld [vmem:[#allocation5 + $0x47c] sm:$0xf]
    %v1371 = vld [vmem:[#allocation5 + $0x480] sm:$0xf]
    %v1372 = vld [vmem:[#allocation5 + $0x484] sm:$0xf]
    %v1373 = vld [vmem:[#allocation5 + $0x488] sm:$0xf]
    %v1374 = vld [vmem:[#allocation5 + $0x48c] sm:$0xf]
    %v1375 = vld [vmem:[#allocation5 + $0x490] sm:$0xf]
    %v1376 = vld [vmem:[#allocation5 + $0x494] sm:$0xf]
    %v1377 = vld [vmem:[#allocation5 + $0x498] sm:$0xf]
    %v1378 = vld [vmem:[#allocation5 + $0x49c] sm:$0xf]
    %v1379 = vld [vmem:[#allocation5 + $0x4a0] sm:$0xf]
    %v1380 = vld [vmem:[#allocation5 + $0x4a4] sm:$0xf]
    %v1381 = vld [vmem:[#allocation5 + $0x4a8] sm:$0xf]
    %v1382 = vld [vmem:[#allocation5 + $0x4ac] sm:$0xf]
    %v1383 = vld [vmem:[#allocation5 + $0x4b0] sm:$0xf]
    %v1384 = vld [vmem:[#allocation5 + $0x4b4] sm:$0xf]
    %v1385 = vld [vmem:[#allocation5 + $0x4b8] sm:$0xf]
    %v1386 = vld [vmem:[#allocation5 + $0x4bc] sm:$0xf]
    %v1387 = vld [vmem:[#allocation5 + $0x4c0] sm:$0xf]
    %v1388 = vld [vmem:[#allocation5 + $0x4c4] sm:$0xf]
    %v1389 = vld [vmem:[#allocation5 + $0x4c8] sm:$0xf]
    %v1390 = vld [vmem:[#allocation5 + $0x4cc] sm:$0xf]
    %v1391 = vld [vmem:[#allocation5 + $0x4d0] sm:$0xf]
    %v1392 = vld [vmem:[#allocation5 + $0x4d4] sm:$0xf]
    %v1393 = vld [vmem:[#allocation5 + $0x4d8] sm:$0xf]
    %v1394 = vld [vmem:[#allocation5 + $0x4dc] sm:$0xf]
    %v1395 = vld [vmem:[#allocation5 + $0x4e0] sm:$0xf]
    %v1396 = vld [vmem:[#allocation5 + $0x4e4] sm:$0xf]
    %v1397 = vld [vmem:[#allocation5 + $0x4e8] sm:$0xf]
    %v1398 = vld [vmem:[#allocation5 + $0x4ec] sm:$0xf]
    %v1399 = vld [vmem:[#allocation5 + $0x4f0] sm:$0xf]
    %v1400 = vld [vmem:[#allocation5 + $0x4f4] sm:$0xf]
    %v1401 = vld [vmem:[#allocation5 + $0x4f8] sm:$0xf]
    %v1402 = vld [vmem:[#allocation5 + $0x4fc] sm:$0xf]
    %v1403 = vld [vmem:[#allocation5 + $0x500] sm:$0xf]
    %v1404 = vld [vmem:[#allocation5 + $0x504] sm:$0xf]
    %v1405 = vld [vmem:[#allocation5 + $0x508] sm:$0xf]
    %v1406 = vld [vmem:[#allocation5 + $0x50c] sm:$0xf]
    %v1407 = vld [vmem:[#allocation5 + $0x510] sm:$0xf]
    %v1408 = vld [vmem:[#allocation5 + $0x514] sm:$0xf]
    %v1409 = vld [vmem:[#allocation5 + $0x518] sm:$0xf]
    %v1410 = vld [vmem:[#allocation5 + $0x51c] sm:$0xf]
    %v1411 = vld [vmem:[#allocation5 + $0x520] sm:$0xf]
    %v1412 = vld [vmem:[#allocation5 + $0x524] sm:$0xf]
    %v1413 = vld [vmem:[#allocation5 + $0x528] sm:$0xf]
    %v1414 = vld [vmem:[#allocation5 + $0x52c] sm:$0xf]
    %v1415 = vld [vmem:[#allocation5 + $0x530] sm:$0xf]
    %v1416 = vld [vmem:[#allocation5 + $0x534] sm:$0xf]
    %v1417 = vld [vmem:[#allocation5 + $0x538] sm:$0xf]
    %v1418 = vld [vmem:[#allocation5 + $0x53c] sm:$0xf]
    %v1419 = vld [vmem:[#allocation5 + $0x540] sm:$0xf]
    %v1420 = vld [vmem:[#allocation5 + $0x544] sm:$0xf]
    %v1421 = vld [vmem:[#allocation5 + $0x548] sm:$0xf]
    %v1422 = vld [vmem:[#allocation5 + $0x54c] sm:$0xf]
    %v1423 = vld [vmem:[#allocation5 + $0x550] sm:$0xf]
    %v1424 = vld [vmem:[#allocation5 + $0x554] sm:$0xf]
    %v1425 = vld [vmem:[#allocation5 + $0x558] sm:$0xf]
    %v1426 = vld [vmem:[#allocation5 + $0x55c] sm:$0xf]
    %v1427 = vld [vmem:[#allocation5 + $0x560] sm:$0xf]
    %v1428 = vld [vmem:[#allocation5 + $0x564] sm:$0xf]
    %v1429 = vld [vmem:[#allocation5 + $0x568] sm:$0xf]
    %v1430 = vld [vmem:[#allocation5 + $0x56c] sm:$0xf]
    %v1431 = vld [vmem:[#allocation5 + $0x570] sm:$0xf]
    %v1432 = vld [vmem:[#allocation5 + $0x574] sm:$0xf]
    %v1433 = vld [vmem:[#allocation5 + $0x578] sm:$0xf]
    %v1434 = vld [vmem:[#allocation5 + $0x57c] sm:$0xf]
    %v1435 = vld [vmem:[#allocation5 + $0x580] sm:$0xf]
    %v1436 = vld [vmem:[#allocation5 + $0x584] sm:$0xf]
    %v1437 = vld [vmem:[#allocation5 + $0x588] sm:$0xf]
    %v1438 = vld [vmem:[#allocation5 + $0x58c] sm:$0xf]
    %v1439 = vld [vmem:[#allocation5 + $0x590] sm:$0xf]
    %v1440 = vld [vmem:[#allocation5 + $0x594] sm:$0xf]
    %v1441 = vld [vmem:[#allocation5 + $0x598] sm:$0xf]
    %v1442 = vld [vmem:[#allocation5 + $0x59c] sm:$0xf]
    %v1443 = vld [vmem:[#allocation5 + $0x5a0] sm:$0xf]
    %v1444 = vld [vmem:[#allocation5 + $0x5a4] sm:$0xf]
    %v1445 = vld [vmem:[#allocation5 + $0x5a8] sm:$0xf]
    %v1446 = vld [vmem:[#allocation5 + $0x5ac] sm:$0xf]
    %v1447 = vld [vmem:[#allocation5 + $0x5b0] sm:$0xf]
    %v1448 = vld [vmem:[#allocation5 + $0x5b4] sm:$0xf]
    %v1449 = vld [vmem:[#allocation5 + $0x5b8] sm:$0xf]
    %v1450 = vld [vmem:[#allocation5 + $0x5bc] sm:$0xf]
    %v1451 = vld [vmem:[#allocation5 + $0x5c0] sm:$0xf]
    %v1452 = vld [vmem:[#allocation5 + $0x5c4] sm:$0xf]
    %v1453 = vld [vmem:[#allocation5 + $0x5c8] sm:$0xf]
    %v1454 = vld [vmem:[#allocation5 + $0x5cc] sm:$0xf]
    %v1455 = vld [vmem:[#allocation5 + $0x5d0] sm:$0xf]
    %v1456 = vld [vmem:[#allocation5 + $0x5d4] sm:$0xf]
    %v1457 = vld [vmem:[#allocation5 + $0x5d8] sm:$0xf]
    %v1458 = vld [vmem:[#allocation5 + $0x5dc] sm:$0xf]
    %v1459 = vld [vmem:[#allocation5 + $0x5e0] sm:$0xf]
    %v1460 = vld [vmem:[#allocation5 + $0x5e4] sm:$0xf]
    %v1461 = vld [vmem:[#allocation5 + $0x5e8] sm:$0xf]
    %v1462 = vld [vmem:[#allocation5 + $0x5ec] sm:$0xf]
    %v1463 = vld [vmem:[#allocation5 + $0x5f0] sm:$0xf]
    %v1464 = vld [vmem:[#allocation5 + $0x5f4] sm:$0xf]
    %v1465 = vld [vmem:[#allocation5 + $0x5f8] sm:$0xf]
    %v1466 = vld [vmem:[#allocation5 + $0x5fc] sm:$0xf]
    %v1467 = vld [vmem:[#allocation5 + $0x600] sm:$0xf]
    %v1468 = vld [vmem:[#allocation5 + $0x604] sm:$0xf]
    %v1469 = vld [vmem:[#allocation5 + $0x608] sm:$0xf]
    %v1470 = vld [vmem:[#allocation5 + $0x60c] sm:$0xf]
    %v1471 = vld [vmem:[#allocation5 + $0x610] sm:$0xf]
    %v1472 = vld [vmem:[#allocation5 + $0x614] sm:$0xf]
    %v1473 = vld [vmem:[#allocation5 + $0x618] sm:$0xf]
    %v1474 = vld [vmem:[#allocation5 + $0x61c] sm:$0xf]
    %v1475 = vld [vmem:[#allocation5 + $0x620] sm:$0xf]
    %v1476 = vld [vmem:[#allocation5 + $0x624] sm:$0xf]
    %v1477 = vld [vmem:[#allocation5 + $0x628] sm:$0xf]
    %v1478 = vld [vmem:[#allocation5 + $0x62c] sm:$0xf]
    %v1479 = vld [vmem:[#allocation5 + $0x630] sm:$0xf]
    %v1480 = vld [vmem:[#allocation5 + $0x634] sm:$0xf]
    %v1481 = vld [vmem:[#allocation5 + $0x638] sm:$0xf]
    %v1482 = vld [vmem:[#allocation5 + $0x63c] sm:$0xf]
    %v1483 = vld [vmem:[#allocation5 + $0x640] sm:$0xf]
    %v1484 = vld [vmem:[#allocation5 + $0x644] sm:$0xf]
    %v1485 = vld [vmem:[#allocation5 + $0x648] sm:$0xf]
    %v1486 = vld [vmem:[#allocation5 + $0x64c] sm:$0xf]
    %v1487 = vld [vmem:[#allocation5 + $0x650] sm:$0xf]
    %v1488 = vld [vmem:[#allocation5 + $0x654] sm:$0xf]
    %v1489 = vld [vmem:[#allocation5 + $0x658] sm:$0xf]
    %v1490 = vld [vmem:[#allocation5 + $0x65c] sm:$0xf]
    %v1491 = vld [vmem:[#allocation5 + $0x660] sm:$0xf]
    %v1492 = vld [vmem:[#allocation5 + $0x664] sm:$0xf]
    %v1493 = vld [vmem:[#allocation5 + $0x668] sm:$0xf]
    %v1494 = vld [vmem:[#allocation5 + $0x66c] sm:$0xf]
    %v1495 = vld [vmem:[#allocation5 + $0x670] sm:$0xf]
    %v1496 = vld [vmem:[#allocation5 + $0x674] sm:$0xf]
    %v1497 = vld [vmem:[#allocation5 + $0x678] sm:$0xf]
    %v1498 = vld [vmem:[#allocation5 + $0x67c] sm:$0xf]
    %v1499 = vld [vmem:[#allocation5 + $0x680] sm:$0xf]
    %v1500 = vld [vmem:[#allocation5 + $0x684] sm:$0xf]
    %v1501 = vld [vmem:[#allocation5 + $0x688] sm:$0xf]
    %v1502 = vld [vmem:[#allocation5 + $0x68c] sm:$0xf]
    %v1503 = vld [vmem:[#allocation5 + $0x690] sm:$0xf]
    %v1504 = vld [vmem:[#allocation5 + $0x694] sm:$0xf]
    %v1505 = vld [vmem:[#allocation5 + $0x698] sm:$0xf]
    %v1506 = vld [vmem:[#allocation5 + $0x69c] sm:$0xf]
    %v1507 = vld [vmem:[#allocation5 + $0x6a0] sm:$0xf]
    %v1508 = vld [vmem:[#allocation5 + $0x6a4] sm:$0xf]
    %v1509 = vld [vmem:[#allocation5 + $0x6a8] sm:$0xf]
    %v1510 = vld [vmem:[#allocation5 + $0x6ac] sm:$0xf]
    %v1511 = vld [vmem:[#allocation5 + $0x6b0] sm:$0xf]
    %v1512 = vld [vmem:[#allocation5 + $0x6b4] sm:$0xf]
    %v1513 = vld [vmem:[#allocation5 + $0x6b8] sm:$0xf]
    %v1514 = vld [vmem:[#allocation5 + $0x6bc] sm:$0xf]
    %v1515 = vld [vmem:[#allocation5 + $0x6c0] sm:$0xf]
    %v1516 = vld [vmem:[#allocation5 + $0x6c4] sm:$0xf]
    %v1517 = vld [vmem:[#allocation5 + $0x6c8] sm:$0xf]
    %v1518 = vld [vmem:[#allocation5 + $0x6cc] sm:$0xf]
    %v1519 = vld [vmem:[#allocation5 + $0x6d0] sm:$0xf]
    %v1520 = vld [vmem:[#allocation5 + $0x6d4] sm:$0xf]
    %v1521 = vld [vmem:[#allocation5 + $0x6d8] sm:$0xf]
    %v1522 = vld [vmem:[#allocation5 + $0x6dc] sm:$0xf]
    %v1523 = vld [vmem:[#allocation5 + $0x6e0] sm:$0xf]
    %v1524 = vld [vmem:[#allocation5 + $0x6e4] sm:$0xf]
    %v1525 = vld [vmem:[#allocation5 + $0x6e8] sm:$0xf]
    %v1526 = vld [vmem:[#allocation5 + $0x6ec] sm:$0xf]
    %v1527 = vld [vmem:[#allocation5 + $0x6f0] sm:$0xf]
    %v1528 = vld [vmem:[#allocation5 + $0x6f4] sm:$0xf]
    %v1529 = vld [vmem:[#allocation5 + $0x6f8] sm:$0xf]
    %v1530 = vld [vmem:[#allocation5 + $0x6fc] sm:$0xf]
    %v1531 = vld [vmem:[#allocation5 + $0x700] sm:$0xf]
    %v1532 = vld [vmem:[#allocation5 + $0x704] sm:$0xf]
    %v1533 = vld [vmem:[#allocation5 + $0x708] sm:$0xf]
    %v1534 = vld [vmem:[#allocation5 + $0x70c] sm:$0xf]
    %v1535 = vld [vmem:[#allocation5 + $0x710] sm:$0xf]
    %v1536 = vld [vmem:[#allocation5 + $0x714] sm:$0xf]
    %v1537 = vld [vmem:[#allocation5 + $0x718] sm:$0xf]
    %v1538 = vld [vmem:[#allocation5 + $0x71c] sm:$0xf]
    %v1539 = vld [vmem:[#allocation5 + $0x720] sm:$0xf]
    %v1540 = vld [vmem:[#allocation5 + $0x724] sm:$0xf]
    %v1541 = vld [vmem:[#allocation5 + $0x728] sm:$0xf]
    %v1542 = vld [vmem:[#allocation5 + $0x72c] sm:$0xf]
    %v1543 = vld [vmem:[#allocation5 + $0x730] sm:$0xf]
    %v1544 = vld [vmem:[#allocation5 + $0x734] sm:$0xf]
    %v1545 = vld [vmem:[#allocation5 + $0x738] sm:$0xf]
    %v1546 = vld [vmem:[#allocation5 + $0x73c] sm:$0xf]
    %v1547 = vld [vmem:[#allocation5 + $0x740] sm:$0xf]
    %v1548 = vld [vmem:[#allocation5 + $0x744] sm:$0xf]
    %v1549 = vld [vmem:[#allocation5 + $0x748] sm:$0xf]
    %v1550 = vld [vmem:[#allocation5 + $0x74c] sm:$0xf]
    %v1551 = vld [vmem:[#allocation5 + $0x750] sm:$0xf]
    %v1552 = vld [vmem:[#allocation5 + $0x754] sm:$0xf]
    %v1553 = vld [vmem:[#allocation5 + $0x758] sm:$0xf]
    %v1554 = vld [vmem:[#allocation5 + $0x75c] sm:$0xf]
    %v1555 = vld [vmem:[#allocation5 + $0x760] sm:$0xf]
    %v1556 = vld [vmem:[#allocation5 + $0x764] sm:$0xf]
    %v1557 = vld [vmem:[#allocation5 + $0x768] sm:$0xf]
    %v1558 = vld [vmem:[#allocation5 + $0x76c] sm:$0xf]
    %v1559 = vld [vmem:[#allocation5 + $0x770] sm:$0xf]
    %v1560 = vld [vmem:[#allocation5 + $0x774] sm:$0xf]
    %v1561 = vld [vmem:[#allocation5 + $0x778] sm:$0xf]
    %v1562 = vld [vmem:[#allocation5 + $0x77c] sm:$0xf]
    %v1563 = vld [vmem:[%s2 + $0xa] sm:$0x1]
    %v1565 = vlaneseq
    %v1566 = vshrl.u32 %v1565, 7
    %v1567 = vsub.s32 0, %v1566
    %v1568 = vrot.slane %v1563, %v1567
    %v1585 = vunpack.c.l.b16 %v1068
    %v1586 = vunpack.c.h.b16 %v1068
    %v1587 = vunpack.c.l.b16 %v1069
    %v1588 = vunpack.c.h.b16 %v1069
    %v1589 = vunpack.c.l.b16 %v1070
    %v1590 = vunpack.c.h.b16 %v1070
    %v1591 = vunpack.c.l.b16 %v1071
    %v1592 = vunpack.c.h.b16 %v1071
    %v1593 = vunpack.c.l.b16 %v1072
    %v1594 = vunpack.c.h.b16 %v1072
    %v1595 = vunpack.c.l.b16 %v1073
    %v1596 = vunpack.c.h.b16 %v1073
    %v1597 = vunpack.c.l.b16 %v1074
    %v1598 = vunpack.c.h.b16 %v1074
    %v1599 = vunpack.c.l.b16 %v1075
    %v1600 = vunpack.c.h.b16 %v1075
    %v1601 = vunpack.c.l.b16 %v1076
    %v1602 = vunpack.c.h.b16 %v1076
    %v1603 = vunpack.c.l.b16 %v1077
    %v1604 = vunpack.c.h.b16 %v1077
    %v1605 = vunpack.c.l.b16 %v1078
    %v1606 = vunpack.c.h.b16 %v1078
    %v1607 = vunpack.c.l.b16 %v1079
    %v1608 = vunpack.c.h.b16 %v1079
    %v1609 = vunpack.c.l.b16 %v1080
    %v1610 = vunpack.c.h.b16 %v1080
    %v1611 = vunpack.c.l.b16 %v1081
    %v1612 = vunpack.c.h.b16 %v1081
    %v1613 = vunpack.c.l.b16 %v1082
    %v1614 = vunpack.c.h.b16 %v1082
    %v1615 = vpack.c.b16 %v1585, %v1585
    %v1616 = vpack.c.b16 %v1586, %v1586
    %v1617 = vpack.c.b16 %v1587, %v1587
    %v1618 = vpack.c.b16 %v1588, %v1588
    %v1619 = vpack.c.b16 %v1589, %v1589
    %v1620 = vpack.c.b16 %v1590, %v1590
    %v1621 = vpack.c.b16 %v1591, %v1591
    %v1622 = vpack.c.b16 %v1592, %v1592
    %v1623 = vpack.c.b16 %v1593, %v1593
    %v1624 = vpack.c.b16 %v1594, %v1594
    %v1625 = vpack.c.b16 %v1595, %v1595
    %v1626 = vpack.c.b16 %v1596, %v1596
    %v1627 = vpack.c.b16 %v1597, %v1597
    %v1628 = vpack.c.b16 %v1598, %v1598
    %v1629 = vpack.c.b16 %v1599, %v1599
    %v1630 = vpack.c.b16 %v1600, %v1600
    %v1631 = vpack.c.b16 %v1601, %v1601
    %v1632 = vpack.c.b16 %v1602, %v1602
    %v1633 = vpack.c.b16 %v1603, %v1603
    %v1634 = vpack.c.b16 %v1604, %v1604
    %v1635 = vpack.c.b16 %v1605, %v1605
    %v1636 = vpack.c.b16 %v1606, %v1606
    %v1637 = vpack.c.b16 %v1607, %v1607
    %v1638 = vpack.c.b16 %v1608, %v1608
    %v1639 = vpack.c.b16 %v1609, %v1609
    %v1640 = vpack.c.b16 %v1610, %v1610
    %v1641 = vpack.c.b16 %v1611, %v1611
    %v1642 = vpack.c.b16 %v1612, %v1612
    %v1643 = vpack.c.b16 %v1613, %v1613
    %v1644 = vpack.c.b16 %v1614, %v1614
    %v2155 = vunpack.c.l.b16 %v1083
    %v2156 = vunpack.c.l.b16 %v1084
    %v2157 = vunpack.c.l.b16 %v1085
    %v2158 = vunpack.c.l.b16 %v1086
    %v2159 = vunpack.c.l.b16 %v1087
    %v2160 = vunpack.c.l.b16 %v1088
    %v2161 = vunpack.c.l.b16 %v1089
    %v2162 = vunpack.c.l.b16 %v1090
    %v2163 = vunpack.c.l.b16 %v1091
    %v2164 = vunpack.c.l.b16 %v1092
    %v2165 = vunpack.c.l.b16 %v1093
    %v2166 = vunpack.c.l.b16 %v1094
    %v2167 = vunpack.c.l.b16 %v1095
    %v2168 = vunpack.c.l.b16 %v1096
    %v2169 = vunpack.c.l.b16 %v1097
    %v2170 = vunpack.c.l.b16 %v1098
    %v2171 = vunpack.c.l.b16 %v1099
    %v2172 = vunpack.c.l.b16 %v1100
    %v2173 = vunpack.c.l.b16 %v1101
    %v2174 = vunpack.c.l.b16 %v1102
    %v2175 = vunpack.c.l.b16 %v1103
    %v2176 = vunpack.c.l.b16 %v1104
    %v2177 = vunpack.c.l.b16 %v1105
    %v2178 = vunpack.c.l.b16 %v1106
    %v2179 = vunpack.c.l.b16 %v1107
    %v2180 = vunpack.c.l.b16 %v1108
    %v2181 = vunpack.c.l.b16 %v1109
    %v2182 = vunpack.c.l.b16 %v1110
    %v2183 = vunpack.c.l.b16 %v1111
    %v2184 = vunpack.c.l.b16 %v1112
    %v2185 = vunpack.c.l.b16 %v1113
    %v2186 = vunpack.c.l.b16 %v1114
    %v2187 = vunpack.c.l.b16 %v1115
    %v2188 = vunpack.c.l.b16 %v1116
    %v2189 = vunpack.c.l.b16 %v1117
    %v2190 = vunpack.c.l.b16 %v1118
    %v2191 = vunpack.c.l.b16 %v1119
    %v2192 = vunpack.c.l.b16 %v1120
    %v2193 = vunpack.c.l.b16 %v1121
    %v2194 = vunpack.c.l.b16 %v1122
    %v2195 = vunpack.c.l.b16 %v1123
    %v2196 = vunpack.c.l.b16 %v1124
    %v2197 = vunpack.c.l.b16 %v1125
    %v2198 = vunpack.c.l.b16 %v1126
    %v2199 = vunpack.c.l.b16 %v1127
    %v2200 = vunpack.c.l.b16 %v1128
    %v2201 = vunpack.c.l.b16 %v1129
    %v2202 = vunpack.c.l.b16 %v1130
    %v2203 = vunpack.c.l.b16 %v1131
    %v2204 = vunpack.c.l.b16 %v1132
    %v2205 = vunpack.c.l.b16 %v1133
    %v2206 = vunpack.c.l.b16 %v1134
    %v2207 = vunpack.c.l.b16 %v1135
    %v2208 = vunpack.c.l.b16 %v1136
    %v2209 = vunpack.c.l.b16 %v1137
    %v2210 = vunpack.c.l.b16 %v1138
    %v2211 = vunpack.c.l.b16 %v1139
    %v2212 = vunpack.c.l.b16 %v1140
    %v2213 = vunpack.c.l.b16 %v1141
    %v2214 = vunpack.c.l.b16 %v1142
    %v2215 = vunpack.c.l.b16 %v1143
    %v2216 = vunpack.c.l.b16 %v1144
    %v2217 = vunpack.c.l.b16 %v1145
    %v2218 = vunpack.c.l.b16 %v1146
    %v2219 = vunpack.c.l.b16 %v1147
    %v2220 = vunpack.c.l.b16 %v1148
    %v2221 = vunpack.c.l.b16 %v1149
    %v2222 = vunpack.c.l.b16 %v1150
    %v2223 = vunpack.c.l.b16 %v1151
    %v2224 = vunpack.c.l.b16 %v1152
    %v2225 = vunpack.c.l.b16 %v1153
    %v2226 = vunpack.c.l.b16 %v1154
    %v2227 = vunpack.c.l.b16 %v1155
    %v2228 = vunpack.c.l.b16 %v1156
    %v2229 = vunpack.c.l.b16 %v1157
    %v2230 = vunpack.c.l.b16 %v1158
    %v2231 = vunpack.c.l.b16 %v1159
    %v2232 = vunpack.c.l.b16 %v1160
    %v2233 = vunpack.c.l.b16 %v1161
    %v2234 = vunpack.c.l.b16 %v1162
    %v2235 = vunpack.c.l.b16 %v1163
    %v2236 = vunpack.c.l.b16 %v1164
    %v2237 = vunpack.c.l.b16 %v1165
    %v2238 = vunpack.c.l.b16 %v1166
    %v2239 = vunpack.c.l.b16 %v1167
    %v2240 = vunpack.c.l.b16 %v1168
    %v2241 = vunpack.c.l.b16 %v1169
    %v2242 = vunpack.c.l.b16 %v1170
    %v2243 = vunpack.c.l.b16 %v1171
    %v2244 = vunpack.c.l.b16 %v1172
    %v2245 = vunpack.c.l.b16 %v1173
    %v2246 = vunpack.c.l.b16 %v1174
    %v2247 = vunpack.c.l.b16 %v1175
    %v2248 = vunpack.c.l.b16 %v1176
    %v2249 = vunpack.c.l.b16 %v1177
    %v2250 = vunpack.c.l.b16 %v1178
    %v2251 = vunpack.c.l.b16 %v1179
    %v2252 = vunpack.c.l.b16 %v1180
    %v2253 = vunpack.c.l.b16 %v1181
    %v2254 = vunpack.c.l.b16 %v1182
    %v2255 = vunpack.c.l.b16 %v1183
    %v2256 = vunpack.c.l.b16 %v1184
    %v2257 = vunpack.c.l.b16 %v1185
    %v2258 = vunpack.c.l.b16 %v1186
    %v2259 = vunpack.c.l.b16 %v1187
    %v2260 = vunpack.c.l.b16 %v1188
    %v2261 = vunpack.c.l.b16 %v1189
    %v2262 = vunpack.c.l.b16 %v1190
    %v2263 = vunpack.c.l.b16 %v1191
    %v2264 = vunpack.c.l.b16 %v1192
    %v2265 = vunpack.c.l.b16 %v1193
    %v2266 = vunpack.c.l.b16 %v1194
    %v2267 = vunpack.c.l.b16 %v1195
    %v2268 = vunpack.c.l.b16 %v1196
    %v2269 = vunpack.c.l.b16 %v1197
    %v2270 = vunpack.c.l.b16 %v1198
    %v2271 = vunpack.c.l.b16 %v1199
    %v2272 = vunpack.c.l.b16 %v1200
    %v2273 = vunpack.c.l.b16 %v1201
    %v2274 = vunpack.c.l.b16 %v1202
    %v2275 = vunpack.c.l.b16 %v1203
    %v2276 = vunpack.c.l.b16 %v1204
    %v2277 = vunpack.c.l.b16 %v1205
    %v2278 = vunpack.c.l.b16 %v1206
    %v2279 = vunpack.c.l.b16 %v1207
    %v2280 = vunpack.c.l.b16 %v1208
    %v2281 = vunpack.c.l.b16 %v1209
    %v2282 = vunpack.c.l.b16 %v1210
    %v2283 = vunpack.c.l.b16 %v1211
    %v2284 = vunpack.c.l.b16 %v1212
    %v2285 = vunpack.c.l.b16 %v1213
    %v2286 = vunpack.c.l.b16 %v1214
    %v2287 = vunpack.c.l.b16 %v1215
    %v2288 = vunpack.c.l.b16 %v1216
    %v2289 = vunpack.c.l.b16 %v1217
    %v2290 = vunpack.c.l.b16 %v1218
    %v2291 = vunpack.c.l.b16 %v1219
    %v2292 = vunpack.c.l.b16 %v1220
    %v2293 = vunpack.c.l.b16 %v1221
    %v2294 = vunpack.c.l.b16 %v1222
    %v2295 = vunpack.c.l.b16 %v1223
    %v2296 = vunpack.c.l.b16 %v1224
    %v2297 = vunpack.c.l.b16 %v1225
    %v2298 = vunpack.c.l.b16 %v1226
    %v2299 = vunpack.c.l.b16 %v1227
    %v2300 = vunpack.c.l.b16 %v1228
    %v2301 = vunpack.c.l.b16 %v1229
    %v2302 = vunpack.c.l.b16 %v1230
    %v2303 = vunpack.c.l.b16 %v1231
    %v2304 = vunpack.c.l.b16 %v1232
    %v2305 = vunpack.c.l.b16 %v1233
    %v2306 = vunpack.c.l.b16 %v1234
    %v2307 = vunpack.c.l.b16 %v1235
    %v2308 = vunpack.c.l.b16 %v1236
    %v2309 = vunpack.c.l.b16 %v1237
    %v2310 = vunpack.c.l.b16 %v1238
    %v2311 = vunpack.c.l.b16 %v1239
    %v2312 = vunpack.c.l.b16 %v1240
    %v2313 = vunpack.c.l.b16 %v1241
    %v2314 = vunpack.c.l.b16 %v1242
    %v2315 = vunpack.c.l.b16 %v1243
    %v2316 = vunpack.c.l.b16 %v1244
    %v2317 = vunpack.c.l.b16 %v1245
    %v2318 = vunpack.c.l.b16 %v1246
    %v2319 = vunpack.c.l.b16 %v1247
    %v2320 = vunpack.c.l.b16 %v1248
    %v2321 = vunpack.c.l.b16 %v1249
    %v2322 = vunpack.c.l.b16 %v1250
    %v2323 = vunpack.c.l.b16 %v1251
    %v2324 = vunpack.c.l.b16 %v1252
    %v2325 = vunpack.c.l.b16 %v1253
    %v2326 = vunpack.c.l.b16 %v1254
    %v2327 = vunpack.c.l.b16 %v1255
    %v2328 = vunpack.c.l.b16 %v1256
    %v2329 = vunpack.c.l.b16 %v1257
    %v2330 = vunpack.c.l.b16 %v1258
    %v2331 = vunpack.c.l.b16 %v1259
    %v2332 = vunpack.c.l.b16 %v1260
    %v2333 = vunpack.c.l.b16 %v1261
    %v2334 = vunpack.c.l.b16 %v1262
    %v2335 = vunpack.c.l.b16 %v1263
    %v2336 = vunpack.c.l.b16 %v1264
    %v2337 = vunpack.c.l.b16 %v1265
    %v2338 = vunpack.c.l.b16 %v1266
    %v2339 = vunpack.c.l.b16 %v1267
    %v2340 = vunpack.c.l.b16 %v1268
    %v2341 = vunpack.c.l.b16 %v1269
    %v2342 = vunpack.c.l.b16 %v1270
    %v2343 = vunpack.c.l.b16 %v1271
    %v2344 = vunpack.c.l.b16 %v1272
    %v2345 = vunpack.c.l.b16 %v1273
    %v2346 = vunpack.c.l.b16 %v1274
    %v2347 = vunpack.c.l.b16 %v1275
    %v2348 = vunpack.c.l.b16 %v1276
    %v2349 = vunpack.c.l.b16 %v1277
    %v2350 = vunpack.c.l.b16 %v1278
    %v2351 = vunpack.c.l.b16 %v1279
    %v2352 = vunpack.c.l.b16 %v1280
    %v2353 = vunpack.c.l.b16 %v1281
    %v2354 = vunpack.c.l.b16 %v1282
    %v2355 = vunpack.c.l.b16 %v1283
    %v2356 = vunpack.c.l.b16 %v1284
    %v2357 = vunpack.c.l.b16 %v1285
    %v2358 = vunpack.c.l.b16 %v1286
    %v2359 = vunpack.c.l.b16 %v1287
    %v2360 = vunpack.c.l.b16 %v1288
    %v2361 = vunpack.c.l.b16 %v1289
    %v2362 = vunpack.c.l.b16 %v1290
    %v2363 = vunpack.c.l.b16 %v1291
    %v2364 = vunpack.c.l.b16 %v1292
    %v2365 = vunpack.c.l.b16 %v1293
    %v2366 = vunpack.c.l.b16 %v1294
    %v2367 = vunpack.c.l.b16 %v1295
    %v2368 = vunpack.c.l.b16 %v1296
    %v2369 = vunpack.c.l.b16 %v1297
    %v2370 = vunpack.c.l.b16 %v1298
    %v2371 = vunpack.c.l.b16 %v1299
    %v2372 = vunpack.c.l.b16 %v1300
    %v2373 = vunpack.c.l.b16 %v1301
    %v2374 = vunpack.c.l.b16 %v1302
    %v2375 = vunpack.c.l.b16 %v1303
    %v2376 = vunpack.c.l.b16 %v1304
    %v2377 = vunpack.c.l.b16 %v1305
    %v2378 = vunpack.c.l.b16 %v1306
    %v2379 = vunpack.c.l.b16 %v1307
    %v2380 = vunpack.c.l.b16 %v1308
    %v2381 = vunpack.c.l.b16 %v1309
    %v2382 = vunpack.c.l.b16 %v1310
    %v2383 = vunpack.c.l.b16 %v1311
    %v2384 = vunpack.c.l.b16 %v1312
    %v2385 = vunpack.c.l.b16 %v1313
    %v2386 = vunpack.c.l.b16 %v1314
    %v2387 = vunpack.c.l.b16 %v1315
    %v2388 = vunpack.c.l.b16 %v1316
    %v2389 = vunpack.c.l.b16 %v1317
    %v2390 = vunpack.c.l.b16 %v1318
    %v2391 = vunpack.c.l.b16 %v1319
    %v2392 = vunpack.c.l.b16 %v1320
    %v2393 = vunpack.c.l.b16 %v1321
    %v2394 = vunpack.c.l.b16 %v1322
    %v2395 = vunpack.c.l.b16 %v1323
    %v2396 = vunpack.c.l.b16 %v1324
    %v2397 = vunpack.c.l.b16 %v1325
    %v2398 = vunpack.c.l.b16 %v1326
    %v2399 = vunpack.c.l.b16 %v1327
    %v2400 = vunpack.c.l.b16 %v1328
    %v2401 = vunpack.c.l.b16 %v1329
    %v2402 = vunpack.c.l.b16 %v1330
    %v2403 = vunpack.c.l.b16 %v1331
    %v2404 = vunpack.c.l.b16 %v1332
    %v2405 = vunpack.c.l.b16 %v1333
    %v2406 = vunpack.c.l.b16 %v1334
    %v2407 = vunpack.c.l.b16 %v1335
    %v2408 = vunpack.c.l.b16 %v1336
    %v2409 = vunpack.c.l.b16 %v1337
    %v2410 = vunpack.c.l.b16 %v1338
    %v2411 = vunpack.c.l.b16 %v1339
    %v2412 = vunpack.c.l.b16 %v1340
    %v2413 = vunpack.c.l.b16 %v1341
    %v2414 = vunpack.c.l.b16 %v1342
    %v2415 = vunpack.c.l.b16 %v1343
    %v2416 = vunpack.c.l.b16 %v1344
    %v2417 = vunpack.c.l.b16 %v1345
    %v2418 = vunpack.c.l.b16 %v1346
    %v2419 = vunpack.c.l.b16 %v1347
    %v2420 = vunpack.c.l.b16 %v1348
    %v2421 = vunpack.c.l.b16 %v1349
    %v2422 = vunpack.c.l.b16 %v1350
    %v2423 = vunpack.c.l.b16 %v1351
    %v2424 = vunpack.c.l.b16 %v1352
    %v2425 = vunpack.c.l.b16 %v1353
    %v2426 = vunpack.c.l.b16 %v1354
    %v2427 = vunpack.c.l.b16 %v1355
    %v2428 = vunpack.c.l.b16 %v1356
    %v2429 = vunpack.c.l.b16 %v1357
    %v2430 = vunpack.c.l.b16 %v1358
    %v2431 = vunpack.c.l.b16 %v1359
    %v2432 = vunpack.c.l.b16 %v1360
    %v2433 = vunpack.c.l.b16 %v1361
    %v2434 = vunpack.c.l.b16 %v1362
    %v2435 = vunpack.c.l.b16 %v1363
    %v2436 = vunpack.c.l.b16 %v1364
    %v2437 = vunpack.c.l.b16 %v1365
    %v2438 = vunpack.c.l.b16 %v1366
    %v2439 = vunpack.c.l.b16 %v1367
    %v2440 = vunpack.c.l.b16 %v1368
    %v2441 = vunpack.c.l.b16 %v1369
    %v2442 = vunpack.c.l.b16 %v1370
    %v2443 = vunpack.c.l.b16 %v1371
    %v2444 = vunpack.c.l.b16 %v1372
    %v2445 = vunpack.c.l.b16 %v1373
    %v2446 = vunpack.c.l.b16 %v1374
    %v2447 = vunpack.c.l.b16 %v1375
    %v2448 = vunpack.c.l.b16 %v1376
    %v2449 = vunpack.c.l.b16 %v1377
    %v2450 = vunpack.c.l.b16 %v1378
    %v2451 = vunpack.c.l.b16 %v1379
    %v2452 = vunpack.c.l.b16 %v1380
    %v2453 = vunpack.c.l.b16 %v1381
    %v2454 = vunpack.c.l.b16 %v1382
    %v2455 = vunpack.c.l.b16 %v1383
    %v2456 = vunpack.c.l.b16 %v1384
    %v2457 = vunpack.c.l.b16 %v1385
    %v2458 = vunpack.c.l.b16 %v1386
    %v2459 = vunpack.c.l.b16 %v1387
    %v2460 = vunpack.c.l.b16 %v1388
    %v2461 = vunpack.c.l.b16 %v1389
    %v2462 = vunpack.c.l.b16 %v1390
    %v2463 = vunpack.c.l.b16 %v1391
    %v2464 = vunpack.c.l.b16 %v1392
    %v2465 = vunpack.c.l.b16 %v1393
    %v2466 = vunpack.c.l.b16 %v1394
    %v2467 = vunpack.c.l.b16 %v1395
    %v2468 = vunpack.c.l.b16 %v1396
    %v2469 = vunpack.c.l.b16 %v1397
    %v2470 = vunpack.c.l.b16 %v1398
    %v2471 = vunpack.c.l.b16 %v1399
    %v2472 = vunpack.c.l.b16 %v1400
    %v2473 = vunpack.c.l.b16 %v1401
    %v2474 = vunpack.c.l.b16 %v1402
    %v2475 = vunpack.c.l.b16 %v1403
    %v2476 = vunpack.c.l.b16 %v1404
    %v2477 = vunpack.c.l.b16 %v1405
    %v2478 = vunpack.c.l.b16 %v1406
    %v2479 = vunpack.c.l.b16 %v1407
    %v2480 = vunpack.c.l.b16 %v1408
    %v2481 = vunpack.c.l.b16 %v1409
    %v2482 = vunpack.c.l.b16 %v1410
    %v2483 = vunpack.c.l.b16 %v1411
    %v2484 = vunpack.c.l.b16 %v1412
    %v2485 = vunpack.c.l.b16 %v1413
    %v2486 = vunpack.c.l.b16 %v1414
    %v2487 = vunpack.c.l.b16 %v1415
    %v2488 = vunpack.c.l.b16 %v1416
    %v2489 = vunpack.c.l.b16 %v1417
    %v2490 = vunpack.c.l.b16 %v1418
    %v2491 = vunpack.c.l.b16 %v1419
    %v2492 = vunpack.c.l.b16 %v1420
    %v2493 = vunpack.c.l.b16 %v1421
    %v2494 = vunpack.c.l.b16 %v1422
    %v2495 = vunpack.c.l.b16 %v1423
    %v2496 = vunpack.c.l.b16 %v1424
    %v2497 = vunpack.c.l.b16 %v1425
    %v2498 = vunpack.c.l.b16 %v1426
    %v2499 = vunpack.c.l.b16 %v1427
    %v2500 = vunpack.c.l.b16 %v1428
    %v2501 = vunpack.c.l.b16 %v1429
    %v2502 = vunpack.c.l.b16 %v1430
    %v2503 = vunpack.c.l.b16 %v1431
    %v2504 = vunpack.c.l.b16 %v1432
    %v2505 = vunpack.c.l.b16 %v1433
    %v2506 = vunpack.c.l.b16 %v1434
    %v2507 = vunpack.c.l.b16 %v1435
    %v2508 = vunpack.c.l.b16 %v1436
    %v2509 = vunpack.c.l.b16 %v1437
    %v2510 = vunpack.c.l.b16 %v1438
    %v2511 = vunpack.c.l.b16 %v1439
    %v2512 = vunpack.c.l.b16 %v1440
    %v2513 = vunpack.c.l.b16 %v1441
    %v2514 = vunpack.c.l.b16 %v1442
    %v2515 = vunpack.c.l.b16 %v1443
    %v2516 = vunpack.c.l.b16 %v1444
    %v2517 = vunpack.c.l.b16 %v1445
    %v2518 = vunpack.c.l.b16 %v1446
    %v2519 = vunpack.c.l.b16 %v1447
    %v2520 = vunpack.c.l.b16 %v1448
    %v2521 = vunpack.c.l.b16 %v1449
    %v2522 = vunpack.c.l.b16 %v1450
    %v2523 = vunpack.c.l.b16 %v1451
    %v2524 = vunpack.c.l.b16 %v1452
    %v2525 = vunpack.c.l.b16 %v1453
    %v2526 = vunpack.c.l.b16 %v1454
    %v2527 = vunpack.c.l.b16 %v1455
    %v2528 = vunpack.c.l.b16 %v1456
    %v2529 = vunpack.c.l.b16 %v1457
    %v2530 = vunpack.c.l.b16 %v1458
    %v2531 = vunpack.c.l.b16 %v1459
    %v2532 = vunpack.c.l.b16 %v1460
    %v2533 = vunpack.c.l.b16 %v1461
    %v2534 = vunpack.c.l.b16 %v1462
    %v2535 = vunpack.c.l.b16 %v1463
    %v2536 = vunpack.c.l.b16 %v1464
    %v2537 = vunpack.c.l.b16 %v1465
    %v2538 = vunpack.c.l.b16 %v1466
    %v2539 = vunpack.c.l.b16 %v1467
    %v2540 = vunpack.c.l.b16 %v1468
    %v2541 = vunpack.c.l.b16 %v1469
    %v2542 = vunpack.c.l.b16 %v1470
    %v2543 = vunpack.c.l.b16 %v1471
    %v2544 = vunpack.c.l.b16 %v1472
    %v2545 = vunpack.c.l.b16 %v1473
    %v2546 = vunpack.c.l.b16 %v1474
    %v2547 = vunpack.c.l.b16 %v1475
    %v2548 = vunpack.c.l.b16 %v1476
    %v2549 = vunpack.c.l.b16 %v1477
    %v2550 = vunpack.c.l.b16 %v1478
    %v2551 = vunpack.c.l.b16 %v1479
    %v2552 = vunpack.c.l.b16 %v1480
    %v2553 = vunpack.c.l.b16 %v1481
    %v2554 = vunpack.c.l.b16 %v1482
    %v2555 = vunpack.c.l.b16 %v1483
    %v2556 = vunpack.c.l.b16 %v1484
    %v2557 = vunpack.c.l.b16 %v1485
    %v2558 = vunpack.c.l.b16 %v1486
    %v2559 = vunpack.c.l.b16 %v1487
    %v2560 = vunpack.c.l.b16 %v1488
    %v2561 = vunpack.c.l.b16 %v1489
    %v2562 = vunpack.c.l.b16 %v1490
    %v2563 = vunpack.c.l.b16 %v1491
    %v2564 = vunpack.c.l.b16 %v1492
    %v2565 = vunpack.c.l.b16 %v1493
    %v2566 = vunpack.c.l.b16 %v1494
    %v2567 = vunpack.c.l.b16 %v1495
    %v2568 = vunpack.c.l.b16 %v1496
    %v2569 = vunpack.c.l.b16 %v1497
    %v2570 = vunpack.c.l.b16 %v1498
    %v2571 = vunpack.c.l.b16 %v1499
    %v2572 = vunpack.c.l.b16 %v1500
    %v2573 = vunpack.c.l.b16 %v1501
    %v2574 = vunpack.c.l.b16 %v1502
    %v2575 = vunpack.c.l.b16 %v1503
    %v2576 = vunpack.c.l.b16 %v1504
    %v2577 = vunpack.c.l.b16 %v1505
    %v2578 = vunpack.c.l.b16 %v1506
    %v2579 = vunpack.c.l.b16 %v1507
    %v2580 = vunpack.c.l.b16 %v1508
    %v2581 = vunpack.c.l.b16 %v1509
    %v2582 = vunpack.c.l.b16 %v1510
    %v2583 = vunpack.c.l.b16 %v1511
    %v2584 = vunpack.c.l.b16 %v1512
    %v2585 = vunpack.c.l.b16 %v1513
    %v2586 = vunpack.c.l.b16 %v1514
    %v2587 = vunpack.c.l.b16 %v1515
    %v2588 = vunpack.c.l.b16 %v1516
    %v2589 = vunpack.c.l.b16 %v1517
    %v2590 = vunpack.c.l.b16 %v1518
    %v2591 = vunpack.c.l.b16 %v1519
    %v2592 = vunpack.c.l.b16 %v1520
    %v2593 = vunpack.c.l.b16 %v1521
    %v2594 = vunpack.c.l.b16 %v1522
    %v2595 = vunpack.c.l.b16 %v1523
    %v2596 = vunpack.c.l.b16 %v1524
    %v2597 = vunpack.c.l.b16 %v1525
    %v2598 = vunpack.c.l.b16 %v1526
    %v2599 = vunpack.c.l.b16 %v1527
    %v2600 = vunpack.c.l.b16 %v1528
    %v2601 = vunpack.c.l.b16 %v1529
    %v2602 = vunpack.c.l.b16 %v1530
    %v2603 = vunpack.c.l.b16 %v1531
    %v2604 = vunpack.c.l.b16 %v1532
    %v2605 = vunpack.c.l.b16 %v1533
    %v2606 = vunpack.c.l.b16 %v1534
    %v2607 = vunpack.c.l.b16 %v1535
    %v2608 = vunpack.c.l.b16 %v1536
    %v2609 = vunpack.c.l.b16 %v1537
    %v2610 = vunpack.c.l.b16 %v1538
    %v2611 = vunpack.c.l.b16 %v1539
    %v2612 = vunpack.c.l.b16 %v1540
    %v2613 = vunpack.c.l.b16 %v1541
    %v2614 = vunpack.c.l.b16 %v1542
    %v2615 = vunpack.c.l.b16 %v1543
    %v2616 = vunpack.c.l.b16 %v1544
    %v2617 = vunpack.c.l.b16 %v1545
    %v2618 = vunpack.c.l.b16 %v1546
    %v2619 = vunpack.c.l.b16 %v1547
    %v2620 = vunpack.c.l.b16 %v1548
    %v2621 = vunpack.c.l.b16 %v1549
    %v2622 = vunpack.c.l.b16 %v1550
    %v2623 = vunpack.c.l.b16 %v1551
    %v2624 = vunpack.c.l.b16 %v1552
    %v2625 = vunpack.c.l.b16 %v1553
    %v2626 = vunpack.c.l.b16 %v1554
    %v2627 = vunpack.c.l.b16 %v1555
    %v2628 = vunpack.c.l.b16 %v1556
    %v2629 = vunpack.c.l.b16 %v1557
    %v2630 = vunpack.c.l.b16 %v1558
    %v2631 = vunpack.c.l.b16 %v1559
    %v2632 = vunpack.c.l.b16 %v1560
    %v2633 = vunpack.c.l.b16 %v1561
    %v2634 = vunpack.c.l.b16 %v1562
    %v2635 = vpack.c.b16 %v2156, %v2155
    %v2636 = vpack.c.b16 %v2158, %v2157
    %v2637 = vpack.c.b16 %v2160, %v2159
    %v2638 = vpack.c.b16 %v2162, %v2161
    %v2639 = vpack.c.b16 %v2164, %v2163
    %v2640 = vpack.c.b16 %v2166, %v2165
    %v2641 = vpack.c.b16 %v2168, %v2167
    %v2642 = vpack.c.b16 %v2170, %v2169
    %v2643 = vpack.c.b16 %v2172, %v2171
    %v2644 = vpack.c.b16 %v2174, %v2173
    %v2645 = vpack.c.b16 %v2176, %v2175
    %v2646 = vpack.c.b16 %v2178, %v2177
    %v2647 = vpack.c.b16 %v2180, %v2179
    %v2648 = vpack.c.b16 %v2182, %v2181
    %v2649 = vpack.c.b16 %v2184, %v2183
    %v2650 = vpack.c.b16 %v2186, %v2185
    %v2651 = vpack.c.b16 %v2188, %v2187
    %v2652 = vpack.c.b16 %v2190, %v2189
    %v2653 = vpack.c.b16 %v2192, %v2191
    %v2654 = vpack.c.b16 %v2194, %v2193
    %v2655 = vpack.c.b16 %v2196, %v2195
    %v2656 = vpack.c.b16 %v2198, %v2197
    %v2657 = vpack.c.b16 %v2200, %v2199
    %v2658 = vpack.c.b16 %v2202, %v2201
    %v2659 = vpack.c.b16 %v2204, %v2203
    %v2660 = vpack.c.b16 %v2206, %v2205
    %v2661 = vpack.c.b16 %v2208, %v2207
    %v2662 = vpack.c.b16 %v2210, %v2209
    %v2663 = vpack.c.b16 %v2212, %v2211
    %v2664 = vpack.c.b16 %v2214, %v2213
    %v2665 = vpack.c.b16 %v2216, %v2215
    %v2666 = vpack.c.b16 %v2218, %v2217
    %v2667 = vpack.c.b16 %v2220, %v2219
    %v2668 = vpack.c.b16 %v2222, %v2221
    %v2669 = vpack.c.b16 %v2224, %v2223
    %v2670 = vpack.c.b16 %v2226, %v2225
    %v2671 = vpack.c.b16 %v2228, %v2227
    %v2672 = vpack.c.b16 %v2230, %v2229
    %v2673 = vpack.c.b16 %v2232, %v2231
    %v2674 = vpack.c.b16 %v2234, %v2233
    %v2675 = vpack.c.b16 %v2236, %v2235
    %v2676 = vpack.c.b16 %v2238, %v2237
    %v2677 = vpack.c.b16 %v2240, %v2239
    %v2678 = vpack.c.b16 %v2242, %v2241
    %v2679 = vpack.c.b16 %v2244, %v2243
    %v2680 = vpack.c.b16 %v2246, %v2245
    %v2681 = vpack.c.b16 %v2248, %v2247
    %v2682 = vpack.c.b16 %v2250, %v2249
    %v2683 = vpack.c.b16 %v2252, %v2251
    %v2684 = vpack.c.b16 %v2254, %v2253
    %v2685 = vpack.c.b16 %v2256, %v2255
    %v2686 = vpack.c.b16 %v2258, %v2257
    %v2687 = vpack.c.b16 %v2260, %v2259
    %v2688 = vpack.c.b16 %v2262, %v2261
    %v2689 = vpack.c.b16 %v2264, %v2263
    %v2690 = vpack.c.b16 %v2266, %v2265
    %v2691 = vpack.c.b16 %v2268, %v2267
    %v2692 = vpack.c.b16 %v2270, %v2269
    %v2693 = vpack.c.b16 %v2272, %v2271
    %v2694 = vpack.c.b16 %v2274, %v2273
    %v2695 = vpack.c.b16 %v2276, %v2275
    %v2696 = vpack.c.b16 %v2278, %v2277
    %v2697 = vpack.c.b16 %v2280, %v2279
    %v2698 = vpack.c.b16 %v2282, %v2281
    %v2699 = vpack.c.b16 %v2284, %v2283
    %v2700 = vpack.c.b16 %v2286, %v2285
    %v2701 = vpack.c.b16 %v2288, %v2287
    %v2702 = vpack.c.b16 %v2290, %v2289
    %v2703 = vpack.c.b16 %v2292, %v2291
    %v2704 = vpack.c.b16 %v2294, %v2293
    %v2705 = vpack.c.b16 %v2296, %v2295
    %v2706 = vpack.c.b16 %v2298, %v2297
    %v2707 = vpack.c.b16 %v2300, %v2299
    %v2708 = vpack.c.b16 %v2302, %v2301
    %v2709 = vpack.c.b16 %v2304, %v2303
    %v2710 = vpack.c.b16 %v2306, %v2305
    %v2711 = vpack.c.b16 %v2308, %v2307
    %v2712 = vpack.c.b16 %v2310, %v2309
    %v2713 = vpack.c.b16 %v2312, %v2311
    %v2714 = vpack.c.b16 %v2314, %v2313
    %v2715 = vpack.c.b16 %v2316, %v2315
    %v2716 = vpack.c.b16 %v2318, %v2317
    %v2717 = vpack.c.b16 %v2320, %v2319
    %v2718 = vpack.c.b16 %v2322, %v2321
    %v2719 = vpack.c.b16 %v2324, %v2323
    %v2720 = vpack.c.b16 %v2326, %v2325
    %v2721 = vpack.c.b16 %v2328, %v2327
    %v2722 = vpack.c.b16 %v2330, %v2329
    %v2723 = vpack.c.b16 %v2332, %v2331
    %v2724 = vpack.c.b16 %v2334, %v2333
    %v2725 = vpack.c.b16 %v2336, %v2335
    %v2726 = vpack.c.b16 %v2338, %v2337
    %v2727 = vpack.c.b16 %v2340, %v2339
    %v2728 = vpack.c.b16 %v2342, %v2341
    %v2729 = vpack.c.b16 %v2344, %v2343
    %v2730 = vpack.c.b16 %v2346, %v2345
    %v2731 = vpack.c.b16 %v2348, %v2347
    %v2732 = vpack.c.b16 %v2350, %v2349
    %v2733 = vpack.c.b16 %v2352, %v2351
    %v2734 = vpack.c.b16 %v2354, %v2353
    %v2735 = vpack.c.b16 %v2356, %v2355
    %v2736 = vpack.c.b16 %v2358, %v2357
    %v2737 = vpack.c.b16 %v2360, %v2359
    %v2738 = vpack.c.b16 %v2362, %v2361
    %v2739 = vpack.c.b16 %v2364, %v2363
    %v2740 = vpack.c.b16 %v2366, %v2365
    %v2741 = vpack.c.b16 %v2368, %v2367
    %v2742 = vpack.c.b16 %v2370, %v2369
    %v2743 = vpack.c.b16 %v2372, %v2371
    %v2744 = vpack.c.b16 %v2374, %v2373
    %v2745 = vpack.c.b16 %v2376, %v2375
    %v2746 = vpack.c.b16 %v2378, %v2377
    %v2747 = vpack.c.b16 %v2380, %v2379
    %v2748 = vpack.c.b16 %v2382, %v2381
    %v2749 = vpack.c.b16 %v2384, %v2383
    %v2750 = vpack.c.b16 %v2386, %v2385
    %v2751 = vpack.c.b16 %v2388, %v2387
    %v2752 = vpack.c.b16 %v2390, %v2389
    %v2753 = vpack.c.b16 %v2392, %v2391
    %v2754 = vpack.c.b16 %v2394, %v2393
    %v2755 = vpack.c.b16 %v2396, %v2395
    %v2756 = vpack.c.b16 %v2398, %v2397
    %v2757 = vpack.c.b16 %v2400, %v2399
    %v2758 = vpack.c.b16 %v2402, %v2401
    %v2759 = vpack.c.b16 %v2404, %v2403
    %v2760 = vpack.c.b16 %v2406, %v2405
    %v2761 = vpack.c.b16 %v2408, %v2407
    %v2762 = vpack.c.b16 %v2410, %v2409
    %v2763 = vpack.c.b16 %v2412, %v2411
    %v2764 = vpack.c.b16 %v2414, %v2413
    %v2765 = vpack.c.b16 %v2416, %v2415
    %v2766 = vpack.c.b16 %v2418, %v2417
    %v2767 = vpack.c.b16 %v2420, %v2419
    %v2768 = vpack.c.b16 %v2422, %v2421
    %v2769 = vpack.c.b16 %v2424, %v2423
    %v2770 = vpack.c.b16 %v2426, %v2425
    %v2771 = vpack.c.b16 %v2428, %v2427
    %v2772 = vpack.c.b16 %v2430, %v2429
    %v2773 = vpack.c.b16 %v2432, %v2431
    %v2774 = vpack.c.b16 %v2434, %v2433
    %v2775 = vpack.c.b16 %v2436, %v2435
    %v2776 = vpack.c.b16 %v2438, %v2437
    %v2777 = vpack.c.b16 %v2440, %v2439
    %v2778 = vpack.c.b16 %v2442, %v2441
    %v2779 = vpack.c.b16 %v2444, %v2443
    %v2780 = vpack.c.b16 %v2446, %v2445
    %v2781 = vpack.c.b16 %v2448, %v2447
    %v2782 = vpack.c.b16 %v2450, %v2449
    %v2783 = vpack.c.b16 %v2452, %v2451
    %v2784 = vpack.c.b16 %v2454, %v2453
    %v2785 = vpack.c.b16 %v2456, %v2455
    %v2786 = vpack.c.b16 %v2458, %v2457
    %v2787 = vpack.c.b16 %v2460, %v2459
    %v2788 = vpack.c.b16 %v2462, %v2461
    %v2789 = vpack.c.b16 %v2464, %v2463
    %v2790 = vpack.c.b16 %v2466, %v2465
    %v2791 = vpack.c.b16 %v2468, %v2467
    %v2792 = vpack.c.b16 %v2470, %v2469
    %v2793 = vpack.c.b16 %v2472, %v2471
    %v2794 = vpack.c.b16 %v2474, %v2473
    %v2795 = vpack.c.b16 %v2476, %v2475
    %v2796 = vpack.c.b16 %v2478, %v2477
    %v2797 = vpack.c.b16 %v2480, %v2479
    %v2798 = vpack.c.b16 %v2482, %v2481
    %v2799 = vpack.c.b16 %v2484, %v2483
    %v2800 = vpack.c.b16 %v2486, %v2485
    %v2801 = vpack.c.b16 %v2488, %v2487
    %v2802 = vpack.c.b16 %v2490, %v2489
    %v2803 = vpack.c.b16 %v2492, %v2491
    %v2804 = vpack.c.b16 %v2494, %v2493
    %v2805 = vpack.c.b16 %v2496, %v2495
    %v2806 = vpack.c.b16 %v2498, %v2497
    %v2807 = vpack.c.b16 %v2500, %v2499
    %v2808 = vpack.c.b16 %v2502, %v2501
    %v2809 = vpack.c.b16 %v2504, %v2503
    %v2810 = vpack.c.b16 %v2506, %v2505
    %v2811 = vpack.c.b16 %v2508, %v2507
    %v2812 = vpack.c.b16 %v2510, %v2509
    %v2813 = vpack.c.b16 %v2512, %v2511
    %v2814 = vpack.c.b16 %v2514, %v2513
    %v2815 = vpack.c.b16 %v2516, %v2515
    %v2816 = vpack.c.b16 %v2518, %v2517
    %v2817 = vpack.c.b16 %v2520, %v2519
    %v2818 = vpack.c.b16 %v2522, %v2521
    %v2819 = vpack.c.b16 %v2524, %v2523
    %v2820 = vpack.c.b16 %v2526, %v2525
    %v2821 = vpack.c.b16 %v2528, %v2527
    %v2822 = vpack.c.b16 %v2530, %v2529
    %v2823 = vpack.c.b16 %v2532, %v2531
    %v2824 = vpack.c.b16 %v2534, %v2533
    %v2825 = vpack.c.b16 %v2536, %v2535
    %v2826 = vpack.c.b16 %v2538, %v2537
    %v2827 = vpack.c.b16 %v2540, %v2539
    %v2828 = vpack.c.b16 %v2542, %v2541
    %v2829 = vpack.c.b16 %v2544, %v2543
    %v2830 = vpack.c.b16 %v2546, %v2545
    %v2831 = vpack.c.b16 %v2548, %v2547
    %v2832 = vpack.c.b16 %v2550, %v2549
    %v2833 = vpack.c.b16 %v2552, %v2551
    %v2834 = vpack.c.b16 %v2554, %v2553
    %v2835 = vpack.c.b16 %v2556, %v2555
    %v2836 = vpack.c.b16 %v2558, %v2557
    %v2837 = vpack.c.b16 %v2560, %v2559
    %v2838 = vpack.c.b16 %v2562, %v2561
    %v2839 = vpack.c.b16 %v2564, %v2563
    %v2840 = vpack.c.b16 %v2566, %v2565
    %v2841 = vpack.c.b16 %v2568, %v2567
    %v2842 = vpack.c.b16 %v2570, %v2569
    %v2843 = vpack.c.b16 %v2572, %v2571
    %v2844 = vpack.c.b16 %v2574, %v2573
    %v2845 = vpack.c.b16 %v2576, %v2575
    %v2846 = vpack.c.b16 %v2578, %v2577
    %v2847 = vpack.c.b16 %v2580, %v2579
    %v2848 = vpack.c.b16 %v2582, %v2581
    %v2849 = vpack.c.b16 %v2584, %v2583
    %v2850 = vpack.c.b16 %v2586, %v2585
    %v2851 = vpack.c.b16 %v2588, %v2587
    %v2852 = vpack.c.b16 %v2590, %v2589
    %v2853 = vpack.c.b16 %v2592, %v2591
    %v2854 = vpack.c.b16 %v2594, %v2593
    %v2855 = vpack.c.b16 %v2596, %v2595
    %v2856 = vpack.c.b16 %v2598, %v2597
    %v2857 = vpack.c.b16 %v2600, %v2599
    %v2858 = vpack.c.b16 %v2602, %v2601
    %v2859 = vpack.c.b16 %v2604, %v2603
    %v2860 = vpack.c.b16 %v2606, %v2605
    %v2861 = vpack.c.b16 %v2608, %v2607
    %v2862 = vpack.c.b16 %v2610, %v2609
    %v2863 = vpack.c.b16 %v2612, %v2611
    %v2864 = vpack.c.b16 %v2614, %v2613
    %v2865 = vpack.c.b16 %v2616, %v2615
    %v2866 = vpack.c.b16 %v2618, %v2617
    %v2867 = vpack.c.b16 %v2620, %v2619
    %v2868 = vpack.c.b16 %v2622, %v2621
    %v2869 = vpack.c.b16 %v2624, %v2623
    %v2870 = vpack.c.b16 %v2626, %v2625
    %v2871 = vpack.c.b16 %v2628, %v2627
    %v2872 = vpack.c.b16 %v2630, %v2629
    %v2873 = vpack.c.b16 %v2632, %v2631
    %v2874 = vpack.c.b16 %v2634, %v2633
    %3115 = vmatprep.subr.bf16.mxu0 0
    %3116 = vmatpush1.bf16.msra.mxu0 %v2642
    %3117 = vmatprep.subr.bf16.mxu0 0
    %3118 = vmatpush1.bf16.msra.mxu0 %v2641
    %3119 = vmatprep.subr.bf16.mxu0 0
    %3120 = vmatpush1.bf16.msra.mxu0 %v2640
    %3121 = vmatprep.subr.bf16.mxu0 0
    %3122 = vmatpush1.bf16.msra.mxu0 %v2639
    %3123 = vmatprep.subr.bf16.mxu0 0
    %3124 = vmatpush1.bf16.msra.mxu0 %v2638
    %3125 = vmatprep.subr.bf16.mxu0 0
    %3126 = vmatpush1.bf16.msra.mxu0 %v2637
    %3127 = vmatprep.subr.bf16.mxu0 0
    %3128 = vmatpush1.bf16.msra.mxu0 %v2636
    %3129 = vmatprep.subr.bf16.mxu0 0
    %3130 = vmatpush1.bf16.msra.mxu0 %v2635
    %3131 = vmatprep.subr.bf16.mxu0 0
    %3132 = vmatpush2.bf16.msra.mxu0 %v2650
    %3133 = vmatprep.subr.bf16.mxu0 0
    %3134 = vmatpush2.bf16.msra.mxu0 %v2649
    %3135 = vmatprep.subr.bf16.mxu0 0
    %3136 = vmatpush2.bf16.msra.mxu0 %v2648
    %3137 = vmatprep.subr.bf16.mxu0 0
    %3138 = vmatpush2.bf16.msra.mxu0 %v2647
    %3139 = vmatprep.subr.bf16.mxu0 0
    %3140 = vmatpush2.bf16.msra.mxu0 %v2646
    %3141 = vmatprep.subr.bf16.mxu0 0
    %3142 = vmatpush2.bf16.msra.mxu0 %v2645
    %3143 = vmatprep.subr.bf16.mxu0 0
    %3144 = vmatpush2.bf16.msra.mxu0 %v2644
    %3145 = vmatprep.subr.bf16.mxu0 0
    %3146 = vmatpush2.bf16.msra.mxu0 %v2643
    %3147 = vmatprep.mubr.bf16.mxu0 %v1616
    %3148 = vmatmul.mubr.bf16.gmra.mxu0 %v1615
    %v3149 = vpop.f32.mrf.mxu0
    %v3150 = vadd.f32 %v1568, %v3149
    %v3151 = vpop.f32.mrf.mxu0
    %v3152 = vpop.f32.mrf.mxu0
    %v3153 = vpop.f32.mrf.mxu0
    %3154 = vdwg.mxu0
    %3155 = vmatprep.subr.bf16.mxu0 0
    %3156 = vmatpush1.bf16.msra.mxu0 %v2658
    %3157 = vmatprep.subr.bf16.mxu0 0
    %3158 = vmatpush1.bf16.msra.mxu0 %v2657
    %3159 = vmatprep.subr.bf16.mxu0 0
    %3160 = vmatpush1.bf16.msra.mxu0 %v2656
    %3161 = vmatprep.subr.bf16.mxu0 0
    %3162 = vmatpush1.bf16.msra.mxu0 %v2655
    %3163 = vmatprep.subr.bf16.mxu0 0
    %3164 = vmatpush1.bf16.msra.mxu0 %v2654
    %3165 = vmatprep.subr.bf16.mxu0 0
    %3166 = vmatpush1.bf16.msra.mxu0 %v2653
    %3167 = vmatprep.subr.bf16.mxu0 0
    %3168 = vmatpush1.bf16.msra.mxu0 %v2652
    %3169 = vmatprep.subr.bf16.mxu0 0
    %3170 = vmatpush1.bf16.msra.mxu0 %v2651
    %3171 = vmatprep.subr.bf16.mxu0 0
    %3172 = vmatpush2.bf16.msra.mxu0 %v2666
    %3173 = vmatprep.subr.bf16.mxu0 0
    %3174 = vmatpush2.bf16.msra.mxu0 %v2665
    %3175 = vmatprep.subr.bf16.mxu0 0
    %3176 = vmatpush2.bf16.msra.mxu0 %v2664
    %3177 = vmatprep.subr.bf16.mxu0 0
    %3178 = vmatpush2.bf16.msra.mxu0 %v2663
    %3179 = vmatprep.subr.bf16.mxu0 0
    %3180 = vmatpush2.bf16.msra.mxu0 %v2662
    %3181 = vmatprep.subr.bf16.mxu0 0
    %3182 = vmatpush2.bf16.msra.mxu0 %v2661
    %3183 = vmatprep.subr.bf16.mxu0 0
    %3184 = vmatpush2.bf16.msra.mxu0 %v2660
    %3185 = vmatprep.subr.bf16.mxu0 0
    %3186 = vmatpush2.bf16.msra.mxu0 %v2659
    %3187 = vmatprep.mubr.bf16.mxu0 %v1618
    %3188 = vmatmul.mubr.bf16.gmra.mxu0 %v1617
    %v3189 = vpop.f32.mrf.mxu0
    %v3190 = vadd.f32 %v3150, %v3189
    %v3191 = vpop.f32.mrf.mxu0
    %v3192 = vpop.f32.mrf.mxu0
    %v3193 = vpop.f32.mrf.mxu0
    %3194 = vdwg.mxu0
    %3195 = vmatprep.subr.bf16.mxu0 0
    %3196 = vmatpush1.bf16.msra.mxu0 %v2674
    %3197 = vmatprep.subr.bf16.mxu0 0
    %3198 = vmatpush1.bf16.msra.mxu0 %v2673
    %3199 = vmatprep.subr.bf16.mxu0 0
    %3200 = vmatpush1.bf16.msra.mxu0 %v2672
    %3201 = vmatprep.subr.bf16.mxu0 0
    %3202 = vmatpush1.bf16.msra.mxu0 %v2671
    %3203 = vmatprep.subr.bf16.mxu0 0
    %3204 = vmatpush1.bf16.msra.mxu0 %v2670
    %3205 = vmatprep.subr.bf16.mxu0 0
    %3206 = vmatpush1.bf16.msra.mxu0 %v2669
    %3207 = vmatprep.subr.bf16.mxu0 0
    %3208 = vmatpush1.bf16.msra.mxu0 %v2668
    %3209 = vmatprep.subr.bf16.mxu0 0
    %3210 = vmatpush1.bf16.msra.mxu0 %v2667
    %3211 = vmatprep.subr.bf16.mxu0 0
    %3212 = vmatpush2.bf16.msra.mxu0 %v2682
    %3213 = vmatprep.subr.bf16.mxu0 0
    %3214 = vmatpush2.bf16.msra.mxu0 %v2681
    %3215 = vmatprep.subr.bf16.mxu0 0
    %3216 = vmatpush2.bf16.msra.mxu0 %v2680
    %3217 = vmatprep.subr.bf16.mxu0 0
    %3218 = vmatpush2.bf16.msra.mxu0 %v2679
    %3219 = vmatprep.subr.bf16.mxu0 0
    %3220 = vmatpush2.bf16.msra.mxu0 %v2678
    %3221 = vmatprep.subr.bf16.mxu0 0
    %3222 = vmatpush2.bf16.msra.mxu0 %v2677
    %3223 = vmatprep.subr.bf16.mxu0 0
    %3224 = vmatpush2.bf16.msra.mxu0 %v2676
    %3225 = vmatprep.subr.bf16.mxu0 0
    %3226 = vmatpush2.bf16.msra.mxu0 %v2675
    %3227 = vmatprep.mubr.bf16.mxu0 %v1620
    %3228 = vmatmul.mubr.bf16.gmra.mxu0 %v1619
    %v3229 = vpop.f32.mrf.mxu0
    %v3230 = vadd.f32 %v3190, %v3229
    %v3231 = vpop.f32.mrf.mxu0
    %v3232 = vpop.f32.mrf.mxu0
    %v3233 = vpop.f32.mrf.mxu0
    %3234 = vdwg.mxu0
    %3235 = vmatprep.subr.bf16.mxu0 0
    %3236 = vmatpush1.bf16.msra.mxu0 %v2690
    %3237 = vmatprep.subr.bf16.mxu0 0
    %3238 = vmatpush1.bf16.msra.mxu0 %v2689
    %3239 = vmatprep.subr.bf16.mxu0 0
    %3240 = vmatpush1.bf16.msra.mxu0 %v2688
    %3241 = vmatprep.subr.bf16.mxu0 0
    %3242 = vmatpush1.bf16.msra.mxu0 %v2687
    %3243 = vmatprep.subr.bf16.mxu0 0
    %3244 = vmatpush1.bf16.msra.mxu0 %v2686
    %3245 = vmatprep.subr.bf16.mxu0 0
    %3246 = vmatpush1.bf16.msra.mxu0 %v2685
    %3247 = vmatprep.subr.bf16.mxu0 0
    %3248 = vmatpush1.bf16.msra.mxu0 %v2684
    %3249 = vmatprep.subr.bf16.mxu0 0
    %3250 = vmatpush1.bf16.msra.mxu0 %v2683
    %3251 = vmatprep.subr.bf16.mxu0 0
    %3252 = vmatpush2.bf16.msra.mxu0 %v2698
    %3253 = vmatprep.subr.bf16.mxu0 0
    %3254 = vmatpush2.bf16.msra.mxu0 %v2697
    %3255 = vmatprep.subr.bf16.mxu0 0
    %3256 = vmatpush2.bf16.msra.mxu0 %v2696
    %3257 = vmatprep.subr.bf16.mxu0 0
    %3258 = vmatpush2.bf16.msra.mxu0 %v2695
    %3259 = vmatprep.subr.bf16.mxu0 0
    %3260 = vmatpush2.bf16.msra.mxu0 %v2694
    %3261 = vmatprep.subr.bf16.mxu0 0
    %3262 = vmatpush2.bf16.msra.mxu0 %v2693
    %3263 = vmatprep.subr.bf16.mxu0 0
    %3264 = vmatpush2.bf16.msra.mxu0 %v2692
    %3265 = vmatprep.subr.bf16.mxu0 0
    %3266 = vmatpush2.bf16.msra.mxu0 %v2691
    %3267 = vmatprep.mubr.bf16.mxu0 %v1622
    %3268 = vmatmul.mubr.bf16.gmra.mxu0 %v1621
    %v3269 = vpop.f32.mrf.mxu0
    %v3270 = vadd.f32 %v3230, %v3269
    %v3271 = vpop.f32.mrf.mxu0
    %v3272 = vpop.f32.mrf.mxu0
    %v3273 = vpop.f32.mrf.mxu0
    %3274 = vdwg.mxu0
    %3275 = vmatprep.subr.bf16.mxu0 0
    %3276 = vmatpush1.bf16.msra.mxu0 %v2706
    %3277 = vmatprep.subr.bf16.mxu0 0
    %3278 = vmatpush1.bf16.msra.mxu0 %v2705
    %3279 = vmatprep.subr.bf16.mxu0 0
    %3280 = vmatpush1.bf16.msra.mxu0 %v2704
    %3281 = vmatprep.subr.bf16.mxu0 0
    %3282 = vmatpush1.bf16.msra.mxu0 %v2703
    %3283 = vmatprep.subr.bf16.mxu0 0
    %3284 = vmatpush1.bf16.msra.mxu0 %v2702
    %3285 = vmatprep.subr.bf16.mxu0 0
    %3286 = vmatpush1.bf16.msra.mxu0 %v2701
    %3287 = vmatprep.subr.bf16.mxu0 0
    %3288 = vmatpush1.bf16.msra.mxu0 %v2700
    %3289 = vmatprep.subr.bf16.mxu0 0
    %3290 = vmatpush1.bf16.msra.mxu0 %v2699
    %3291 = vmatprep.subr.bf16.mxu0 0
    %3292 = vmatpush2.bf16.msra.mxu0 %v2714
    %3293 = vmatprep.subr.bf16.mxu0 0
    %3294 = vmatpush2.bf16.msra.mxu0 %v2713
    %3295 = vmatprep.subr.bf16.mxu0 0
    %3296 = vmatpush2.bf16.msra.mxu0 %v2712
    %3297 = vmatprep.subr.bf16.mxu0 0
    %3298 = vmatpush2.bf16.msra.mxu0 %v2711
    %3299 = vmatprep.subr.bf16.mxu0 0
    %3300 = vmatpush2.bf16.msra.mxu0 %v2710
    %3301 = vmatprep.subr.bf16.mxu0 0
    %3302 = vmatpush2.bf16.msra.mxu0 %v2709
    %3303 = vmatprep.subr.bf16.mxu0 0
    %3304 = vmatpush2.bf16.msra.mxu0 %v2708
    %3305 = vmatprep.subr.bf16.mxu0 0
    %3306 = vmatpush2.bf16.msra.mxu0 %v2707
    %3307 = vmatprep.mubr.bf16.mxu0 %v1624
    %3308 = vmatmul.mubr.bf16.gmra.mxu0 %v1623
    %v3309 = vpop.f32.mrf.mxu0
    %v3310 = vadd.f32 %v3270, %v3309
    %v3311 = vpop.f32.mrf.mxu0
    %v3312 = vpop.f32.mrf.mxu0
    %v3313 = vpop.f32.mrf.mxu0
    %3314 = vdwg.mxu0
    %3315 = vmatprep.subr.bf16.mxu0 0
    %3316 = vmatpush1.bf16.msra.mxu0 %v2722
    %3317 = vmatprep.subr.bf16.mxu0 0
    %3318 = vmatpush1.bf16.msra.mxu0 %v2721
    %3319 = vmatprep.subr.bf16.mxu0 0
    %3320 = vmatpush1.bf16.msra.mxu0 %v2720
    %3321 = vmatprep.subr.bf16.mxu0 0
    %3322 = vmatpush1.bf16.msra.mxu0 %v2719
    %3323 = vmatprep.subr.bf16.mxu0 0
    %3324 = vmatpush1.bf16.msra.mxu0 %v2718
    %3325 = vmatprep.subr.bf16.mxu0 0
    %3326 = vmatpush1.bf16.msra.mxu0 %v2717
    %3327 = vmatprep.subr.bf16.mxu0 0
    %3328 = vmatpush1.bf16.msra.mxu0 %v2716
    %3329 = vmatprep.subr.bf16.mxu0 0
    %3330 = vmatpush1.bf16.msra.mxu0 %v2715
    %3331 = vmatprep.subr.bf16.mxu0 0
    %3332 = vmatpush2.bf16.msra.mxu0 %v2730
    %3333 = vmatprep.subr.bf16.mxu0 0
    %3334 = vmatpush2.bf16.msra.mxu0 %v2729
    %3335 = vmatprep.subr.bf16.mxu0 0
    %3336 = vmatpush2.bf16.msra.mxu0 %v2728
    %3337 = vmatprep.subr.bf16.mxu0 0
    %3338 = vmatpush2.bf16.msra.mxu0 %v2727
    %3339 = vmatprep.subr.bf16.mxu0 0
    %3340 = vmatpush2.bf16.msra.mxu0 %v2726
    %3341 = vmatprep.subr.bf16.mxu0 0
    %3342 = vmatpush2.bf16.msra.mxu0 %v2725
    %3343 = vmatprep.subr.bf16.mxu0 0
    %3344 = vmatpush2.bf16.msra.mxu0 %v2724
    %3345 = vmatprep.subr.bf16.mxu0 0
    %3346 = vmatpush2.bf16.msra.mxu0 %v2723
    %3347 = vmatprep.mubr.bf16.mxu0 %v1626
    %3348 = vmatmul.mubr.bf16.gmra.mxu0 %v1625
    %v3349 = vpop.f32.mrf.mxu0
    %v3350 = vadd.f32 %v3310, %v3349
    %v3351 = vpop.f32.mrf.mxu0
    %v3352 = vpop.f32.mrf.mxu0
    %v3353 = vpop.f32.mrf.mxu0
    %3354 = vdwg.mxu0
    %3355 = vmatprep.subr.bf16.mxu0 0
    %3356 = vmatpush1.bf16.msra.mxu0 %v2738
    %3357 = vmatprep.subr.bf16.mxu0 0
    %3358 = vmatpush1.bf16.msra.mxu0 %v2737
    %3359 = vmatprep.subr.bf16.mxu0 0
    %3360 = vmatpush1.bf16.msra.mxu0 %v2736
    %3361 = vmatprep.subr.bf16.mxu0 0
    %3362 = vmatpush1.bf16.msra.mxu0 %v2735
    %3363 = vmatprep.subr.bf16.mxu0 0
    %3364 = vmatpush1.bf16.msra.mxu0 %v2734
    %3365 = vmatprep.subr.bf16.mxu0 0
    %3366 = vmatpush1.bf16.msra.mxu0 %v2733
    %3367 = vmatprep.subr.bf16.mxu0 0
    %3368 = vmatpush1.bf16.msra.mxu0 %v2732
    %3369 = vmatprep.subr.bf16.mxu0 0
    %3370 = vmatpush1.bf16.msra.mxu0 %v2731
    %3371 = vmatprep.subr.bf16.mxu0 0
    %3372 = vmatpush2.bf16.msra.mxu0 %v2746
    %3373 = vmatprep.subr.bf16.mxu0 0
    %3374 = vmatpush2.bf16.msra.mxu0 %v2745
    %3375 = vmatprep.subr.bf16.mxu0 0
    %3376 = vmatpush2.bf16.msra.mxu0 %v2744
    %3377 = vmatprep.subr.bf16.mxu0 0
    %3378 = vmatpush2.bf16.msra.mxu0 %v2743
    %3379 = vmatprep.subr.bf16.mxu0 0
    %3380 = vmatpush2.bf16.msra.mxu0 %v2742
    %3381 = vmatprep.subr.bf16.mxu0 0
    %3382 = vmatpush2.bf16.msra.mxu0 %v2741
    %3383 = vmatprep.subr.bf16.mxu0 0
    %3384 = vmatpush2.bf16.msra.mxu0 %v2740
    %3385 = vmatprep.subr.bf16.mxu0 0
    %3386 = vmatpush2.bf16.msra.mxu0 %v2739
    %3387 = vmatprep.mubr.bf16.mxu0 %v1628
    %3388 = vmatmul.mubr.bf16.gmra.mxu0 %v1627
    %v3389 = vpop.f32.mrf.mxu0
    %v3390 = vadd.f32 %v3350, %v3389
    %v3391 = vpop.f32.mrf.mxu0
    %v3392 = vpop.f32.mrf.mxu0
    %v3393 = vpop.f32.mrf.mxu0
    %3394 = vdwg.mxu0
    %3395 = vmatprep.subr.bf16.mxu0 0
    %3396 = vmatpush1.bf16.msra.mxu0 %v2754
    %3397 = vmatprep.subr.bf16.mxu0 0
    %3398 = vmatpush1.bf16.msra.mxu0 %v2753
    %3399 = vmatprep.subr.bf16.mxu0 0
    %3400 = vmatpush1.bf16.msra.mxu0 %v2752
    %3401 = vmatprep.subr.bf16.mxu0 0
    %3402 = vmatpush1.bf16.msra.mxu0 %v2751
    %3403 = vmatprep.subr.bf16.mxu0 0
    %3404 = vmatpush1.bf16.msra.mxu0 %v2750
    %3405 = vmatprep.subr.bf16.mxu0 0
    %3406 = vmatpush1.bf16.msra.mxu0 %v2749
    %3407 = vmatprep.subr.bf16.mxu0 0
    %3408 = vmatpush1.bf16.msra.mxu0 %v2748
    %3409 = vmatprep.subr.bf16.mxu0 0
    %3410 = vmatpush1.bf16.msra.mxu0 %v2747
    %3411 = vmatprep.subr.bf16.mxu0 0
    %3412 = vmatpush2.bf16.msra.mxu0 %v2762
    %3413 = vmatprep.subr.bf16.mxu0 0
    %3414 = vmatpush2.bf16.msra.mxu0 %v2761
    %3415 = vmatprep.subr.bf16.mxu0 0
    %3416 = vmatpush2.bf16.msra.mxu0 %v2760
    %3417 = vmatprep.subr.bf16.mxu0 0
    %3418 = vmatpush2.bf16.msra.mxu0 %v2759
    %3419 = vmatprep.subr.bf16.mxu0 0
    %3420 = vmatpush2.bf16.msra.mxu0 %v2758
    %3421 = vmatprep.subr.bf16.mxu0 0
    %3422 = vmatpush2.bf16.msra.mxu0 %v2757
    %3423 = vmatprep.subr.bf16.mxu0 0
    %3424 = vmatpush2.bf16.msra.mxu0 %v2756
    %3425 = vmatprep.subr.bf16.mxu0 0
    %3426 = vmatpush2.bf16.msra.mxu0 %v2755
    %3427 = vmatprep.mubr.bf16.mxu0 %v1630
    %3428 = vmatmul.mubr.bf16.gmra.mxu0 %v1629
    %v3429 = vpop.f32.mrf.mxu0
    %v3430 = vadd.f32 %v3390, %v3429
    %v3431 = vpop.f32.mrf.mxu0
    %v3432 = vpop.f32.mrf.mxu0
    %v3433 = vpop.f32.mrf.mxu0
    %3434 = vdwg.mxu0
    %3435 = vmatprep.subr.bf16.mxu0 0
    %3436 = vmatpush1.bf16.msra.mxu0 %v2770
    %3437 = vmatprep.subr.bf16.mxu0 0
    %3438 = vmatpush1.bf16.msra.mxu0 %v2769
    %3439 = vmatprep.subr.bf16.mxu0 0
    %3440 = vmatpush1.bf16.msra.mxu0 %v2768
    %3441 = vmatprep.subr.bf16.mxu0 0
    %3442 = vmatpush1.bf16.msra.mxu0 %v2767
    %3443 = vmatprep.subr.bf16.mxu0 0
    %3444 = vmatpush1.bf16.msra.mxu0 %v2766
    %3445 = vmatprep.subr.bf16.mxu0 0
    %3446 = vmatpush1.bf16.msra.mxu0 %v2765
    %3447 = vmatprep.subr.bf16.mxu0 0
    %3448 = vmatpush1.bf16.msra.mxu0 %v2764
    %3449 = vmatprep.subr.bf16.mxu0 0
    %3450 = vmatpush1.bf16.msra.mxu0 %v2763
    %3451 = vmatprep.subr.bf16.mxu0 0
    %3452 = vmatpush2.bf16.msra.mxu0 %v2778
    %3453 = vmatprep.subr.bf16.mxu0 0
    %3454 = vmatpush2.bf16.msra.mxu0 %v2777
    %3455 = vmatprep.subr.bf16.mxu0 0
    %3456 = vmatpush2.bf16.msra.mxu0 %v2776
    %3457 = vmatprep.subr.bf16.mxu0 0
    %3458 = vmatpush2.bf16.msra.mxu0 %v2775
    %3459 = vmatprep.subr.bf16.mxu0 0
    %3460 = vmatpush2.bf16.msra.mxu0 %v2774
    %3461 = vmatprep.subr.bf16.mxu0 0
    %3462 = vmatpush2.bf16.msra.mxu0 %v2773
    %3463 = vmatprep.subr.bf16.mxu0 0
    %3464 = vmatpush2.bf16.msra.mxu0 %v2772
    %3465 = vmatprep.subr.bf16.mxu0 0
    %3466 = vmatpush2.bf16.msra.mxu0 %v2771
    %3467 = vmatprep.mubr.bf16.mxu0 %v1632
    %3468 = vmatmul.mubr.bf16.gmra.mxu0 %v1631
    %v3469 = vpop.f32.mrf.mxu0
    %v3470 = vadd.f32 %v3430, %v3469
    %v3471 = vpop.f32.mrf.mxu0
    %v3472 = vpop.f32.mrf.mxu0
    %v3473 = vpop.f32.mrf.mxu0
    %3474 = vdwg.mxu0
    %3475 = vmatprep.subr.bf16.mxu0 0
    %3476 = vmatpush1.bf16.msra.mxu0 %v2786
    %3477 = vmatprep.subr.bf16.mxu0 0
    %3478 = vmatpush1.bf16.msra.mxu0 %v2785
    %3479 = vmatprep.subr.bf16.mxu0 0
    %3480 = vmatpush1.bf16.msra.mxu0 %v2784
    %3481 = vmatprep.subr.bf16.mxu0 0
    %3482 = vmatpush1.bf16.msra.mxu0 %v2783
    %3483 = vmatprep.subr.bf16.mxu0 0
    %3484 = vmatpush1.bf16.msra.mxu0 %v2782
    %3485 = vmatprep.subr.bf16.mxu0 0
    %3486 = vmatpush1.bf16.msra.mxu0 %v2781
    %3487 = vmatprep.subr.bf16.mxu0 0
    %3488 = vmatpush1.bf16.msra.mxu0 %v2780
    %3489 = vmatprep.subr.bf16.mxu0 0
    %3490 = vmatpush1.bf16.msra.mxu0 %v2779
    %3491 = vmatprep.subr.bf16.mxu0 0
    %3492 = vmatpush2.bf16.msra.mxu0 %v2794
    %3493 = vmatprep.subr.bf16.mxu0 0
    %3494 = vmatpush2.bf16.msra.mxu0 %v2793
    %3495 = vmatprep.subr.bf16.mxu0 0
    %3496 = vmatpush2.bf16.msra.mxu0 %v2792
    %3497 = vmatprep.subr.bf16.mxu0 0
    %3498 = vmatpush2.bf16.msra.mxu0 %v2791
    %3499 = vmatprep.subr.bf16.mxu0 0
    %3500 = vmatpush2.bf16.msra.mxu0 %v2790
    %3501 = vmatprep.subr.bf16.mxu0 0
    %3502 = vmatpush2.bf16.msra.mxu0 %v2789
    %3503 = vmatprep.subr.bf16.mxu0 0
    %3504 = vmatpush2.bf16.msra.mxu0 %v2788
    %3505 = vmatprep.subr.bf16.mxu0 0
    %3506 = vmatpush2.bf16.msra.mxu0 %v2787
    %3507 = vmatprep.mubr.bf16.mxu0 %v1634
    %3508 = vmatmul.mubr.bf16.gmra.mxu0 %v1633
    %v3509 = vpop.f32.mrf.mxu0
    %v3510 = vadd.f32 %v3470, %v3509
    %v3511 = vpop.f32.mrf.mxu0
    %v3512 = vpop.f32.mrf.mxu0
    %v3513 = vpop.f32.mrf.mxu0
    %3514 = vdwg.mxu0
    %3515 = vmatprep.subr.bf16.mxu0 0
    %3516 = vmatpush1.bf16.msra.mxu0 %v2802
    %3517 = vmatprep.subr.bf16.mxu0 0
    %3518 = vmatpush1.bf16.msra.mxu0 %v2801
    %3519 = vmatprep.subr.bf16.mxu0 0
    %3520 = vmatpush1.bf16.msra.mxu0 %v2800
    %3521 = vmatprep.subr.bf16.mxu0 0
    %3522 = vmatpush1.bf16.msra.mxu0 %v2799
    %3523 = vmatprep.subr.bf16.mxu0 0
    %3524 = vmatpush1.bf16.msra.mxu0 %v2798
    %3525 = vmatprep.subr.bf16.mxu0 0
    %3526 = vmatpush1.bf16.msra.mxu0 %v2797
    %3527 = vmatprep.subr.bf16.mxu0 0
    %3528 = vmatpush1.bf16.msra.mxu0 %v2796
    %3529 = vmatprep.subr.bf16.mxu0 0
    %3530 = vmatpush1.bf16.msra.mxu0 %v2795
    %3531 = vmatprep.subr.bf16.mxu0 0
    %3532 = vmatpush2.bf16.msra.mxu0 %v2810
    %3533 = vmatprep.subr.bf16.mxu0 0
    %3534 = vmatpush2.bf16.msra.mxu0 %v2809
    %3535 = vmatprep.subr.bf16.mxu0 0
    %3536 = vmatpush2.bf16.msra.mxu0 %v2808
    %3537 = vmatprep.subr.bf16.mxu0 0
    %3538 = vmatpush2.bf16.msra.mxu0 %v2807
    %3539 = vmatprep.subr.bf16.mxu0 0
    %3540 = vmatpush2.bf16.msra.mxu0 %v2806
    %3541 = vmatprep.subr.bf16.mxu0 0
    %3542 = vmatpush2.bf16.msra.mxu0 %v2805
    %3543 = vmatprep.subr.bf16.mxu0 0
    %3544 = vmatpush2.bf16.msra.mxu0 %v2804
    %3545 = vmatprep.subr.bf16.mxu0 0
    %3546 = vmatpush2.bf16.msra.mxu0 %v2803
    %3547 = vmatprep.mubr.bf16.mxu0 %v1636
    %3548 = vmatmul.mubr.bf16.gmra.mxu0 %v1635
    %v3549 = vpop.f32.mrf.mxu0
    %v3550 = vadd.f32 %v3510, %v3549
    %v3551 = vpop.f32.mrf.mxu0
    %v3552 = vpop.f32.mrf.mxu0
    %v3553 = vpop.f32.mrf.mxu0
    %3554 = vdwg.mxu0
    %3555 = vmatprep.subr.bf16.mxu0 0
    %3556 = vmatpush1.bf16.msra.mxu0 %v2818
    %3557 = vmatprep.subr.bf16.mxu0 0
    %3558 = vmatpush1.bf16.msra.mxu0 %v2817
    %3559 = vmatprep.subr.bf16.mxu0 0
    %3560 = vmatpush1.bf16.msra.mxu0 %v2816
    %3561 = vmatprep.subr.bf16.mxu0 0
    %3562 = vmatpush1.bf16.msra.mxu0 %v2815
    %3563 = vmatprep.subr.bf16.mxu0 0
    %3564 = vmatpush1.bf16.msra.mxu0 %v2814
    %3565 = vmatprep.subr.bf16.mxu0 0
    %3566 = vmatpush1.bf16.msra.mxu0 %v2813
    %3567 = vmatprep.subr.bf16.mxu0 0
    %3568 = vmatpush1.bf16.msra.mxu0 %v2812
    %3569 = vmatprep.subr.bf16.mxu0 0
    %3570 = vmatpush1.bf16.msra.mxu0 %v2811
    %3571 = vmatprep.subr.bf16.mxu0 0
    %3572 = vmatpush2.bf16.msra.mxu0 %v2826
    %3573 = vmatprep.subr.bf16.mxu0 0
    %3574 = vmatpush2.bf16.msra.mxu0 %v2825
    %3575 = vmatprep.subr.bf16.mxu0 0
    %3576 = vmatpush2.bf16.msra.mxu0 %v2824
    %3577 = vmatprep.subr.bf16.mxu0 0
    %3578 = vmatpush2.bf16.msra.mxu0 %v2823
    %3579 = vmatprep.subr.bf16.mxu0 0
    %3580 = vmatpush2.bf16.msra.mxu0 %v2822
    %3581 = vmatprep.subr.bf16.mxu0 0
    %3582 = vmatpush2.bf16.msra.mxu0 %v2821
    %3583 = vmatprep.subr.bf16.mxu0 0
    %3584 = vmatpush2.bf16.msra.mxu0 %v2820
    %3585 = vmatprep.subr.bf16.mxu0 0
    %3586 = vmatpush2.bf16.msra.mxu0 %v2819
    %3587 = vmatprep.mubr.bf16.mxu0 %v1638
    %3588 = vmatmul.mubr.bf16.gmra.mxu0 %v1637
    %v3589 = vpop.f32.mrf.mxu0
    %v3590 = vadd.f32 %v3550, %v3589
    %v3591 = vpop.f32.mrf.mxu0
    %v3592 = vpop.f32.mrf.mxu0
    %v3593 = vpop.f32.mrf.mxu0
    %3594 = vdwg.mxu0
    %3595 = vmatprep.subr.bf16.mxu0 0
    %3596 = vmatpush1.bf16.msra.mxu0 %v2834
    %3597 = vmatprep.subr.bf16.mxu0 0
    %3598 = vmatpush1.bf16.msra.mxu0 %v2833
    %3599 = vmatprep.subr.bf16.mxu0 0
    %3600 = vmatpush1.bf16.msra.mxu0 %v2832
    %3601 = vmatprep.subr.bf16.mxu0 0
    %3602 = vmatpush1.bf16.msra.mxu0 %v2831
    %3603 = vmatprep.subr.bf16.mxu0 0
    %3604 = vmatpush1.bf16.msra.mxu0 %v2830
    %3605 = vmatprep.subr.bf16.mxu0 0
    %3606 = vmatpush1.bf16.msra.mxu0 %v2829
    %3607 = vmatprep.subr.bf16.mxu0 0
    %3608 = vmatpush1.bf16.msra.mxu0 %v2828
    %3609 = vmatprep.subr.bf16.mxu0 0
    %3610 = vmatpush1.bf16.msra.mxu0 %v2827
    %3611 = vmatprep.subr.bf16.mxu0 0
    %3612 = vmatpush2.bf16.msra.mxu0 %v2842
    %3613 = vmatprep.subr.bf16.mxu0 0
    %3614 = vmatpush2.bf16.msra.mxu0 %v2841
    %3615 = vmatprep.subr.bf16.mxu0 0
    %3616 = vmatpush2.bf16.msra.mxu0 %v2840
    %3617 = vmatprep.subr.bf16.mxu0 0
    %3618 = vmatpush2.bf16.msra.mxu0 %v2839
    %3619 = vmatprep.subr.bf16.mxu0 0
    %3620 = vmatpush2.bf16.msra.mxu0 %v2838
    %3621 = vmatprep.subr.bf16.mxu0 0
    %3622 = vmatpush2.bf16.msra.mxu0 %v2837
    %3623 = vmatprep.subr.bf16.mxu0 0
    %3624 = vmatpush2.bf16.msra.mxu0 %v2836
    %3625 = vmatprep.subr.bf16.mxu0 0
    %3626 = vmatpush2.bf16.msra.mxu0 %v2835
    %3627 = vmatprep.mubr.bf16.mxu0 %v1640
    %3628 = vmatmul.mubr.bf16.gmra.mxu0 %v1639
    %v3629 = vpop.f32.mrf.mxu0
    %v3630 = vadd.f32 %v3590, %v3629
    %v3631 = vpop.f32.mrf.mxu0
    %v3632 = vpop.f32.mrf.mxu0
    %v3633 = vpop.f32.mrf.mxu0
    %3634 = vdwg.mxu0
    %3635 = vmatprep.subr.bf16.mxu0 0
    %3636 = vmatpush1.bf16.msra.mxu0 %v2850
    %3637 = vmatprep.subr.bf16.mxu0 0
    %3638 = vmatpush1.bf16.msra.mxu0 %v2849
    %3639 = vmatprep.subr.bf16.mxu0 0
    %3640 = vmatpush1.bf16.msra.mxu0 %v2848
    %3641 = vmatprep.subr.bf16.mxu0 0
    %3642 = vmatpush1.bf16.msra.mxu0 %v2847
    %3643 = vmatprep.subr.bf16.mxu0 0
    %3644 = vmatpush1.bf16.msra.mxu0 %v2846
    %3645 = vmatprep.subr.bf16.mxu0 0
    %3646 = vmatpush1.bf16.msra.mxu0 %v2845
    %3647 = vmatprep.subr.bf16.mxu0 0
    %3648 = vmatpush1.bf16.msra.mxu0 %v2844
    %3649 = vmatprep.subr.bf16.mxu0 0
    %3650 = vmatpush1.bf16.msra.mxu0 %v2843
    %3651 = vmatprep.subr.bf16.mxu0 0
    %3652 = vmatpush2.bf16.msra.mxu0 %v2858
    %3653 = vmatprep.subr.bf16.mxu0 0
    %3654 = vmatpush2.bf16.msra.mxu0 %v2857
    %3655 = vmatprep.subr.bf16.mxu0 0
    %3656 = vmatpush2.bf16.msra.mxu0 %v2856
    %3657 = vmatprep.subr.bf16.mxu0 0
    %3658 = vmatpush2.bf16.msra.mxu0 %v2855
    %3659 = vmatprep.subr.bf16.mxu0 0
    %3660 = vmatpush2.bf16.msra.mxu0 %v2854
    %3661 = vmatprep.subr.bf16.mxu0 0
    %3662 = vmatpush2.bf16.msra.mxu0 %v2853
    %3663 = vmatprep.subr.bf16.mxu0 0
    %3664 = vmatpush2.bf16.msra.mxu0 %v2852
    %3665 = vmatprep.subr.bf16.mxu0 0
    %3666 = vmatpush2.bf16.msra.mxu0 %v2851
    %3667 = vmatprep.mubr.bf16.mxu0 %v1642
    %3668 = vmatmul.mubr.bf16.gmra.mxu0 %v1641
    %v3669 = vpop.f32.mrf.mxu0
    %v3670 = vadd.f32 %v3630, %v3669
    %v3671 = vpop.f32.mrf.mxu0
    %v3672 = vpop.f32.mrf.mxu0
    %v3673 = vpop.f32.mrf.mxu0
    %3674 = vdwg.mxu0
    %3675 = vmatprep.subr.bf16.mxu0 0
    %3676 = vmatpush1.bf16.msra.mxu0 %v2866
    %3677 = vmatprep.subr.bf16.mxu0 0
    %3678 = vmatpush1.bf16.msra.mxu0 %v2865
    %3679 = vmatprep.subr.bf16.mxu0 0
    %3680 = vmatpush1.bf16.msra.mxu0 %v2864
    %3681 = vmatprep.subr.bf16.mxu0 0
    %3682 = vmatpush1.bf16.msra.mxu0 %v2863
    %3683 = vmatprep.subr.bf16.mxu0 0
    %3684 = vmatpush1.bf16.msra.mxu0 %v2862
    %3685 = vmatprep.subr.bf16.mxu0 0
    %3686 = vmatpush1.bf16.msra.mxu0 %v2861
    %3687 = vmatprep.subr.bf16.mxu0 0
    %3688 = vmatpush1.bf16.msra.mxu0 %v2860
    %3689 = vmatprep.subr.bf16.mxu0 0
    %3690 = vmatpush1.bf16.msra.mxu0 %v2859
    %3691 = vmatprep.subr.bf16.mxu0 0
    %3692 = vmatpush2.bf16.msra.mxu0 %v2874
    %3693 = vmatprep.subr.bf16.mxu0 0
    %3694 = vmatpush2.bf16.msra.mxu0 %v2873
    %3695 = vmatprep.subr.bf16.mxu0 0
    %3696 = vmatpush2.bf16.msra.mxu0 %v2872
    %3697 = vmatprep.subr.bf16.mxu0 0
    %3698 = vmatpush2.bf16.msra.mxu0 %v2871
    %3699 = vmatprep.subr.bf16.mxu0 0
    %3700 = vmatpush2.bf16.msra.mxu0 %v2870
    %3701 = vmatprep.subr.bf16.mxu0 0
    %3702 = vmatpush2.bf16.msra.mxu0 %v2869
    %3703 = vmatprep.subr.bf16.mxu0 0
    %3704 = vmatpush2.bf16.msra.mxu0 %v2868
    %3705 = vmatprep.subr.bf16.mxu0 0
    %3706 = vmatpush2.bf16.msra.mxu0 %v2867
    %3707 = vmatprep.mubr.bf16.mxu0 %v1644
    %3708 = vmatmul.mubr.bf16.gmra.mxu0 %v1643
    %v3709 = vpop.f32.mrf.mxu0
    %v3710 = vadd.f32 %v3670, %v3709
    %v3711 = vpop.f32.mrf.mxu0
    %v3712 = vpop.f32.mrf.mxu0
    %v3713 = vpop.f32.mrf.mxu0
    %3714 = vdwg.mxu0
    %v3715 = vmax.f32 %v3710, 0.0
    %v3716 = vpack.c.bf16 %v3715, %v3715
    %v3717 = vld [vmem:[%s1 + $0x18] sm:$0xf]
    %v3718 = vld [vmem:[%s1 + $0x40] sm:$0xf]
    %v3719 = vld [vmem:[%s1 + $0x68] sm:$0xf]
    %v3720 = vld [vmem:[%s1 + $0x90] sm:$0xf]
    %v3721 = vld [vmem:[%s1 + $0xb8] sm:$0xf]
    %v3722 = vld [vmem:[%s1 + $0xe0] sm:$0xf]
    %v3723 = vld [vmem:[%s1 + $0x108] sm:$0xf]
    %v3724 = vld [vmem:[%s1 + $0x130] sm:$0xf]
    %v3725 = vld [vmem:[%s1 + $0x158] sm:$0xf]
    %v3726 = vld [vmem:[%s1 + $0x180] sm:$0xf]
    %v3727 = vld [vmem:[%s1 + $0x1a8] sm:$0xf]
    %v3728 = vld [vmem:[%s1 + $0x1d0] sm:$0xf]
    %v3729 = vld [vmem:[%s1 + $0x1f8] sm:$0xf]
    %v3730 = vld [vmem:[%s1 + $0x220] sm:$0xf]
    %v3731 = vld [vmem:[%s1 + $0x248] sm:$0xf]
    %v3732 = vld [vmem:[%s1 + $0x270] sm:$0xf]
    %v3733 = vld [vmem:[%s2 + $0x6] sm:$0x1]
    %v3735 = vlaneseq
    %v3736 = vshrl.u32 %v3735, 7
    %v3737 = vsub.s32 0, %v3736
    %v3738 = vrot.slane %v3733, %v3737
    %v3756 = vunpack.c.l.b16 %v3717
    %v3757 = vunpack.c.l.b16 %v3718
    %v3758 = vunpack.c.l.b16 %v3719
    %v3759 = vunpack.c.l.b16 %v3720
    %v3760 = vunpack.c.l.b16 %v3721
    %v3761 = vunpack.c.l.b16 %v3722
    %v3762 = vunpack.c.l.b16 %v3723
    %v3763 = vunpack.c.l.b16 %v3724
    %v3764 = vunpack.c.l.b16 %v3725
    %v3765 = vunpack.c.l.b16 %v3726
    %v3766 = vunpack.c.l.b16 %v3727
    %v3767 = vunpack.c.l.b16 %v3728
    %v3768 = vunpack.c.l.b16 %v3729
    %v3769 = vunpack.c.l.b16 %v3730
    %v3770 = vunpack.c.l.b16 %v3731
    %v3771 = vunpack.c.l.b16 %v3732
    %v3772 = vpack.c.b16 %v3757, %v3756
    %v3773 = vpack.c.b16 %v3759, %v3758
    %v3774 = vpack.c.b16 %v3761, %v3760
    %v3775 = vpack.c.b16 %v3763, %v3762
    %v3776 = vpack.c.b16 %v3765, %v3764
    %v3777 = vpack.c.b16 %v3767, %v3766
    %v3778 = vpack.c.b16 %v3769, %v3768
    %v3779 = vpack.c.b16 %v3771, %v3770
    %3788 = vmatprep.subr.bf16.mxu0 0
    %3789 = vmatpush1.bf16.msra.mxu0 %v3779
    %3790 = vmatprep.subr.bf16.mxu0 0
    %3791 = vmatpush1.bf16.msra.mxu0 %v3778
    %3792 = vmatprep.subr.bf16.mxu0 0
    %3793 = vmatpush1.bf16.msra.mxu0 %v3777
    %3794 = vmatprep.subr.bf16.mxu0 0
    %3795 = vmatpush1.bf16.msra.mxu0 %v3776
    %3796 = vmatprep.subr.bf16.mxu0 0
    %3797 = vmatpush1.bf16.msra.mxu0 %v3775
    %3798 = vmatprep.subr.bf16.mxu0 0
    %3799 = vmatpush1.bf16.msra.mxu0 %v3774
    %3800 = vmatprep.subr.bf16.mxu0 0
    %3801 = vmatpush1.bf16.msra.mxu0 %v3773
    %3802 = vmatprep.subr.bf16.mxu0 0
    %3803 = vmatpush1.bf16.msra.mxu0 %v3772
    %3804 = vmatprep.subr.bf16.mxu0 0
    %3805 = vmatpush2.bf16.msra.mxu0 0
    %3806 = vmatprep.subr.bf16.mxu0 0
    %3807 = vmatpush2.bf16.msra.mxu0 0
    %3808 = vmatprep.subr.bf16.mxu0 0
    %3809 = vmatpush2.bf16.msra.mxu0 0
    %3810 = vmatprep.subr.bf16.mxu0 0
    %3811 = vmatpush2.bf16.msra.mxu0 0
    %3812 = vmatprep.subr.bf16.mxu0 0
    %3813 = vmatpush2.bf16.msra.mxu0 0
    %3814 = vmatprep.subr.bf16.mxu0 0
    %3815 = vmatpush2.bf16.msra.mxu0 0
    %3816 = vmatprep.subr.bf16.mxu0 0
    %3817 = vmatpush2.bf16.msra.mxu0 0
    %3818 = vmatprep.subr.bf16.mxu0 0
    %3819 = vmatpush2.bf16.msra.mxu0 0
    %3820 = vmatprep.mubr.bf16.mxu0 0
    %3821 = vmatmul.mubr.bf16.gmra.mxu0 %v3716
    %v3822 = vpop.f32.mrf.mxu0
    %v3823 = vadd.f32 %v3738, %v3822
    %v3824 = vpop.f32.mrf.mxu0
    %v3825 = vpop.f32.mrf.mxu0
    %v3826 = vpop.f32.mrf.mxu0
    %3827 = vdwg.mxu0
    %v3828 = vmax.f32 %v3823, 0.0
    %v3829 = vpack.c.bf16 %v3828, %v3828
    %v3830 = vld [vmem:[%s1 + $0x1c] sm:$0xf]
    %v3831 = vld [vmem:[%s1 + $0x44] sm:$0xf]
    %v3832 = vld [vmem:[%s1 + $0x6c] sm:$0xf]
    %v3833 = vld [vmem:[%s1 + $0x94] sm:$0xf]
    %v3834 = vld [vmem:[%s1 + $0xbc] sm:$0xf]
    %v3835 = vld [vmem:[%s1 + $0xe4] sm:$0xf]
    %v3836 = vld [vmem:[%s1 + $0x10c] sm:$0xf]
    %v3837 = vld [vmem:[%s1 + $0x134] sm:$0xf]
    %v3838 = vld [vmem:[%s1 + $0x15c] sm:$0xf]
    %v3839 = vld [vmem:[%s1 + $0x184] sm:$0xf]
    %v3840 = vld [vmem:[%s1 + $0x1ac] sm:$0xf]
    %v3841 = vld [vmem:[%s1 + $0x1d4] sm:$0xf]
    %v3842 = vld [vmem:[%s1 + $0x1fc] sm:$0xf]
    %v3843 = vld [vmem:[%s1 + $0x224] sm:$0xf]
    %v3844 = vld [vmem:[%s1 + $0x24c] sm:$0xf]
    %v3845 = vld [vmem:[%s1 + $0x274] sm:$0xf]
    %v3846 = vld [vmem:[%s2 + $0x7] sm:$0x1]
    %v3848 = vlaneseq
    %v3849 = vshrl.u32 %v3848, 7
    %v3850 = vsub.s32 0, %v3849
    %v3851 = vrot.slane %v3846, %v3850
    %v3869 = vunpack.c.l.b16 %v3830
    %v3870 = vunpack.c.l.b16 %v3831
    %v3871 = vunpack.c.l.b16 %v3832
    %v3872 = vunpack.c.l.b16 %v3833
    %v3873 = vunpack.c.l.b16 %v3834
    %v3874 = vunpack.c.l.b16 %v3835
    %v3875 = vunpack.c.l.b16 %v3836
    %v3876 = vunpack.c.l.b16 %v3837
    %v3877 = vunpack.c.l.b16 %v3838
    %v3878 = vunpack.c.l.b16 %v3839
    %v3879 = vunpack.c.l.b16 %v3840
    %v3880 = vunpack.c.l.b16 %v3841
    %v3881 = vunpack.c.l.b16 %v3842
    %v3882 = vunpack.c.l.b16 %v3843
    %v3883 = vunpack.c.l.b16 %v3844
    %v3884 = vunpack.c.l.b16 %v3845
    %v3885 = vpack.c.b16 %v3870, %v3869
    %v3886 = vpack.c.b16 %v3872, %v3871
    %v3887 = vpack.c.b16 %v3874, %v3873
    %v3888 = vpack.c.b16 %v3876, %v3875
    %v3889 = vpack.c.b16 %v3878, %v3877
    %v3890 = vpack.c.b16 %v3880, %v3879
    %v3891 = vpack.c.b16 %v3882, %v3881
    %v3892 = vpack.c.b16 %v3884, %v3883
    %3901 = vmatprep.subr.bf16.mxu0 0
    %3902 = vmatpush1.bf16.msra.mxu0 %v3892
    %3903 = vmatprep.subr.bf16.mxu0 0
    %3904 = vmatpush1.bf16.msra.mxu0 %v3891
    %3905 = vmatprep.subr.bf16.mxu0 0
    %3906 = vmatpush1.bf16.msra.mxu0 %v3890
    %3907 = vmatprep.subr.bf16.mxu0 0
    %3908 = vmatpush1.bf16.msra.mxu0 %v3889
    %3909 = vmatprep.subr.bf16.mxu0 0
    %3910 = vmatpush1.bf16.msra.mxu0 %v3888
    %3911 = vmatprep.subr.bf16.mxu0 0
    %3912 = vmatpush1.bf16.msra.mxu0 %v3887
    %3913 = vmatprep.subr.bf16.mxu0 0
    %3914 = vmatpush1.bf16.msra.mxu0 %v3886
    %3915 = vmatprep.subr.bf16.mxu0 0
    %3916 = vmatpush1.bf16.msra.mxu0 %v3885
    %3917 = vmatprep.subr.bf16.mxu0 0
    %3918 = vmatpush2.bf16.msra.mxu0 0
    %3919 = vmatprep.subr.bf16.mxu0 0
    %3920 = vmatpush2.bf16.msra.mxu0 0
    %3921 = vmatprep.subr.bf16.mxu0 0
    %3922 = vmatpush2.bf16.msra.mxu0 0
    %3923 = vmatprep.subr.bf16.mxu0 0
    %3924 = vmatpush2.bf16.msra.mxu0 0
    %3925 = vmatprep.subr.bf16.mxu0 0
    %3926 = vmatpush2.bf16.msra.mxu0 0
    %3927 = vmatprep.subr.bf16.mxu0 0
    %3928 = vmatpush2.bf16.msra.mxu0 0
    %3929 = vmatprep.subr.bf16.mxu0 0
    %3930 = vmatpush2.bf16.msra.mxu0 0
    %3931 = vmatprep.subr.bf16.mxu0 0
    %3932 = vmatpush2.bf16.msra.mxu0 0
    %3933 = vmatprep.mubr.bf16.mxu0 0
    %3934 = vmatmul.mubr.bf16.gmra.mxu0 %v3829
    %v3935 = vpop.f32.mrf.mxu0
    %v3936 = vadd.f32 %v3851, %v3935
    %v3937 = vpop.f32.mrf.mxu0
    %v3938 = vpop.f32.mrf.mxu0
    %v3939 = vpop.f32.mrf.mxu0
    %3940 = vdwg.mxu0
    %v3941 = vmax.f32 %v3936, 0.0
    %v3942 = vpack.c.bf16 %v3941, %v3941
    %v3943 = vld [vmem:[%s1 + $0x20] sm:$0xf]
    %v3944 = vld [vmem:[%s1 + $0x48] sm:$0xf]
    %v3945 = vld [vmem:[%s1 + $0x70] sm:$0xf]
    %v3946 = vld [vmem:[%s1 + $0x98] sm:$0xf]
    %v3947 = vld [vmem:[%s1 + $0xc0] sm:$0xf]
    %v3948 = vld [vmem:[%s1 + $0xe8] sm:$0xf]
    %v3949 = vld [vmem:[%s1 + $0x110] sm:$0xf]
    %v3950 = vld [vmem:[%s1 + $0x138] sm:$0xf]
    %v3951 = vld [vmem:[%s1 + $0x160] sm:$0xf]
    %v3952 = vld [vmem:[%s1 + $0x188] sm:$0xf]
    %v3953 = vld [vmem:[%s1 + $0x1b0] sm:$0xf]
    %v3954 = vld [vmem:[%s1 + $0x1d8] sm:$0xf]
    %v3955 = vld [vmem:[%s1 + $0x200] sm:$0xf]
    %v3956 = vld [vmem:[%s1 + $0x228] sm:$0xf]
    %v3957 = vld [vmem:[%s1 + $0x250] sm:$0xf]
    %v3958 = vld [vmem:[%s1 + $0x278] sm:$0xf]
    %v3959 = vld [vmem:[%s2 + $0x8] sm:$0x1]
    %v3961 = vlaneseq
    %v3962 = vshrl.u32 %v3961, 7
    %v3963 = vsub.s32 0, %v3962
    %v3964 = vrot.slane %v3959, %v3963
    %v3982 = vunpack.c.l.b16 %v3943
    %v3983 = vunpack.c.l.b16 %v3944
    %v3984 = vunpack.c.l.b16 %v3945
    %v3985 = vunpack.c.l.b16 %v3946
    %v3986 = vunpack.c.l.b16 %v3947
    %v3987 = vunpack.c.l.b16 %v3948
    %v3988 = vunpack.c.l.b16 %v3949
    %v3989 = vunpack.c.l.b16 %v3950
    %v3990 = vunpack.c.l.b16 %v3951
    %v3991 = vunpack.c.l.b16 %v3952
    %v3992 = vunpack.c.l.b16 %v3953
    %v3993 = vunpack.c.l.b16 %v3954
    %v3994 = vunpack.c.l.b16 %v3955
    %v3995 = vunpack.c.l.b16 %v3956
    %v3996 = vunpack.c.l.b16 %v3957
    %v3997 = vunpack.c.l.b16 %v3958
    %v3998 = vpack.c.b16 %v3983, %v3982
    %v3999 = vpack.c.b16 %v3985, %v3984
    %v4000 = vpack.c.b16 %v3987, %v3986
    %v4001 = vpack.c.b16 %v3989, %v3988
    %v4002 = vpack.c.b16 %v3991, %v3990
    %v4003 = vpack.c.b16 %v3993, %v3992
    %v4004 = vpack.c.b16 %v3995, %v3994
    %v4005 = vpack.c.b16 %v3997, %v3996
    %4014 = vmatprep.subr.bf16.mxu0 0
    %4015 = vmatpush1.bf16.msra.mxu0 %v4005
    %4016 = vmatprep.subr.bf16.mxu0 0
    %4017 = vmatpush1.bf16.msra.mxu0 %v4004
    %4018 = vmatprep.subr.bf16.mxu0 0
    %4019 = vmatpush1.bf16.msra.mxu0 %v4003
    %4020 = vmatprep.subr.bf16.mxu0 0
    %4021 = vmatpush1.bf16.msra.mxu0 %v4002
    %4022 = vmatprep.subr.bf16.mxu0 0
    %4023 = vmatpush1.bf16.msra.mxu0 %v4001
    %4024 = vmatprep.subr.bf16.mxu0 0
    %4025 = vmatpush1.bf16.msra.mxu0 %v4000
    %4026 = vmatprep.subr.bf16.mxu0 0
    %4027 = vmatpush1.bf16.msra.mxu0 %v3999
    %4028 = vmatprep.subr.bf16.mxu0 0
    %4029 = vmatpush1.bf16.msra.mxu0 %v3998
    %4030 = vmatprep.subr.bf16.mxu0 0
    %4031 = vmatpush2.bf16.msra.mxu0 0
    %4032 = vmatprep.subr.bf16.mxu0 0
    %4033 = vmatpush2.bf16.msra.mxu0 0
    %4034 = vmatprep.subr.bf16.mxu0 0
    %4035 = vmatpush2.bf16.msra.mxu0 0
    %4036 = vmatprep.subr.bf16.mxu0 0
    %4037 = vmatpush2.bf16.msra.mxu0 0
    %4038 = vmatprep.subr.bf16.mxu0 0
    %4039 = vmatpush2.bf16.msra.mxu0 0
    %4040 = vmatprep.subr.bf16.mxu0 0
    %4041 = vmatpush2.bf16.msra.mxu0 0
    %4042 = vmatprep.subr.bf16.mxu0 0
    %4043 = vmatpush2.bf16.msra.mxu0 0
    %4044 = vmatprep.subr.bf16.mxu0 0
    %4045 = vmatpush2.bf16.msra.mxu0 0
    %4046 = vmatprep.mubr.bf16.mxu0 0
    %4047 = vmatmul.mubr.bf16.gmra.mxu0 %v3942
    %v4048 = vpop.f32.mrf.mxu0
    %v4049 = vadd.f32 %v3964, %v4048
    %v4050 = vpop.f32.mrf.mxu0
    %v4051 = vpop.f32.mrf.mxu0
    %v4052 = vpop.f32.mrf.mxu0
    %4053 = vdwg.mxu0
    %v4054 = vmax.f32 %v4049, 0.0
    %v4055 = vpack.c.bf16 %v4054, %v4054
    %v4056 = vld [vmem:[%s1 + $0x24] sm:$0xf]
    %v4057 = vld [vmem:[%s1 + $0x4c] sm:$0xf]
    %v4058 = vld [vmem:[%s1 + $0x74] sm:$0xf]
    %v4059 = vld [vmem:[%s1 + $0x9c] sm:$0xf]
    %v4060 = vld [vmem:[%s1 + $0xc4] sm:$0xf]
    %v4061 = vld [vmem:[%s1 + $0xec] sm:$0xf]
    %v4062 = vld [vmem:[%s1 + $0x114] sm:$0xf]
    %v4063 = vld [vmem:[%s1 + $0x13c] sm:$0xf]
    %v4064 = vld [vmem:[%s1 + $0x164] sm:$0xf]
    %v4065 = vld [vmem:[%s1 + $0x18c] sm:$0xf]
    %v4066 = vld [vmem:[%s1 + $0x1b4] sm:$0xf]
    %v4067 = vld [vmem:[%s1 + $0x1dc] sm:$0xf]
    %v4068 = vld [vmem:[%s1 + $0x204] sm:$0xf]
    %v4069 = vld [vmem:[%s1 + $0x22c] sm:$0xf]
    %v4070 = vld [vmem:[%s1 + $0x254] sm:$0xf]
    %v4071 = vld [vmem:[%s1 + $0x27c] sm:$0xf]
    %v4072 = vld [vmem:[%s2 + $0x9] sm:$0x1]
    %v4074 = vlaneseq
    %v4075 = vshrl.u32 %v4074, 7
    %v4076 = vsub.s32 0, %v4075
    %v4077 = vrot.slane %v4072, %v4076
    %v4095 = vunpack.c.l.b16 %v4056
    %v4096 = vunpack.c.l.b16 %v4057
    %v4097 = vunpack.c.l.b16 %v4058
    %v4098 = vunpack.c.l.b16 %v4059
    %v4099 = vunpack.c.l.b16 %v4060
    %v4100 = vunpack.c.l.b16 %v4061
    %v4101 = vunpack.c.l.b16 %v4062
    %v4102 = vunpack.c.l.b16 %v4063
    %v4103 = vunpack.c.l.b16 %v4064
    %v4104 = vunpack.c.l.b16 %v4065
    %v4105 = vunpack.c.l.b16 %v4066
    %v4106 = vunpack.c.l.b16 %v4067
    %v4107 = vunpack.c.l.b16 %v4068
    %v4108 = vunpack.c.l.b16 %v4069
    %v4109 = vunpack.c.l.b16 %v4070
    %v4110 = vunpack.c.l.b16 %v4071
    %v4111 = vpack.c.b16 %v4096, %v4095
    %v4112 = vpack.c.b16 %v4098, %v4097
    %v4113 = vpack.c.b16 %v4100, %v4099
    %v4114 = vpack.c.b16 %v4102, %v4101
    %v4115 = vpack.c.b16 %v4104, %v4103
    %v4116 = vpack.c.b16 %v4106, %v4105
    %v4117 = vpack.c.b16 %v4108, %v4107
    %v4118 = vpack.c.b16 %v4110, %v4109
    %4127 = vmatprep.subr.bf16.mxu0 0
    %4128 = vmatpush1.bf16.msra.mxu0 %v4118
    %4129 = vmatprep.subr.bf16.mxu0 0
    %4130 = vmatpush1.bf16.msra.mxu0 %v4117
    %4131 = vmatprep.subr.bf16.mxu0 0
    %4132 = vmatpush1.bf16.msra.mxu0 %v4116
    %4133 = vmatprep.subr.bf16.mxu0 0
    %4134 = vmatpush1.bf16.msra.mxu0 %v4115
    %4135 = vmatprep.subr.bf16.mxu0 0
    %4136 = vmatpush1.bf16.msra.mxu0 %v4114
    %4137 = vmatprep.subr.bf16.mxu0 0
    %4138 = vmatpush1.bf16.msra.mxu0 %v4113
    %4139 = vmatprep.subr.bf16.mxu0 0
    %4140 = vmatpush1.bf16.msra.mxu0 %v4112
    %4141 = vmatprep.subr.bf16.mxu0 0
    %4142 = vmatpush1.bf16.msra.mxu0 %v4111
    %4143 = vmatprep.subr.bf16.mxu0 0
    %4144 = vmatpush2.bf16.msra.mxu0 0
    %4145 = vmatprep.subr.bf16.mxu0 0
    %4146 = vmatpush2.bf16.msra.mxu0 0
    %4147 = vmatprep.subr.bf16.mxu0 0
    %4148 = vmatpush2.bf16.msra.mxu0 0
    %4149 = vmatprep.subr.bf16.mxu0 0
    %4150 = vmatpush2.bf16.msra.mxu0 0
    %4151 = vmatprep.subr.bf16.mxu0 0
    %4152 = vmatpush2.bf16.msra.mxu0 0
    %4153 = vmatprep.subr.bf16.mxu0 0
    %4154 = vmatpush2.bf16.msra.mxu0 0
    %4155 = vmatprep.subr.bf16.mxu0 0
    %4156 = vmatpush2.bf16.msra.mxu0 0
    %4157 = vmatprep.subr.bf16.mxu0 0
    %4158 = vmatpush2.bf16.msra.mxu0 0
    %4159 = vmatprep.mubr.bf16.mxu0 0
    %4160 = vmatmul.mubr.bf16.gmra.mxu0 %v4055
    %v4161 = vpop.f32.mrf.mxu0
    %v4162 = vadd.f32 %v4077, %v4161
    %v4163 = vpop.f32.mrf.mxu0
    %v4164 = vpop.f32.mrf.mxu0
    %v4165 = vpop.f32.mrf.mxu0
    %4166 = vdwg.mxu0
    %4167 = vst [vmem:[%s4] sm:$0xff] %v4162
    // Predicated region
    $region22: #{deepseq_forward.1} parent=1 // pred_check
      _
    $region23: #{deepseq_forward.1} parent=1 // pred_check_branch
      %4169 = sbr.rel (0) target = $region25
    $region24: #{deepseq_forward.1} parent=1 // pred_region
      _
    $region25: #{deepseq_forward.1} parent=1 // pred_fallthru
      _
    // Predicated region
    $region26: #{deepseq_forward.1} parent=1 // pred_check
      _
    $region27: #{deepseq_forward.1} parent=1 // pred_check_branch
      %4171 = sbr.rel (0) target = $region29
    $region28: #{deepseq_forward.1} parent=1 // pred_region
      _
    $region29: #{deepseq_forward.1} parent=1 // pred_fallthru
      _
    %4172 = vsyncpa [#allocation6], 1

</llo_original>
